<compile_context>
chip_gen: v7x
topology: tpu7x:2x2x1
jax: 0.10.0
libtpu: 0.0.40
codegen_flags: <defaults>
</compile_context>

<pallas_src>
import functools

import jax
import jax.numpy as jnp
from jax.experimental import pallas as pl
from jax.experimental.pallas import tpu as pltpu


def _round_up(x, m):
    return ((x + m - 1) // m) * m


def _lstm_chunk_kernel(maxlen_ref, x_ref, len_ref, wih_ref, whh_ref, b_ref,
                       out_ref, ht_ref, ct_ref, gx_scr, *, hidden, time_chunk):
    """One grid step == one (batch tile, time chunk).

    maxlen_ref : (1,)   SMEM int32   max(x_len) — chunk-skip bound
    x_ref      : (Bp, Tc, I)   f32   batch-first input chunk (native layout)
    len_ref    : (Bp, 1)       i32   per-row valid lengths (padded rows = 0)
    wih_ref    : (I, Gp)       bf16  input->gates weights, gates contiguous
    whh_ref    : (H, Gp)       bf16  hidden->gates weights, gates contiguous
    b_ref      : (1, Gp)       f32   combined bias (b_ih + b_hh)
    out_ref    : (Bp, Tc, H)   f32   per-timestep outputs (batch-first, native)
    ht_ref     : (Bp, H)       f32   resident hidden state (carry + final out)
    ct_ref     : (Bp, H)       f32   resident cell state   (carry + final out)
    gx_scr     : (Bp, Tc, Gp)  f32   hoisted input projection for this chunk
    """
    H = hidden
    Tc = time_chunk
    chunk = pl.program_id(1)
    t0 = chunk * Tc

    # --- init recurrent state at the first chunk of every batch tile --------
    @pl.when(chunk == 0)
    def _():
        ht_ref[...] = jnp.zeros_like(ht_ref)
        ct_ref[...] = jnp.zeros_like(ct_ref)

    active = t0 < maxlen_ref[0]

    # Chunk lies entirely past max(x_len): outputs zero, (h, c) stay frozen.
    @pl.when(jnp.logical_not(active))
    def _():
        out_ref[...] = jnp.zeros_like(out_ref)

    @pl.when(active)
    def _():
        Bp, tc, i_dim = x_ref.shape
        gp = gx_scr.shape[-1]

        # --- hoisted input projection (no recurrent dependency) -------------
        # One (Bp*Tc, I) x (I, Gp) bf16 MXU matmul with f32 accumulation.
        x_flat = x_ref[...].astype(jnp.bfloat16).reshape(Bp * tc, i_dim)
        gx = jnp.dot(x_flat, wih_ref[...], preferred_element_type=jnp.float32)
        gx = gx + b_ref[...]
        gx_scr[...] = gx.reshape(Bp, tc, gp)

        lens = len_ref[...]            # (Bp, 1) int32
        whh = whh_ref[...]             # (H, Gp) bf16
        h = ht_ref[...]                # (Bp, H) f32 carry (in registers)
        c = ct_ref[...]                # (Bp, H) f32 carry

        # --- fully unrolled serial recurrence over this chunk ---------------
        # Static indices everywhere; steps past max(x_len) are masked no-ops
        # that also write the required zeros into out.
        for lt in range(Tc):
            t = t0 + lt
            gates = gx_scr[:, lt, :] + jnp.dot(
                h.astype(jnp.bfloat16), whh,
                preferred_element_type=jnp.float32)            # (Bp, Gp)

            i_g = jax.nn.sigmoid(gates[:, 0 * H:1 * H])
            f_g = jax.nn.sigmoid(gates[:, 1 * H:2 * H])
            g_g = jnp.tanh(gates[:, 2 * H:3 * H])
            o_g = jax.nn.sigmoid(gates[:, 3 * H:4 * H])

            c_new = f_g * c + i_g * g_g
            h_new = o_g * jnp.tanh(c_new)

            valid = lens > t                                   # (Bp, 1) broadcast
            h = jnp.where(valid, h_new, h)                     # freeze past length
            c = jnp.where(valid, c_new, c)
            out_ref[:, lt, :] = jnp.where(valid, h_new, 0.0).astype(out_ref.dtype)

        ht_ref[...] = h                                        # one store per chunk
        ct_ref[...] = c


def dynamic_lstm_pallas(x, x_len, w_ih, w_hh, b_ih, b_hh, *, time_chunk=None):
    """Equivalent of DynamicLSTM.forward (LSTM, num_layers=1, unidirectional).

    x     : (B, T, I) float32, batch-first
    x_len : (B,)      int valid lengths
    w_ih  : (4H, I), w_hh: (4H, H), b_ih/b_hh: (4H,)  (PyTorch layout, gates i,f,g,o)

    Returns (out, (ht, ct)) with out: (B, T, H), ht/ct: (1, B, H).
    """
    B, T, I = x.shape
    H = w_hh.shape[1]
    G = 4 * H
    LANE, SUB = 128, 8
    Gp = _round_up(G, LANE)          # gates contiguous, tail-padded to lane multiple

    # ---- batch tiling: batch is the only parallel axis of the recurrence ----
    B8 = _round_up(B, SUB)
    Bp = min(B8, 128)                # rows per batch tile; extra MXU rows ~free
    n_btiles = -(-B8 // Bp)
    Bpad = n_btiles * Bp

    # ---- time chunking: fully-unrolled inner loop of Tc steps per grid step --
    T8 = _round_up(T, SUB)
    if time_chunk is None:
        Tc = min(T8, 32)
    else:
        Tc = min(_round_up(max(time_chunk, 1), SUB), T8)

    def vmem_need(tc):
        return (2 * Bp * tc * I * 4           # x chunk   (f32, double-buffered)
                + 2 * Bp * tc * H * 4         # out chunk (f32, double-buffered)
                + Bp * tc * Gp * 4            # gx scratch
                + 2 * (I + H) * Gp * 2        # bf16 weights (double-buffered)
                + 2 * Gp * 4                  # bias
                + 4 * Bp * H * 4              # ht, ct
                + 2 * Bp * 4)                 # lens

    try:
        vmem_cap = int(pltpu.get_tpu_info().vmem_capacity_bytes)
    except Exception:
        vmem_cap = 64 * 1024 * 1024           # conservative (v7x per-core VMEM)
    budget = min(vmem_cap // 2, 28 * 1024 * 1024)
    while Tc > SUB and vmem_need(Tc) > budget:
        Tc -= SUB
    n_chunks = -(-T // Tc)
    Tp = n_chunks * Tc
    vmem_limit = int(min(vmem_cap * 3 // 4,
                         max(2 * vmem_need(Tc), 32 * 1024 * 1024)))

    # ---- padded, layout-native inputs (no transposes) -----------------------
    x_p = jnp.pad(x.astype(jnp.float32),
                  ((0, Bpad - B), (0, Tp - T), (0, 0)))            # (Bpad, Tp, I)
    lens = jnp.pad(x_len.astype(jnp.int32).reshape(B, 1),
                   ((0, Bpad - B), (0, 0)))                        # (Bpad, 1)
    maxlen = jnp.max(x_len).astype(jnp.int32).reshape(1)           # (1,) -> SMEM

    # Weights: (in, 4H) with gates contiguous, tail lane-padded, bf16.
    wih_p = jnp.pad(jnp.transpose(w_ih), ((0, 0), (0, Gp - G))).astype(jnp.bfloat16)
    whh_p = jnp.pad(jnp.transpose(w_hh), ((0, 0), (0, Gp - G))).astype(jnp.bfloat16)
    bias_p = jnp.pad((b_ih + b_hh).astype(jnp.float32).reshape(1, G),
                     ((0, 0), (0, Gp - G)))                        # (1, Gp) f32

    kernel = functools.partial(_lstm_chunk_kernel, hidden=H, time_chunk=Tc)

    grid_spec = pltpu.PrefetchScalarGridSpec(
        num_scalar_prefetch=1,                 # maxlen -> SMEM
        grid=(n_btiles, n_chunks),             # (parallel batch tiles, serial chunks)
        in_specs=[
            pl.BlockSpec((Bp, Tc, I), lambda b, c, ml: (b, c, 0)),   # x (native)
            pl.BlockSpec((Bp, 1), lambda b, c, ml: (b, 0)),          # lengths
            pl.BlockSpec((I, Gp), lambda b, c, ml: (0, 0)),          # W_ih^T bf16
            pl.BlockSpec((H, Gp), lambda b, c, ml: (0, 0)),          # W_hh^T bf16
            pl.BlockSpec((1, Gp), lambda b, c, ml: (0, 0)),          # bias
        ],
        out_specs=[
            pl.BlockSpec((Bp, Tc, H), lambda b, c, ml: (b, c, 0)),   # out (native)
            pl.BlockSpec((Bp, H), lambda b, c, ml: (b, 0)),          # ht (resident)
            pl.BlockSpec((Bp, H), lambda b, c, ml: (b, 0)),          # ct (resident)
        ],
        scratch_shapes=[
            pltpu.VMEM((Bp, Tc, Gp), jnp.float32),                   # hoisted gates_x
        ],
    )

    out_p, ht, ct = pl.pallas_call(
        kernel,
        out_shape=(
            jax.ShapeDtypeStruct((Bpad, Tp, H), jnp.float32),
            jax.ShapeDtypeStruct((Bpad, H), jnp.float32),
            jax.ShapeDtypeStruct((Bpad, H), jnp.float32),
        ),
        grid_spec=grid_spec,
        compiler_params=pltpu.CompilerParams(
            dimension_semantics=("parallel", "arbitrary"),   # time axis stays serial
            vmem_limit_bytes=vmem_limit),
    )(maxlen, x_p, lens, wih_p, whh_p, bias_p)

    out = out_p[:B, :T, :]
    return out, (ht[:B][None], ct[:B][None])     # (1, B, H) like PyTorch


def _lstm_reference(x, x_len, w_ih, w_hh, b_ih, b_hh):
    """Pure-JAX f32 reference of the same variable-length LSTM semantics."""
    B, T, I = x.shape
    H = w_hh.shape[1]
    bias = b_ih + b_hh

    def step(carry, xs):
        h, c = carry
        x_t, t = xs
        gates = x_t @ w_ih.T + h @ w_hh.T + bias
        i_g = jax.nn.sigmoid(gates[:, 0 * H:1 * H])
        f_g = jax.nn.sigmoid(gates[:, 1 * H:2 * H])
        g_g = jnp.tanh(gates[:, 2 * H:3 * H])
        o_g = jax.nn.sigmoid(gates[:, 3 * H:4 * H])
        c_new = f_g * c + i_g * g_g
        h_new = o_g * jnp.tanh(c_new)
        valid = (x_len > t)[:, None]
        h_u = jnp.where(valid, h_new, h)
        c_u = jnp.where(valid, c_new, c)
        y = jnp.where(valid, h_new, 0.0)
        return (h_u, c_u), y

    (hT, cT), ys = jax.lax.scan(
        step,
        (jnp.zeros((B, H), jnp.float32), jnp.zeros((B, H), jnp.float32)),
        (jnp.transpose(x, (1, 0, 2)), jnp.arange(T)),
    )
    return jnp.transpose(ys, (1, 0, 2)), (hT[None], cT[None])


if __name__ == "__main__":
    # Small shapes implied by the module: batch=2, seq=8, input_size=16, hidden=32.
    B, T, I, H = 2, 8, 16, 32

    key = jax.random.PRNGKey(0)
    k_x, k_x2, k_x3, k_wih, k_whh, k_bih, k_bhh = jax.random.split(key, 7)

    # PyTorch nn.LSTM default init: U(-1/sqrt(H), 1/sqrt(H)), gate order (i,f,g,o).
    bound = 1.0 / jnp.sqrt(jnp.float32(H))
    w_ih = jax.random.uniform(k_wih, (4 * H, I), jnp.float32, -bound, bound)
    w_hh = jax.random.uniform(k_whh, (4 * H, H), jnp.float32, -bound, bound)
    b_ih = jax.random.uniform(k_bih, (4 * H,), jnp.float32, -bound, bound)
    b_hh = jax.random.uniform(k_bhh, (4 * H,), jnp.float32, -bound, bound)

    TOL = 3e-2   # bf16 MXU operands with f32 accumulation vs. f32 reference

    def check(xx, x_len, **kw):
        out, (ht, ct) = dynamic_lstm_pallas(xx, x_len, w_ih, w_hh, b_ih, b_hh, **kw)
        jax.block_until_ready((out, ht, ct))
        out_r, (ht_r, ct_r) = _lstm_reference(xx, x_len, w_ih, w_hh, b_ih, b_hh)
        assert out.shape == out_r.shape and ht.shape == ht_r.shape and ct.shape == ct_r.shape
        assert float(jnp.max(jnp.abs(out - out_r))) < TOL
        assert float(jnp.max(jnp.abs(ht - ht_r))) < TOL
        assert float(jnp.max(jnp.abs(ct - ct_r))) < TOL

    x = jax.random.normal(k_x, (B, T, I), dtype=jnp.float32)
    # 1) full-length-ish batch, single chunk
    check(x, jnp.array([6, 8], dtype=jnp.int32))
    # 2) max(x_len) < T exercises the per-step length mask / zero padding
    check(x, jnp.array([3, 5], dtype=jnp.int32))

    # 3) longer sequence: multi-chunk grid, resident (h, c) carry across chunks,
    #    and a dead chunk (t0 >= max(x_len)) exercising the chunk-skip path
    x2 = jax.random.normal(k_x2, (B, 24, I), dtype=jnp.float32)
    check(x2, jnp.array([10, 13], dtype=jnp.int32), time_chunk=8)

    # 4) batch > 8: multiple sublane rows (and padded rows) inside one batch tile
    x3 = jax.random.normal(k_x3, (10, T, I), dtype=jnp.float32)
    check(x3, jnp.array([8, 1, 5, 7, 3, 8, 2, 6, 4, 8], dtype=jnp.int32))

    print("KERNEL_OK")
</pallas_src>

<mosaic_0001>
module attributes {stable_mosaic.version = 11 : i64} {
  func.func @_lstm_chunk_kernel(%arg0: i32, %arg1: i32, %arg2: memref<1xi32, #tpu.memory_space<smem>>, %arg3: memref<8x8x16xf32, #tpu.memory_space<vmem>>, %arg4: memref<8x1xi32, #tpu.memory_space<vmem>>, %arg5: memref<16x128xbf16, #tpu.memory_space<vmem>>, %arg6: memref<32x128xbf16, #tpu.memory_space<vmem>>, %arg7: memref<1x128xf32, #tpu.memory_space<vmem>>, %arg8: memref<8x8x32xf32, #tpu.memory_space<vmem>>, %arg9: memref<8x32xf32, #tpu.memory_space<vmem>>, %arg10: memref<8x32xf32, #tpu.memory_space<vmem>>, %arg11: memref<8x8x128xf32, #tpu.memory_space<vmem>>) attributes {dimension_semantics = [#tpu.dimension_semantics<parallel>, #tpu.dimension_semantics<arbitrary>], iteration_bounds = array<i64: 1, 1>, scalar_prefetch = 1 : i64, scratch_operands = 1 : i64, tpu.core_type = #tpu.core_type<tc>, window_params = [{transform_indices = @transform_0, window_bounds = array<i64: 8, 8, 16>}, {transform_indices = @transform_1, window_bounds = array<i64: 8, 1>}, {pipeline_mode = #tpu.pipeline_mode<synchronous>, transform_indices = @transform_2, window_bounds = array<i64: 16, 128>}, {pipeline_mode = #tpu.pipeline_mode<synchronous>, transform_indices = @transform_3, window_bounds = array<i64: 32, 128>}, {pipeline_mode = #tpu.pipeline_mode<synchronous>, transform_indices = @transform_4, window_bounds = array<i64: 1, 128>}, {transform_indices = @transform_5, window_bounds = array<i64: 8, 8, 32>}, {transform_indices = @transform_6, window_bounds = array<i64: 8, 32>}, {transform_indices = @transform_7, window_bounds = array<i64: 8, 32>}]} {
    %c8_i32 = arith.constant 8 : i32
    %0 = arith.muli %arg1, %c8_i32 : i32
    %c0_i32 = arith.constant 0 : i32
    %1 = arith.cmpi eq, %arg1, %c0_i32 : i32
    %2 = arith.extui %1 : i1 to i32
    %c0_i32_0 = arith.constant 0 : i32
    %3 = arith.cmpi ne, %2, %c0_i32_0 : i32
    scf.if %3 {
      %cst = arith.constant 0.000000e+00 : f32
      %11 = vector.broadcast %cst : f32 to vector<8x32xf32>
      %c0_3 = arith.constant 0 : index
      %c0_4 = arith.constant 0 : index
      %12 = vector.load %arg9[%c0_3, %c0_4] : memref<8x32xf32, #tpu.memory_space<vmem>>, vector<8x32xf32>
      tpu.vector_store %arg9[%c0_3, %c0_4], %11 {strides = array<i32>} : memref<8x32xf32, #tpu.memory_space<vmem>>, vector<8x32xf32>,
      %cst_5 = arith.constant 0.000000e+00 : f32
      %13 = vector.broadcast %cst_5 : f32 to vector<8x32xf32>
      %c0_6 = arith.constant 0 : index
      %c0_7 = arith.constant 0 : index
      %14 = vector.load %arg10[%c0_6, %c0_7] : memref<8x32xf32, #tpu.memory_space<vmem>>, vector<8x32xf32>
      tpu.vector_store %arg10[%c0_6, %c0_7], %13 {strides = array<i32>} : memref<8x32xf32, #tpu.memory_space<vmem>>, vector<8x32xf32>,
    } else {
    }
    %c0 = arith.constant 0 : index
    %4 = memref.load %arg2[%c0] : memref<1xi32, #tpu.memory_space<smem>>
    %5 = arith.cmpi slt, %0, %4 : i32
    %true = arith.constant true
    %6 = arith.xori %5, %true : i1
    %7 = arith.extui %6 : i1 to i32
    %c0_i32_1 = arith.constant 0 : i32
    %8 = arith.cmpi ne, %7, %c0_i32_1 : i32
    scf.if %8 {
      %cst = arith.constant 0.000000e+00 : f32
      %11 = vector.broadcast %cst : f32 to vector<8x8x32xf32>
      %c0_3 = arith.constant 0 : index
      %c0_4 = arith.constant 0 : index
      %c0_5 = arith.constant 0 : index
      %12 = vector.load %arg8[%c0_3, %c0_4, %c0_5] : memref<8x8x32xf32, #tpu.memory_space<vmem>>, vector<8x8x32xf32>
      tpu.vector_store %arg8[%c0_3, %c0_4, %c0_5], %11 {strides = array<i32>} : memref<8x8x32xf32, #tpu.memory_space<vmem>>, vector<8x8x32xf32>,
    } else {
    }
    %9 = arith.extui %5 : i1 to i32
    %c0_i32_2 = arith.constant 0 : i32
    %10 = arith.cmpi ne, %9, %c0_i32_2 : i32
    scf.if %10 {
      %c0_3 = arith.constant 0 : index
      %c0_4 = arith.constant 0 : index
      %c0_5 = arith.constant 0 : index
      %11 = vector.load %arg3[%c0_3, %c0_4, %c0_5] : memref<8x8x16xf32, #tpu.memory_space<vmem>>, vector<8x8x16xf32>
      %12 = arith.truncf %11 : vector<8x8x16xf32> to vector<8x8x16xbf16>
      %13 = vector.shape_cast %12 : vector<8x8x16xbf16> to vector<64x16xbf16>
      %c0_6 = arith.constant 0 : index
      %c0_7 = arith.constant 0 : index
      %14 = vector.load %arg5[%c0_6, %c0_7] : memref<16x128xbf16, #tpu.memory_space<vmem>>, vector<16x128xbf16>
      %cst = arith.constant dense<0.000000e+00> : vector<64x128xf32>
      %15 = tpu.matmul %13, %14, %cst {dimension_numbers = #tpu.dot_dimension_numbers<[1], [0], [0], [1], [0, 0, 1, 1], [], []>} : vector<64x16xbf16>, vector<16x128xbf16>, vector<64x128xf32> -> vector<64x128xf32>
      %c0_8 = arith.constant 0 : index
      %c0_9 = arith.constant 0 : index
      %16 = vector.load %arg7[%c0_8, %c0_9] : memref<1x128xf32, #tpu.memory_space<vmem>>, vector<1x128xf32>
      %17 = vector.broadcast %16 : vector<1x128xf32> to vector<64x128xf32>
      %18 = arith.addf %15, %17 : vector<64x128xf32>
      %19 = vector.shape_cast %18 : vector<64x128xf32> to vector<8x8x128xf32>
      %c0_10 = arith.constant 0 : index
      %c0_11 = arith.constant 0 : index
      %c0_12 = arith.constant 0 : index
      %20 = vector.load %arg11[%c0_10, %c0_11, %c0_12] : memref<8x8x128xf32, #tpu.memory_space<vmem>>, vector<8x8x128xf32>
      tpu.vector_store %arg11[%c0_10, %c0_11, %c0_12], %19 {strides = array<i32>} : memref<8x8x128xf32, #tpu.memory_space<vmem>>, vector<8x8x128xf32>,
      %c0_13 = arith.constant 0 : index
      %c0_14 = arith.constant 0 : index
      %21 = vector.load %arg4[%c0_13, %c0_14] : memref<8x1xi32, #tpu.memory_space<vmem>>, vector<8x1xi32>
      %c0_15 = arith.constant 0 : index
      %c0_16 = arith.constant 0 : index
      %22 = vector.load %arg6[%c0_15, %c0_16] : memref<32x128xbf16, #tpu.memory_space<vmem>>, vector<32x128xbf16>
      %c0_17 = arith.constant 0 : index
      %c0_18 = arith.constant 0 : index
      %23 = vector.load %arg9[%c0_17, %c0_18] : memref<8x32xf32, #tpu.memory_space<vmem>>, vector<8x32xf32>
      %c0_19 = arith.constant 0 : index
      %c0_20 = arith.constant 0 : index
      %24 = vector.load %arg10[%c0_19, %c0_20] : memref<8x32xf32, #tpu.memory_space<vmem>>, vector<8x32xf32>
      %c0_i32_21 = arith.constant 0 : i32
      %25 = arith.addi %0, %c0_i32_21 : i32
      %c0_22 = arith.constant 0 : index
      %c0_23 = arith.constant 0 : index
      %c0_24 = arith.constant 0 : index
      %26 = vector.load %arg11[%c0_22, %c0_23, %c0_24] : memref<8x8x128xf32, #tpu.memory_space<vmem>>, vector<8x1x128xf32>
      %27 = vector.shape_cast %26 : vector<8x1x128xf32> to vector<8x128xf32>
      %28 = arith.truncf %23 : vector<8x32xf32> to vector<8x32xbf16>
      %cst_25 = arith.constant dense<0.000000e+00> : vector<8x128xf32>
      %29 = tpu.matmul %28, %22, %cst_25 {dimension_numbers = #tpu.dot_dimension_numbers<[1], [0], [0], [1], [0, 0, 1, 1], [], []>} : vector<8x32xbf16>, vector<32x128xbf16>, vector<8x128xf32> -> vector<8x128xf32>
      %30 = arith.addf %27, %29 : vector<8x128xf32>
      %31 = vector.extract_strided_slice %30 {offsets = [0, 0], sizes = [8, 32], strides = [1, 1]} : vector<8x128xf32> to vector<8x32xf32>
      %32 = arith.negf %31 : vector<8x32xf32>
      %33 = math.exp %32 : vector<8x32xf32>
      %cst_26 = arith.constant 1.000000e+00 : f32
      %34 = vector.broadcast %cst_26 : f32 to vector<8x32xf32>
      %35 = arith.addf %34, %33 : vector<8x32xf32>
      %36 = arith.divf %34, %35 : vector<8x32xf32>
      %37 = vector.extract_strided_slice %30 {offsets = [0, 32], sizes = [8, 32], strides = [1, 1]} : vector<8x128xf32> to vector<8x32xf32>
      %38 = arith.negf %37 : vector<8x32xf32>
      %39 = math.exp %38 : vector<8x32xf32>
      %cst_27 = arith.constant 1.000000e+00 : f32
      %40 = vector.broadcast %cst_27 : f32 to vector<8x32xf32>
      %41 = arith.addf %40, %39 : vector<8x32xf32>
      %42 = arith.divf %40, %41 : vector<8x32xf32>
      %43 = vector.extract_strided_slice %30 {offsets = [0, 64], sizes = [8, 32], strides = [1, 1]} : vector<8x128xf32> to vector<8x32xf32>
      %44 = math.tanh %43 : vector<8x32xf32>
      %45 = vector.extract_strided_slice %30 {offsets = [0, 96], sizes = [8, 32], strides = [1, 1]} : vector<8x128xf32> to vector<8x32xf32>
      %46 = arith.negf %45 : vector<8x32xf32>
      %47 = math.exp %46 : vector<8x32xf32>
      %cst_28 = arith.constant 1.000000e+00 : f32
      %48 = vector.broadcast %cst_28 : f32 to vector<8x32xf32>
      %49 = arith.addf %48, %47 : vector<8x32xf32>
      %50 = arith.divf %48, %49 : vector<8x32xf32>
      %51 = arith.mulf %42, %24 : vector<8x32xf32>
      %52 = arith.mulf %36, %44 : vector<8x32xf32>
      %53 = arith.addf %51, %52 : vector<8x32xf32>
      %54 = math.tanh %53 : vector<8x32xf32>
      %55 = arith.mulf %50, %54 : vector<8x32xf32>
      %56 = vector.broadcast %25 : i32 to vector<8x1xi32>
      %57 = arith.cmpi sgt, %21, %56 : vector<8x1xi32>
      %58 = vector.shape_cast %57 : vector<8x1xi1> to vector<8x1xi1>
      %59 = vector.broadcast %58 : vector<8x1xi1> to vector<8x32xi1>
      %60 = arith.select %59, %55, %23 : vector<8x32xi1>, vector<8x32xf32>
      %61 = vector.shape_cast %57 : vector<8x1xi1> to vector<8x1xi1>
      %62 = vector.broadcast %61 : vector<8x1xi1> to vector<8x32xi1>
      %63 = arith.select %62, %53, %24 : vector<8x32xi1>, vector<8x32xf32>
      %cst_29 = arith.constant 0.000000e+00 : f32
      %64 = vector.shape_cast %57 : vector<8x1xi1> to vector<8x1xi1>
      %65 = vector.broadcast %64 : vector<8x1xi1> to vector<8x32xi1>
      %66 = vector.broadcast %cst_29 : f32 to vector<8x32xf32>
      %67 = arith.select %65, %55, %66 : vector<8x32xi1>, vector<8x32xf32>
      %c0_30 = arith.constant 0 : index
      %c0_31 = arith.constant 0 : index
      %c0_32 = arith.constant 0 : index
      %68 = vector.load %arg8[%c0_30, %c0_31, %c0_32] : memref<8x8x32xf32, #tpu.memory_space<vmem>>, vector<8x1x32xf32>
      %69 = vector.shape_cast %68 : vector<8x1x32xf32> to vector<8x32xf32>
      %70 = vector.shape_cast %67 : vector<8x32xf32> to vector<8x1x32xf32>
      tpu.vector_store %arg8[%c0_30, %c0_31, %c0_32], %70 {strides = array<i32>} : memref<8x8x32xf32, #tpu.memory_space<vmem>>, vector<8x1x32xf32>,
      %c1_i32 = arith.constant 1 : i32
      %71 = arith.addi %0, %c1_i32 : i32
      %c0_33 = arith.constant 0 : index
      %c1 = arith.constant 1 : index
      %c0_34 = arith.constant 0 : index
      %72 = vector.load %arg11[%c0_33, %c1, %c0_34] : memref<8x8x128xf32, #tpu.memory_space<vmem>>, vector<8x1x128xf32>
      %73 = vector.shape_cast %72 : vector<8x1x128xf32> to vector<8x128xf32>
      %74 = arith.truncf %60 : vector<8x32xf32> to vector<8x32xbf16>
      %cst_35 = arith.constant dense<0.000000e+00> : vector<8x128xf32>
      %75 = tpu.matmul %74, %22, %cst_35 {dimension_numbers = #tpu.dot_dimension_numbers<[1], [0], [0], [1], [0, 0, 1, 1], [], []>} : vector<8x32xbf16>, vector<32x128xbf16>, vector<8x128xf32> -> vector<8x128xf32>
      %76 = arith.addf %73, %75 : vector<8x128xf32>
      %77 = vector.extract_strided_slice %76 {offsets = [0, 0], sizes = [8, 32], strides = [1, 1]} : vector<8x128xf32> to vector<8x32xf32>
      %78 = arith.negf %77 : vector<8x32xf32>
      %79 = math.exp %78 : vector<8x32xf32>
      %cst_36 = arith.constant 1.000000e+00 : f32
      %80 = vector.broadcast %cst_36 : f32 to vector<8x32xf32>
      %81 = arith.addf %80, %79 : vector<8x32xf32>
      %82 = arith.divf %80, %81 : vector<8x32xf32>
      %83 = vector.extract_strided_slice %76 {offsets = [0, 32], sizes = [8, 32], strides = [1, 1]} : vector<8x128xf32> to vector<8x32xf32>
      %84 = arith.negf %83 : vector<8x32xf32>
      %85 = math.exp %84 : vector<8x32xf32>
      %cst_37 = arith.constant 1.000000e+00 : f32
      %86 = vector.broadcast %cst_37 : f32 to vector<8x32xf32>
      %87 = arith.addf %86, %85 : vector<8x32xf32>
      %88 = arith.divf %86, %87 : vector<8x32xf32>
      %89 = vector.extract_strided_slice %76 {offsets = [0, 64], sizes = [8, 32], strides = [1, 1]} : vector<8x128xf32> to vector<8x32xf32>
      %90 = math.tanh %89 : vector<8x32xf32>
      %91 = vector.extract_strided_slice %76 {offsets = [0, 96], sizes = [8, 32], strides = [1, 1]} : vector<8x128xf32> to vector<8x32xf32>
      %92 = arith.negf %91 : vector<8x32xf32>
      %93 = math.exp %92 : vector<8x32xf32>
      %cst_38 = arith.constant 1.000000e+00 : f32
      %94 = vector.broadcast %cst_38 : f32 to vector<8x32xf32>
      %95 = arith.addf %94, %93 : vector<8x32xf32>
      %96 = arith.divf %94, %95 : vector<8x32xf32>
      %97 = arith.mulf %88, %63 : vector<8x32xf32>
      %98 = arith.mulf %82, %90 : vector<8x32xf32>
      %99 = arith.addf %97, %98 : vector<8x32xf32>
      %100 = math.tanh %99 : vector<8x32xf32>
      %101 = arith.mulf %96, %100 : vector<8x32xf32>
      %102 = vector.broadcast %71 : i32 to vector<8x1xi32>
      %103 = arith.cmpi sgt, %21, %102 : vector<8x1xi32>
      %104 = vector.shape_cast %103 : vector<8x1xi1> to vector<8x1xi1>
      %105 = vector.broadcast %104 : vector<8x1xi1> to vector<8x32xi1>
      %106 = arith.select %105, %101, %60 : vector<8x32xi1>, vector<8x32xf32>
      %107 = vector.shape_cast %103 : vector<8x1xi1> to vector<8x1xi1>
      %108 = vector.broadcast %107 : vector<8x1xi1> to vector<8x32xi1>
      %109 = arith.select %108, %99, %63 : vector<8x32xi1>, vector<8x32xf32>
      %cst_39 = arith.constant 0.000000e+00 : f32
      %110 = vector.shape_cast %103 : vector<8x1xi1> to vector<8x1xi1>
      %111 = vector.broadcast %110 : vector<8x1xi1> to vector<8x32xi1>
      %112 = vector.broadcast %cst_39 : f32 to vector<8x32xf32>
      %113 = arith.select %111, %101, %112 : vector<8x32xi1>, vector<8x32xf32>
      %c0_40 = arith.constant 0 : index
      %c1_41 = arith.constant 1 : index
      %c0_42 = arith.constant 0 : index
      %114 = vector.load %arg8[%c0_40, %c1_41, %c0_42] : memref<8x8x32xf32, #tpu.memory_space<vmem>>, vector<8x1x32xf32>
      %115 = vector.shape_cast %114 : vector<8x1x32xf32> to vector<8x32xf32>
      %116 = vector.shape_cast %113 : vector<8x32xf32> to vector<8x1x32xf32>
      tpu.vector_store %arg8[%c0_40, %c1_41, %c0_42], %116 {strides = array<i32>} : memref<8x8x32xf32, #tpu.memory_space<vmem>>, vector<8x1x32xf32>,
      %c2_i32 = arith.constant 2 : i32
      %117 = arith.addi %0, %c2_i32 : i32
      %c0_43 = arith.constant 0 : index
      %c2 = arith.constant 2 : index
      %c0_44 = arith.constant 0 : index
      %118 = vector.load %arg11[%c0_43, %c2, %c0_44] : memref<8x8x128xf32, #tpu.memory_space<vmem>>, vector<8x1x128xf32>
      %119 = vector.shape_cast %118 : vector<8x1x128xf32> to vector<8x128xf32>
      %120 = arith.truncf %106 : vector<8x32xf32> to vector<8x32xbf16>
      %cst_45 = arith.constant dense<0.000000e+00> : vector<8x128xf32>
      %121 = tpu.matmul %120, %22, %cst_45 {dimension_numbers = #tpu.dot_dimension_numbers<[1], [0], [0], [1], [0, 0, 1, 1], [], []>} : vector<8x32xbf16>, vector<32x128xbf16>, vector<8x128xf32> -> vector<8x128xf32>
      %122 = arith.addf %119, %121 : vector<8x128xf32>
      %123 = vector.extract_strided_slice %122 {offsets = [0, 0], sizes = [8, 32], strides = [1, 1]} : vector<8x128xf32> to vector<8x32xf32>
      %124 = arith.negf %123 : vector<8x32xf32>
      %125 = math.exp %124 : vector<8x32xf32>
      %cst_46 = arith.constant 1.000000e+00 : f32
      %126 = vector.broadcast %cst_46 : f32 to vector<8x32xf32>
      %127 = arith.addf %126, %125 : vector<8x32xf32>
      %128 = arith.divf %126, %127 : vector<8x32xf32>
      %129 = vector.extract_strided_slice %122 {offsets = [0, 32], sizes = [8, 32], strides = [1, 1]} : vector<8x128xf32> to vector<8x32xf32>
      %130 = arith.negf %129 : vector<8x32xf32>
      %131 = math.exp %130 : vector<8x32xf32>
      %cst_47 = arith.constant 1.000000e+00 : f32
      %132 = vector.broadcast %cst_47 : f32 to vector<8x32xf32>
      %133 = arith.addf %132, %131 : vector<8x32xf32>
      %134 = arith.divf %132, %133 : vector<8x32xf32>
      %135 = vector.extract_strided_slice %122 {offsets = [0, 64], sizes = [8, 32], strides = [1, 1]} : vector<8x128xf32> to vector<8x32xf32>
      %136 = math.tanh %135 : vector<8x32xf32>
      %137 = vector.extract_strided_slice %122 {offsets = [0, 96], sizes = [8, 32], strides = [1, 1]} : vector<8x128xf32> to vector<8x32xf32>
      %138 = arith.negf %137 : vector<8x32xf32>
      %139 = math.exp %138 : vector<8x32xf32>
      %cst_48 = arith.constant 1.000000e+00 : f32
      %140 = vector.broadcast %cst_48 : f32 to vector<8x32xf32>
      %141 = arith.addf %140, %139 : vector<8x32xf32>
      %142 = arith.divf %140, %141 : vector<8x32xf32>
      %143 = arith.mulf %134, %109 : vector<8x32xf32>
      %144 = arith.mulf %128, %136 : vector<8x32xf32>
      %145 = arith.addf %143, %144 : vector<8x32xf32>
      %146 = math.tanh %145 : vector<8x32xf32>
      %147 = arith.mulf %142, %146 : vector<8x32xf32>
      %148 = vector.broadcast %117 : i32 to vector<8x1xi32>
      %149 = arith.cmpi sgt, %21, %148 : vector<8x1xi32>
      %150 = vector.shape_cast %149 : vector<8x1xi1> to vector<8x1xi1>
      %151 = vector.broadcast %150 : vector<8x1xi1> to vector<8x32xi1>
      %152 = arith.select %151, %147, %106 : vector<8x32xi1>, vector<8x32xf32>
      %153 = vector.shape_cast %149 : vector<8x1xi1> to vector<8x1xi1>
      %154 = vector.broadcast %153 : vector<8x1xi1> to vector<8x32xi1>
      %155 = arith.select %154, %145, %109 : vector<8x32xi1>, vector<8x32xf32>
      %cst_49 = arith.constant 0.000000e+00 : f32
      %156 = vector.shape_cast %149 : vector<8x1xi1> to vector<8x1xi1>
      %157 = vector.broadcast %156 : vector<8x1xi1> to vector<8x32xi1>
      %158 = vector.broadcast %cst_49 : f32 to vector<8x32xf32>
      %159 = arith.select %157, %147, %158 : vector<8x32xi1>, vector<8x32xf32>
      %c0_50 = arith.constant 0 : index
      %c2_51 = arith.constant 2 : index
      %c0_52 = arith.constant 0 : index
      %160 = vector.load %arg8[%c0_50, %c2_51, %c0_52] : memref<8x8x32xf32, #tpu.memory_space<vmem>>, vector<8x1x32xf32>
      %161 = vector.shape_cast %160 : vector<8x1x32xf32> to vector<8x32xf32>
      %162 = vector.shape_cast %159 : vector<8x32xf32> to vector<8x1x32xf32>
      tpu.vector_store %arg8[%c0_50, %c2_51, %c0_52], %162 {strides = array<i32>} : memref<8x8x32xf32, #tpu.memory_space<vmem>>, vector<8x1x32xf32>,
      %c3_i32 = arith.constant 3 : i32
      %163 = arith.addi %0, %c3_i32 : i32
      %c0_53 = arith.constant 0 : index
      %c3 = arith.constant 3 : index
      %c0_54 = arith.constant 0 : index
      %164 = vector.load %arg11[%c0_53, %c3, %c0_54] : memref<8x8x128xf32, #tpu.memory_space<vmem>>, vector<8x1x128xf32>
      %165 = vector.shape_cast %164 : vector<8x1x128xf32> to vector<8x128xf32>
      %166 = arith.truncf %152 : vector<8x32xf32> to vector<8x32xbf16>
      %cst_55 = arith.constant dense<0.000000e+00> : vector<8x128xf32>
      %167 = tpu.matmul %166, %22, %cst_55 {dimension_numbers = #tpu.dot_dimension_numbers<[1], [0], [0], [1], [0, 0, 1, 1], [], []>} : vector<8x32xbf16>, vector<32x128xbf16>, vector<8x128xf32> -> vector<8x128xf32>
      %168 = arith.addf %165, %167 : vector<8x128xf32>
      %169 = vector.extract_strided_slice %168 {offsets = [0, 0], sizes = [8, 32], strides = [1, 1]} : vector<8x128xf32> to vector<8x32xf32>
      %170 = arith.negf %169 : vector<8x32xf32>
      %171 = math.exp %170 : vector<8x32xf32>
      %cst_56 = arith.constant 1.000000e+00 : f32
      %172 = vector.broadcast %cst_56 : f32 to vector<8x32xf32>
      %173 = arith.addf %172, %171 : vector<8x32xf32>
      %174 = arith.divf %172, %173 : vector<8x32xf32>
      %175 = vector.extract_strided_slice %168 {offsets = [0, 32], sizes = [8, 32], strides = [1, 1]} : vector<8x128xf32> to vector<8x32xf32>
      %176 = arith.negf %175 : vector<8x32xf32>
      %177 = math.exp %176 : vector<8x32xf32>
      %cst_57 = arith.constant 1.000000e+00 : f32
      %178 = vector.broadcast %cst_57 : f32 to vector<8x32xf32>
      %179 = arith.addf %178, %177 : vector<8x32xf32>
      %180 = arith.divf %178, %179 : vector<8x32xf32>
      %181 = vector.extract_strided_slice %168 {offsets = [0, 64], sizes = [8, 32], strides = [1, 1]} : vector<8x128xf32> to vector<8x32xf32>
      %182 = math.tanh %181 : vector<8x32xf32>
      %183 = vector.extract_strided_slice %168 {offsets = [0, 96], sizes = [8, 32], strides = [1, 1]} : vector<8x128xf32> to vector<8x32xf32>
      %184 = arith.negf %183 : vector<8x32xf32>
      %185 = math.exp %184 : vector<8x32xf32>
      %cst_58 = arith.constant 1.000000e+00 : f32
      %186 = vector.broadcast %cst_58 : f32 to vector<8x32xf32>
      %187 = arith.addf %186, %185 : vector<8x32xf32>
      %188 = arith.divf %186, %187 : vector<8x32xf32>
      %189 = arith.mulf %180, %155 : vector<8x32xf32>
      %190 = arith.mulf %174, %182 : vector<8x32xf32>
      %191 = arith.addf %189, %190 : vector<8x32xf32>
      %192 = math.tanh %191 : vector<8x32xf32>
      %193 = arith.mulf %188, %192 : vector<8x32xf32>
      %194 = vector.broadcast %163 : i32 to vector<8x1xi32>
      %195 = arith.cmpi sgt, %21, %194 : vector<8x1xi32>
      %196 = vector.shape_cast %195 : vector<8x1xi1> to vector<8x1xi1>
      %197 = vector.broadcast %196 : vector<8x1xi1> to vector<8x32xi1>
      %198 = arith.select %197, %193, %152 : vector<8x32xi1>, vector<8x32xf32>
      %199 = vector.shape_cast %195 : vector<8x1xi1> to vector<8x1xi1>
      %200 = vector.broadcast %199 : vector<8x1xi1> to vector<8x32xi1>
      %201 = arith.select %200, %191, %155 : vector<8x32xi1>, vector<8x32xf32>
      %cst_59 = arith.constant 0.000000e+00 : f32
      %202 = vector.shape_cast %195 : vector<8x1xi1> to vector<8x1xi1>
      %203 = vector.broadcast %202 : vector<8x1xi1> to vector<8x32xi1>
      %204 = vector.broadcast %cst_59 : f32 to vector<8x32xf32>
      %205 = arith.select %203, %193, %204 : vector<8x32xi1>, vector<8x32xf32>
      %c0_60 = arith.constant 0 : index
      %c3_61 = arith.constant 3 : index
      %c0_62 = arith.constant 0 : index
      %206 = vector.load %arg8[%c0_60, %c3_61, %c0_62] : memref<8x8x32xf32, #tpu.memory_space<vmem>>, vector<8x1x32xf32>
      %207 = vector.shape_cast %206 : vector<8x1x32xf32> to vector<8x32xf32>
      %208 = vector.shape_cast %205 : vector<8x32xf32> to vector<8x1x32xf32>
      tpu.vector_store %arg8[%c0_60, %c3_61, %c0_62], %208 {strides = array<i32>} : memref<8x8x32xf32, #tpu.memory_space<vmem>>, vector<8x1x32xf32>,
      %c4_i32 = arith.constant 4 : i32
      %209 = arith.addi %0, %c4_i32 : i32
      %c0_63 = arith.constant 0 : index
      %c4 = arith.constant 4 : index
      %c0_64 = arith.constant 0 : index
      %210 = vector.load %arg11[%c0_63, %c4, %c0_64] : memref<8x8x128xf32, #tpu.memory_space<vmem>>, vector<8x1x128xf32>
      %211 = vector.shape_cast %210 : vector<8x1x128xf32> to vector<8x128xf32>
      %212 = arith.truncf %198 : vector<8x32xf32> to vector<8x32xbf16>
      %cst_65 = arith.constant dense<0.000000e+00> : vector<8x128xf32>
      %213 = tpu.matmul %212, %22, %cst_65 {dimension_numbers = #tpu.dot_dimension_numbers<[1], [0], [0], [1], [0, 0, 1, 1], [], []>} : vector<8x32xbf16>, vector<32x128xbf16>, vector<8x128xf32> -> vector<8x128xf32>
      %214 = arith.addf %211, %213 : vector<8x128xf32>
      %215 = vector.extract_strided_slice %214 {offsets = [0, 0], sizes = [8, 32], strides = [1, 1]} : vector<8x128xf32> to vector<8x32xf32>
      %216 = arith.negf %215 : vector<8x32xf32>
      %217 = math.exp %216 : vector<8x32xf32>
      %cst_66 = arith.constant 1.000000e+00 : f32
      %218 = vector.broadcast %cst_66 : f32 to vector<8x32xf32>
      %219 = arith.addf %218, %217 : vector<8x32xf32>
      %220 = arith.divf %218, %219 : vector<8x32xf32>
      %221 = vector.extract_strided_slice %214 {offsets = [0, 32], sizes = [8, 32], strides = [1, 1]} : vector<8x128xf32> to vector<8x32xf32>
      %222 = arith.negf %221 : vector<8x32xf32>
      %223 = math.exp %222 : vector<8x32xf32>
      %cst_67 = arith.constant 1.000000e+00 : f32
      %224 = vector.broadcast %cst_67 : f32 to vector<8x32xf32>
      %225 = arith.addf %224, %223 : vector<8x32xf32>
      %226 = arith.divf %224, %225 : vector<8x32xf32>
      %227 = vector.extract_strided_slice %214 {offsets = [0, 64], sizes = [8, 32], strides = [1, 1]} : vector<8x128xf32> to vector<8x32xf32>
      %228 = math.tanh %227 : vector<8x32xf32>
      %229 = vector.extract_strided_slice %214 {offsets = [0, 96], sizes = [8, 32], strides = [1, 1]} : vector<8x128xf32> to vector<8x32xf32>
      %230 = arith.negf %229 : vector<8x32xf32>
      %231 = math.exp %230 : vector<8x32xf32>
      %cst_68 = arith.constant 1.000000e+00 : f32
      %232 = vector.broadcast %cst_68 : f32 to vector<8x32xf32>
      %233 = arith.addf %232, %231 : vector<8x32xf32>
      %234 = arith.divf %232, %233 : vector<8x32xf32>
      %235 = arith.mulf %226, %201 : vector<8x32xf32>
      %236 = arith.mulf %220, %228 : vector<8x32xf32>
      %237 = arith.addf %235, %236 : vector<8x32xf32>
      %238 = math.tanh %237 : vector<8x32xf32>
      %239 = arith.mulf %234, %238 : vector<8x32xf32>
      %240 = vector.broadcast %209 : i32 to vector<8x1xi32>
      %241 = arith.cmpi sgt, %21, %240 : vector<8x1xi32>
      %242 = vector.shape_cast %241 : vector<8x1xi1> to vector<8x1xi1>
      %243 = vector.broadcast %242 : vector<8x1xi1> to vector<8x32xi1>
      %244 = arith.select %243, %239, %198 : vector<8x32xi1>, vector<8x32xf32>
      %245 = vector.shape_cast %241 : vector<8x1xi1> to vector<8x1xi1>
      %246 = vector.broadcast %245 : vector<8x1xi1> to vector<8x32xi1>
      %247 = arith.select %246, %237, %201 : vector<8x32xi1>, vector<8x32xf32>
      %cst_69 = arith.constant 0.000000e+00 : f32
      %248 = vector.shape_cast %241 : vector<8x1xi1> to vector<8x1xi1>
      %249 = vector.broadcast %248 : vector<8x1xi1> to vector<8x32xi1>
      %250 = vector.broadcast %cst_69 : f32 to vector<8x32xf32>
      %251 = arith.select %249, %239, %250 : vector<8x32xi1>, vector<8x32xf32>
      %c0_70 = arith.constant 0 : index
      %c4_71 = arith.constant 4 : index
      %c0_72 = arith.constant 0 : index
      %252 = vector.load %arg8[%c0_70, %c4_71, %c0_72] : memref<8x8x32xf32, #tpu.memory_space<vmem>>, vector<8x1x32xf32>
      %253 = vector.shape_cast %252 : vector<8x1x32xf32> to vector<8x32xf32>
      %254 = vector.shape_cast %251 : vector<8x32xf32> to vector<8x1x32xf32>
      tpu.vector_store %arg8[%c0_70, %c4_71, %c0_72], %254 {strides = array<i32>} : memref<8x8x32xf32, #tpu.memory_space<vmem>>, vector<8x1x32xf32>,
      %c5_i32 = arith.constant 5 : i32
      %255 = arith.addi %0, %c5_i32 : i32
      %c0_73 = arith.constant 0 : index
      %c5 = arith.constant 5 : index
      %c0_74 = arith.constant 0 : index
      %256 = vector.load %arg11[%c0_73, %c5, %c0_74] : memref<8x8x128xf32, #tpu.memory_space<vmem>>, vector<8x1x128xf32>
      %257 = vector.shape_cast %256 : vector<8x1x128xf32> to vector<8x128xf32>
      %258 = arith.truncf %244 : vector<8x32xf32> to vector<8x32xbf16>
      %cst_75 = arith.constant dense<0.000000e+00> : vector<8x128xf32>
      %259 = tpu.matmul %258, %22, %cst_75 {dimension_numbers = #tpu.dot_dimension_numbers<[1], [0], [0], [1], [0, 0, 1, 1], [], []>} : vector<8x32xbf16>, vector<32x128xbf16>, vector<8x128xf32> -> vector<8x128xf32>
      %260 = arith.addf %257, %259 : vector<8x128xf32>
      %261 = vector.extract_strided_slice %260 {offsets = [0, 0], sizes = [8, 32], strides = [1, 1]} : vector<8x128xf32> to vector<8x32xf32>
      %262 = arith.negf %261 : vector<8x32xf32>
      %263 = math.exp %262 : vector<8x32xf32>
      %cst_76 = arith.constant 1.000000e+00 : f32
      %264 = vector.broadcast %cst_76 : f32 to vector<8x32xf32>
      %265 = arith.addf %264, %263 : vector<8x32xf32>
      %266 = arith.divf %264, %265 : vector<8x32xf32>
      %267 = vector.extract_strided_slice %260 {offsets = [0, 32], sizes = [8, 32], strides = [1, 1]} : vector<8x128xf32> to vector<8x32xf32>
      %268 = arith.negf %267 : vector<8x32xf32>
      %269 = math.exp %268 : vector<8x32xf32>
      %cst_77 = arith.constant 1.000000e+00 : f32
      %270 = vector.broadcast %cst_77 : f32 to vector<8x32xf32>
      %271 = arith.addf %270, %269 : vector<8x32xf32>
      %272 = arith.divf %270, %271 : vector<8x32xf32>
      %273 = vector.extract_strided_slice %260 {offsets = [0, 64], sizes = [8, 32], strides = [1, 1]} : vector<8x128xf32> to vector<8x32xf32>
      %274 = math.tanh %273 : vector<8x32xf32>
      %275 = vector.extract_strided_slice %260 {offsets = [0, 96], sizes = [8, 32], strides = [1, 1]} : vector<8x128xf32> to vector<8x32xf32>
      %276 = arith.negf %275 : vector<8x32xf32>
      %277 = math.exp %276 : vector<8x32xf32>
      %cst_78 = arith.constant 1.000000e+00 : f32
      %278 = vector.broadcast %cst_78 : f32 to vector<8x32xf32>
      %279 = arith.addf %278, %277 : vector<8x32xf32>
      %280 = arith.divf %278, %279 : vector<8x32xf32>
      %281 = arith.mulf %272, %247 : vector<8x32xf32>
      %282 = arith.mulf %266, %274 : vector<8x32xf32>
      %283 = arith.addf %281, %282 : vector<8x32xf32>
      %284 = math.tanh %283 : vector<8x32xf32>
      %285 = arith.mulf %280, %284 : vector<8x32xf32>
      %286 = vector.broadcast %255 : i32 to vector<8x1xi32>
      %287 = arith.cmpi sgt, %21, %286 : vector<8x1xi32>
      %288 = vector.shape_cast %287 : vector<8x1xi1> to vector<8x1xi1>
      %289 = vector.broadcast %288 : vector<8x1xi1> to vector<8x32xi1>
      %290 = arith.select %289, %285, %244 : vector<8x32xi1>, vector<8x32xf32>
      %291 = vector.shape_cast %287 : vector<8x1xi1> to vector<8x1xi1>
      %292 = vector.broadcast %291 : vector<8x1xi1> to vector<8x32xi1>
      %293 = arith.select %292, %283, %247 : vector<8x32xi1>, vector<8x32xf32>
      %cst_79 = arith.constant 0.000000e+00 : f32
      %294 = vector.shape_cast %287 : vector<8x1xi1> to vector<8x1xi1>
      %295 = vector.broadcast %294 : vector<8x1xi1> to vector<8x32xi1>
      %296 = vector.broadcast %cst_79 : f32 to vector<8x32xf32>
      %297 = arith.select %295, %285, %296 : vector<8x32xi1>, vector<8x32xf32>
      %c0_80 = arith.constant 0 : index
      %c5_81 = arith.constant 5 : index
      %c0_82 = arith.constant 0 : index
      %298 = vector.load %arg8[%c0_80, %c5_81, %c0_82] : memref<8x8x32xf32, #tpu.memory_space<vmem>>, vector<8x1x32xf32>
      %299 = vector.shape_cast %298 : vector<8x1x32xf32> to vector<8x32xf32>
      %300 = vector.shape_cast %297 : vector<8x32xf32> to vector<8x1x32xf32>
      tpu.vector_store %arg8[%c0_80, %c5_81, %c0_82], %300 {strides = array<i32>} : memref<8x8x32xf32, #tpu.memory_space<vmem>>, vector<8x1x32xf32>,
      %c6_i32 = arith.constant 6 : i32
      %301 = arith.addi %0, %c6_i32 : i32
      %c0_83 = arith.constant 0 : index
      %c6 = arith.constant 6 : index
      %c0_84 = arith.constant 0 : index
      %302 = vector.load %arg11[%c0_83, %c6, %c0_84] : memref<8x8x128xf32, #tpu.memory_space<vmem>>, vector<8x1x128xf32>
      %303 = vector.shape_cast %302 : vector<8x1x128xf32> to vector<8x128xf32>
      %304 = arith.truncf %290 : vector<8x32xf32> to vector<8x32xbf16>
      %cst_85 = arith.constant dense<0.000000e+00> : vector<8x128xf32>
      %305 = tpu.matmul %304, %22, %cst_85 {dimension_numbers = #tpu.dot_dimension_numbers<[1], [0], [0], [1], [0, 0, 1, 1], [], []>} : vector<8x32xbf16>, vector<32x128xbf16>, vector<8x128xf32> -> vector<8x128xf32>
      %306 = arith.addf %303, %305 : vector<8x128xf32>
      %307 = vector.extract_strided_slice %306 {offsets = [0, 0], sizes = [8, 32], strides = [1, 1]} : vector<8x128xf32> to vector<8x32xf32>
      %308 = arith.negf %307 : vector<8x32xf32>
      %309 = math.exp %308 : vector<8x32xf32>
      %cst_86 = arith.constant 1.000000e+00 : f32
      %310 = vector.broadcast %cst_86 : f32 to vector<8x32xf32>
      %311 = arith.addf %310, %309 : vector<8x32xf32>
      %312 = arith.divf %310, %311 : vector<8x32xf32>
      %313 = vector.extract_strided_slice %306 {offsets = [0, 32], sizes = [8, 32], strides = [1, 1]} : vector<8x128xf32> to vector<8x32xf32>
      %314 = arith.negf %313 : vector<8x32xf32>
      %315 = math.exp %314 : vector<8x32xf32>
      %cst_87 = arith.constant 1.000000e+00 : f32
      %316 = vector.broadcast %cst_87 : f32 to vector<8x32xf32>
      %317 = arith.addf %316, %315 : vector<8x32xf32>
      %318 = arith.divf %316, %317 : vector<8x32xf32>
      %319 = vector.extract_strided_slice %306 {offsets = [0, 64], sizes = [8, 32], strides = [1, 1]} : vector<8x128xf32> to vector<8x32xf32>
      %320 = math.tanh %319 : vector<8x32xf32>
      %321 = vector.extract_strided_slice %306 {offsets = [0, 96], sizes = [8, 32], strides = [1, 1]} : vector<8x128xf32> to vector<8x32xf32>
      %322 = arith.negf %321 : vector<8x32xf32>
      %323 = math.exp %322 : vector<8x32xf32>
      %cst_88 = arith.constant 1.000000e+00 : f32
      %324 = vector.broadcast %cst_88 : f32 to vector<8x32xf32>
      %325 = arith.addf %324, %323 : vector<8x32xf32>
      %326 = arith.divf %324, %325 : vector<8x32xf32>
      %327 = arith.mulf %318, %293 : vector<8x32xf32>
      %328 = arith.mulf %312, %320 : vector<8x32xf32>
      %329 = arith.addf %327, %328 : vector<8x32xf32>
      %330 = math.tanh %329 : vector<8x32xf32>
      %331 = arith.mulf %326, %330 : vector<8x32xf32>
      %332 = vector.broadcast %301 : i32 to vector<8x1xi32>
      %333 = arith.cmpi sgt, %21, %332 : vector<8x1xi32>
      %334 = vector.shape_cast %333 : vector<8x1xi1> to vector<8x1xi1>
      %335 = vector.broadcast %334 : vector<8x1xi1> to vector<8x32xi1>
      %336 = arith.select %335, %331, %290 : vector<8x32xi1>, vector<8x32xf32>
      %337 = vector.shape_cast %333 : vector<8x1xi1> to vector<8x1xi1>
      %338 = vector.broadcast %337 : vector<8x1xi1> to vector<8x32xi1>
      %339 = arith.select %338, %329, %293 : vector<8x32xi1>, vector<8x32xf32>
      %cst_89 = arith.constant 0.000000e+00 : f32
      %340 = vector.shape_cast %333 : vector<8x1xi1> to vector<8x1xi1>
      %341 = vector.broadcast %340 : vector<8x1xi1> to vector<8x32xi1>
      %342 = vector.broadcast %cst_89 : f32 to vector<8x32xf32>
      %343 = arith.select %341, %331, %342 : vector<8x32xi1>, vector<8x32xf32>
      %c0_90 = arith.constant 0 : index
      %c6_91 = arith.constant 6 : index
      %c0_92 = arith.constant 0 : index
      %344 = vector.load %arg8[%c0_90, %c6_91, %c0_92] : memref<8x8x32xf32, #tpu.memory_space<vmem>>, vector<8x1x32xf32>
      %345 = vector.shape_cast %344 : vector<8x1x32xf32> to vector<8x32xf32>
      %346 = vector.shape_cast %343 : vector<8x32xf32> to vector<8x1x32xf32>
      tpu.vector_store %arg8[%c0_90, %c6_91, %c0_92], %346 {strides = array<i32>} : memref<8x8x32xf32, #tpu.memory_space<vmem>>, vector<8x1x32xf32>,
      %c7_i32 = arith.constant 7 : i32
      %347 = arith.addi %0, %c7_i32 : i32
      %c0_93 = arith.constant 0 : index
      %c7 = arith.constant 7 : index
      %c0_94 = arith.constant 0 : index
      %348 = vector.load %arg11[%c0_93, %c7, %c0_94] : memref<8x8x128xf32, #tpu.memory_space<vmem>>, vector<8x1x128xf32>
      %349 = vector.shape_cast %348 : vector<8x1x128xf32> to vector<8x128xf32>
      %350 = arith.truncf %336 : vector<8x32xf32> to vector<8x32xbf16>
      %cst_95 = arith.constant dense<0.000000e+00> : vector<8x128xf32>
      %351 = tpu.matmul %350, %22, %cst_95 {dimension_numbers = #tpu.dot_dimension_numbers<[1], [0], [0], [1], [0, 0, 1, 1], [], []>} : vector<8x32xbf16>, vector<32x128xbf16>, vector<8x128xf32> -> vector<8x128xf32>
      %352 = arith.addf %349, %351 : vector<8x128xf32>
      %353 = vector.extract_strided_slice %352 {offsets = [0, 0], sizes = [8, 32], strides = [1, 1]} : vector<8x128xf32> to vector<8x32xf32>
      %354 = arith.negf %353 : vector<8x32xf32>
      %355 = math.exp %354 : vector<8x32xf32>
      %cst_96 = arith.constant 1.000000e+00 : f32
      %356 = vector.broadcast %cst_96 : f32 to vector<8x32xf32>
      %357 = arith.addf %356, %355 : vector<8x32xf32>
      %358 = arith.divf %356, %357 : vector<8x32xf32>
      %359 = vector.extract_strided_slice %352 {offsets = [0, 32], sizes = [8, 32], strides = [1, 1]} : vector<8x128xf32> to vector<8x32xf32>
      %360 = arith.negf %359 : vector<8x32xf32>
      %361 = math.exp %360 : vector<8x32xf32>
      %cst_97 = arith.constant 1.000000e+00 : f32
      %362 = vector.broadcast %cst_97 : f32 to vector<8x32xf32>
      %363 = arith.addf %362, %361 : vector<8x32xf32>
      %364 = arith.divf %362, %363 : vector<8x32xf32>
      %365 = vector.extract_strided_slice %352 {offsets = [0, 64], sizes = [8, 32], strides = [1, 1]} : vector<8x128xf32> to vector<8x32xf32>
      %366 = math.tanh %365 : vector<8x32xf32>
      %367 = vector.extract_strided_slice %352 {offsets = [0, 96], sizes = [8, 32], strides = [1, 1]} : vector<8x128xf32> to vector<8x32xf32>
      %368 = arith.negf %367 : vector<8x32xf32>
      %369 = math.exp %368 : vector<8x32xf32>
      %cst_98 = arith.constant 1.000000e+00 : f32
      %370 = vector.broadcast %cst_98 : f32 to vector<8x32xf32>
      %371 = arith.addf %370, %369 : vector<8x32xf32>
      %372 = arith.divf %370, %371 : vector<8x32xf32>
      %373 = arith.mulf %364, %339 : vector<8x32xf32>
      %374 = arith.mulf %358, %366 : vector<8x32xf32>
      %375 = arith.addf %373, %374 : vector<8x32xf32>
      %376 = math.tanh %375 : vector<8x32xf32>
      %377 = arith.mulf %372, %376 : vector<8x32xf32>
      %378 = vector.broadcast %347 : i32 to vector<8x1xi32>
      %379 = arith.cmpi sgt, %21, %378 : vector<8x1xi32>
      %380 = vector.shape_cast %379 : vector<8x1xi1> to vector<8x1xi1>
      %381 = vector.broadcast %380 : vector<8x1xi1> to vector<8x32xi1>
      %382 = arith.select %381, %377, %336 : vector<8x32xi1>, vector<8x32xf32>
      %383 = vector.shape_cast %379 : vector<8x1xi1> to vector<8x1xi1>
      %384 = vector.broadcast %383 : vector<8x1xi1> to vector<8x32xi1>
      %385 = arith.select %384, %375, %339 : vector<8x32xi1>, vector<8x32xf32>
      %cst_99 = arith.constant 0.000000e+00 : f32
      %386 = vector.shape_cast %379 : vector<8x1xi1> to vector<8x1xi1>
      %387 = vector.broadcast %386 : vector<8x1xi1> to vector<8x32xi1>
      %388 = vector.broadcast %cst_99 : f32 to vector<8x32xf32>
      %389 = arith.select %387, %377, %388 : vector<8x32xi1>, vector<8x32xf32>
      %c0_100 = arith.constant 0 : index
      %c7_101 = arith.constant 7 : index
      %c0_102 = arith.constant 0 : index
      %390 = vector.load %arg8[%c0_100, %c7_101, %c0_102] : memref<8x8x32xf32, #tpu.memory_space<vmem>>, vector<8x1x32xf32>
      %391 = vector.shape_cast %390 : vector<8x1x32xf32> to vector<8x32xf32>
      %392 = vector.shape_cast %389 : vector<8x32xf32> to vector<8x1x32xf32>
      tpu.vector_store %arg8[%c0_100, %c7_101, %c0_102], %392 {strides = array<i32>} : memref<8x8x32xf32, #tpu.memory_space<vmem>>, vector<8x1x32xf32>,
      %c0_103 = arith.constant 0 : index
      %c0_104 = arith.constant 0 : index
      %393 = vector.load %arg9[%c0_103, %c0_104] : memref<8x32xf32, #tpu.memory_space<vmem>>, vector<8x32xf32>
      tpu.vector_store %arg9[%c0_103, %c0_104], %382 {strides = array<i32>} : memref<8x32xf32, #tpu.memory_space<vmem>>, vector<8x32xf32>,
      %c0_105 = arith.constant 0 : index
      %c0_106 = arith.constant 0 : index
      %394 = vector.load %arg10[%c0_105, %c0_106] : memref<8x32xf32, #tpu.memory_space<vmem>>, vector<8x32xf32>
      tpu.vector_store %arg10[%c0_105, %c0_106], %385 {strides = array<i32>} : memref<8x32xf32, #tpu.memory_space<vmem>>, vector<8x32xf32>,
    } else {
    }
    return
  }
  func.func @transform_0(%arg0: i32, %arg1: i32, %arg2: memref<1xi32, #tpu.memory_space<smem>>) -> (i32, i32, i32) {
    %c0_i32 = arith.constant 0 : i32
    %c0_i32_0 = arith.constant 0 : i32
    return %arg0, %arg1, %c0_i32 : i32, i32, i32
  }
  func.func @transform_1(%arg0: i32, %arg1: i32, %arg2: memref<1xi32, #tpu.memory_space<smem>>) -> (i32, i32) {
    %c0_i32 = arith.constant 0 : i32
    %c0_i32_0 = arith.constant 0 : i32
    return %arg0, %c0_i32 : i32, i32
  }
  func.func @transform_2(%arg0: i32, %arg1: i32, %arg2: memref<1xi32, #tpu.memory_space<smem>>) -> (i32, i32) {
    %c0_i32 = arith.constant 0 : i32
    %c0_i32_0 = arith.constant 0 : i32
    %c0_i32_1 = arith.constant 0 : i32
    return %c0_i32, %c0_i32_0 : i32, i32
  }
  func.func @transform_3(%arg0: i32, %arg1: i32, %arg2: memref<1xi32, #tpu.memory_space<smem>>) -> (i32, i32) {
    %c0_i32 = arith.constant 0 : i32
    %c0_i32_0 = arith.constant 0 : i32
    %c0_i32_1 = arith.constant 0 : i32
    return %c0_i32, %c0_i32_0 : i32, i32
  }
  func.func @transform_4(%arg0: i32, %arg1: i32, %arg2: memref<1xi32, #tpu.memory_space<smem>>) -> (i32, i32) {
    %c0_i32 = arith.constant 0 : i32
    %c0_i32_0 = arith.constant 0 : i32
    %c0_i32_1 = arith.constant 0 : i32
    return %c0_i32, %c0_i32_0 : i32, i32
  }
  func.func @transform_5(%arg0: i32, %arg1: i32, %arg2: memref<1xi32, #tpu.memory_space<smem>>) -> (i32, i32, i32) {
    %c0_i32 = arith.constant 0 : i32
    %c0_i32_0 = arith.constant 0 : i32
    return %arg0, %arg1, %c0_i32 : i32, i32, i32
  }
  func.func @transform_6(%arg0: i32, %arg1: i32, %arg2: memref<1xi32, #tpu.memory_space<smem>>) -> (i32, i32) {
    %c0_i32 = arith.constant 0 : i32
    %c0_i32_0 = arith.constant 0 : i32
    return %arg0, %c0_i32 : i32, i32
  }
  func.func @transform_7(%arg0: i32, %arg1: i32, %arg2: memref<1xi32, #tpu.memory_space<smem>>) -> (i32, i32) {
    %c0_i32 = arith.constant 0 : i32
    %c0_i32_0 = arith.constant 0 : i32
    return %arg0, %c0_i32 : i32, i32
  }
}

</mosaic_0001>

<llo_original>
// kernel: tpu_custom_call.1
$region0: #{tpu_custom_call.1}
  #allocation0 [shape = 'u32[]', space=smem, size = 0x4, offset = 0x4, fixed_abs, tag = 'smem constant byte address 0x4 - core index']
  #allocation1 [shape = 'u32[144,128]{1,0:T(1,128)}', space=vmem, size = 0x12000, scoped, tag = 'internal scratch']
  #allocation2 [shape = 'f32[8,8,128]{2,1,0:T(8,128)}', space=vmem, size = 0x8000, scoped, tag = 'scratch operand']
  #allocation3 [shape = 's32[1]{0}', space=sflag, size = 0x4, scoped, tag = 'scoped memory for tpu_custom_call.1']
  #allocation4 [shape = 's32[1]{0:T(128)S(6)}', space=smem, size = 0x200, scoped, tag = 'prefetched SMEM operand 0']
  %s0 = inlined_call_operand.<no memory space> [shape: s32[1], index: 0, kind: input, shape index: {}]
  %s1 = inlined_call_operand.hbm [shape: f32[8,8,16], index: 1, kind: input, shape index: {}]
  %s2 = inlined_call_operand.vmem [shape: s32[8,1], index: 2, kind: input, shape index: {}]
  %s3 = inlined_call_operand.vmem [shape: bf16[16,128], index: 3, kind: input, shape index: {}]
  %s4 = inlined_call_operand.vmem [shape: bf16[32,128], index: 4, kind: input, shape index: {}]
  %s5 = inlined_call_operand.vmem [shape: f32[1,128], index: 5, kind: input, shape index: {}]
  %s6 = inlined_call_operand.hbm [shape: f32[8,8,32], index: 6, kind: output, shape index: {0}]
  %s7 = inlined_call_operand.hbm [shape: f32[8,32], index: 7, kind: output, shape index: {1}]
  %s8 = inlined_call_operand.hbm [shape: f32[8,32], index: 8, kind: output, shape index: {2}]
  %9 = xla_tuple %s6, %s7, %s8
  %s10 = sld [smem:[#allocation0]]
  $region62: #{tpu_custom_call.1} parent=0
    _
  %s12 = ssub.s32 1, %s10
  %s13 = scalar_select 0, %s12, %s10
  %14 = sst [smem:[#allocation4]] %s0
  $region1: #{tpu_custom_call.1} parent=0
    #allocation5 [shape = 'u8[32768]{0}', space=vmem, size = 0x8000, scoped, tag = 'input window, operand 1, single buffered']
    #allocation6 [shape = 's32[1]{0}', space=sflag, size = 0x4, scoped, tag = 'scoped memory for tpu_custom_call.1']
    #allocation7 [shape = 's32[1]{0}', space=sflag, size = 0x4, scoped, tag = 'scoped memory for tpu_custom_call.1']
    #allocation8 [shape = 'u8[32768]{0}', space=vmem, size = 0x8000, scoped, tag = 'output window, operand 0, single buffered']
    #allocation9 [shape = 'u8[4096]{0}', space=vmem, size = 0x1000, scoped, tag = 'output window, operand 1, single buffered']
    #allocation10 [shape = 's32[1]{0}', space=sflag, size = 0x4, scoped, tag = 'scoped memory for tpu_custom_call.1']
    #allocation11 [shape = 'u8[4096]{0}', space=vmem, size = 0x1000, scoped, tag = 'output window, operand 2, single buffered']
    %15 = vsyncpa [#allocation6], 0
    %16 = vsyncpa [#allocation7], 0
    %17 = vsyncpa [#allocation10], 0
    // Predicated region
    $region2: #{tpu_custom_call.1} parent=1 // pred_check
      _
    $region3: #{tpu_custom_call.1} parent=1 // pred_check_branch
      %19 = sbr.rel (0) target = $region5
    $region4: #{tpu_custom_call.1} parent=1 // pred_region
      %s21 = ssub.s32 1024, 1024
      %22 = vsyncadd [#allocation6], %s21
      %s23 = sshll.u32 [#allocation5], 4
      %s24 = int_to_ptr.vmem [resolvable:$true] %s23
      %29 = dma.hbm_to_vmem [thread:$0]  %s1, 1024, %s24, [#allocation6], 128, 128, 8
    $region5: #{tpu_custom_call.1} parent=1 // pred_fallthru
      _
    // Predicated region
    $region6: #{tpu_custom_call.1} parent=1 // pred_check
      _
    $region7: #{tpu_custom_call.1} parent=1 // pred_check_branch
      %31 = sbr.rel (0) target = $region9
    $region8: #{tpu_custom_call.1} parent=1 // pred_region
      _
    $region9: #{tpu_custom_call.1} parent=1 // pred_fallthru
      _
    // Predicated region
    $region10: #{tpu_custom_call.1} parent=1 // pred_check
      _
    $region11: #{tpu_custom_call.1} parent=1 // pred_check_branch
      %33 = sbr.rel (0) target = $region13
    $region12: #{tpu_custom_call.1} parent=1 // pred_region
      _
    $region13: #{tpu_custom_call.1} parent=1 // pred_fallthru
      _
    // Predicated region
    $region14: #{tpu_custom_call.1} parent=1 // pred_check
      _
    $region15: #{tpu_custom_call.1} parent=1 // pred_check_branch
      %35 = sbr.rel (0) target = $region17
    $region16: #{tpu_custom_call.1} parent=1 // pred_region
      _
    $region17: #{tpu_custom_call.1} parent=1 // pred_fallthru
      _
    // Predicated region
    $region18: #{tpu_custom_call.1} parent=1 // pred_check
      _
    $region19: #{tpu_custom_call.1} parent=1 // pred_check_branch
      %37 = sbr.rel (0) target = $region21
    $region20: #{tpu_custom_call.1} parent=1 // pred_region
      _
    $region21: #{tpu_custom_call.1} parent=1 // pred_fallthru
      _
    // Predicated region
    $region22: #{tpu_custom_call.1} parent=1 // pred_check
      _
    $region23: #{tpu_custom_call.1} parent=1 // pred_check_branch
      %39 = sbr.rel (0) target = $region25
    $region24: #{tpu_custom_call.1} parent=1 // pred_region
      %40 = dma.done [#allocation6], 1024
    $region25: #{tpu_custom_call.1} parent=1 // pred_fallthru
      _
    %s42 = smul.u32 0, 8
    %p43 = scmp.eq.s32.totalorder 0, 0
    // Predicated region
    $region26: #{tpu_custom_call.1} parent=1 // pred_check
      %p44 = pneg %p43
    $region27: #{tpu_custom_call.1} parent=1 // pred_check_branch
      %46 = sbr.rel (%p44) target = $region29
    $region28: #{tpu_custom_call.1} parent=1 // pred_region
      %vm47 = vcmask 261120
      %48 = vst.msk [vmem:[#allocation9] sm:$0xff] %vm47, 0.0
      %49 = vst.msk [vmem:[#allocation11] sm:$0xff] %vm47, 0.0
    $region29: #{tpu_custom_call.1} parent=1 // pred_fallthru
      _
    %s50 = sld [smem:[#allocation4]]
    %p51 = scmp.lt.s32.totalorder %s42, %s50
    %p52 = scmp.ge.s32.totalorder %s42, %s50
    // Predicated region
    $region30: #{tpu_custom_call.1} parent=1 // pred_check
      %p53 = pneg %p52
    $region31: #{tpu_custom_call.1} parent=1 // pred_check_branch
      %55 = sbr.rel (%p53) target = $region33
    $region32: #{tpu_custom_call.1} parent=1 // pred_region
      %vm56 = vcmask 261120
      %57 = vst.msk [vmem:[#allocation8] sm:$0xff] %vm56, 0.0
      %58 = vst.msk [vmem:[#allocation8 + $0x8] sm:$0xff] %vm56, 0.0
      %59 = vst.msk [vmem:[#allocation8 + $0x10] sm:$0xff] %vm56, 0.0
      %60 = vst.msk [vmem:[#allocation8 + $0x18] sm:$0xff] %vm56, 0.0
      %61 = vst.msk [vmem:[#allocation8 + $0x20] sm:$0xff] %vm56, 0.0
      %62 = vst.msk [vmem:[#allocation8 + $0x28] sm:$0xff] %vm56, 0.0
      %63 = vst.msk [vmem:[#allocation8 + $0x30] sm:$0xff] %vm56, 0.0
      %64 = vst.msk [vmem:[#allocation8 + $0x38] sm:$0xff] %vm56, 0.0
    $region33: #{tpu_custom_call.1} parent=1 // pred_fallthru
      _
    // Predicated region
    $region34: #{tpu_custom_call.1} parent=1 // pred_check
      %p65 = pneg %p51
    $region35: #{tpu_custom_call.1} parent=1 // pred_check_branch
      %67 = sbr.rel (%p65) target = $region37
    $region36: #{tpu_custom_call.1} parent=1 // pred_region
      %v68 = vld [vmem:[#allocation5] sm:$0xff]
      %v69 = vld [vmem:[#allocation5 + $0x8] sm:$0xff]
      %v70 = vld [vmem:[#allocation5 + $0x10] sm:$0xff]
      %v71 = vld [vmem:[#allocation5 + $0x18] sm:$0xff]
      %v72 = vld [vmem:[#allocation5 + $0x20] sm:$0xff]
      %v73 = vld [vmem:[#allocation5 + $0x28] sm:$0xff]
      %v74 = vld [vmem:[#allocation5 + $0x30] sm:$0xff]
      %v75 = vld [vmem:[#allocation5 + $0x38] sm:$0xff]
      %v76 = vpack.c.bf16 %v68, %v68
      %v77 = vpack.c.bf16 %v69, %v69
      %v78 = vpack.c.bf16 %v70, %v70
      %v79 = vpack.c.bf16 %v71, %v71
      %v80 = vpack.c.bf16 %v72, %v72
      %v81 = vpack.c.bf16 %v73, %v73
      %v82 = vpack.c.bf16 %v74, %v74
      %v83 = vpack.c.bf16 %v75, %v75
      %v84 = vld [vmem:[%s3] sm:$0xf]
      %v85 = vld [vmem:[%s3 + $0x4] sm:$0xf]
      %v86 = vld [vmem:[%s5] sm:$0x1]
      %v88 = vlaneseq
      %v89 = vshrl.u32 %v88, 7
      %v90 = vsub.s32 0, %v89
      %v91 = vrot.slane %v86, %v90
      %v101 = vunpack.c.l.b16 %v76
      %v102 = vunpack.c.l.b16 %v77
      %v103 = vunpack.c.l.b16 %v78
      %v104 = vunpack.c.l.b16 %v79
      %v105 = vunpack.c.l.b16 %v80
      %v106 = vunpack.c.l.b16 %v81
      %v107 = vunpack.c.l.b16 %v82
      %v108 = vunpack.c.l.b16 %v83
      %v109 = vpack.c.b16 %v102, %v101
      %v110 = vpack.c.b16 %v104, %v103
      %v111 = vpack.c.b16 %v106, %v105
      %v112 = vpack.c.b16 %v108, %v107
      %v115 = vunpack.c.l.b16 %v84
      %v116 = vunpack.c.l.b16 %v85
      %v117 = vpack.c.b16 %v116, %v115
      %vm119 = vcmask 130048
      %v121 = vsel %vm119, %v109, 0
      %v124 = vsel %vm119, %v110, 0
      %v127 = vsel %vm119, %v111, 0
      %v130 = vsel %vm119, %v112, 0
      %132 = vmatprep.subr.bf16.mxu0 0
      %133 = vmatpush1.bf16.msra.mxu0 %v117
      %134 = vmatprep.subr.bf16.mxu0 0
      %135 = vmatpush1.bf16.msra.mxu0 0
      %136 = vmatprep.subr.bf16.mxu0 0
      %137 = vmatpush1.bf16.msra.mxu0 0
      %138 = vmatprep.subr.bf16.mxu0 0
      %139 = vmatpush1.bf16.msra.mxu0 0
      %140 = vmatprep.subr.bf16.mxu0 0
      %141 = vmatpush1.bf16.msra.mxu0 0
      %142 = vmatprep.subr.bf16.mxu0 0
      %143 = vmatpush1.bf16.msra.mxu0 0
      %144 = vmatprep.subr.bf16.mxu0 0
      %145 = vmatpush1.bf16.msra.mxu0 0
      %146 = vmatprep.subr.bf16.mxu0 0
      %147 = vmatpush1.bf16.msra.mxu0 0
      %148 = vmatprep.subr.bf16.mxu0 0
      %149 = vmatpush1.bf16.msra.mxu0 0
      %150 = vmatprep.subr.bf16.mxu0 0
      %151 = vmatpush1.bf16.msra.mxu0 0
      %152 = vmatprep.subr.bf16.mxu0 0
      %153 = vmatpush1.bf16.msra.mxu0 0
      %154 = vmatprep.subr.bf16.mxu0 0
      %155 = vmatpush1.bf16.msra.mxu0 0
      %156 = vmatprep.subr.bf16.mxu0 0
      %157 = vmatpush1.bf16.msra.mxu0 0
      %158 = vmatprep.subr.bf16.mxu0 0
      %159 = vmatpush1.bf16.msra.mxu0 0
      %160 = vmatprep.subr.bf16.mxu0 0
      %161 = vmatpush1.bf16.msra.mxu0 0
      %162 = vmatprep.subr.bf16.mxu0 0
      %163 = vmatpush1.bf16.msra.mxu0 0
      %164 = vmatprep.mubr.bf16.mxu0 0
      %165 = vmatmul.mubr.bf16.gmra.mrb[0].mxu0 %v121
      %v166 = vpop.f32.mrb[0].mxu0
      %v167 = vadd.f32 %v91, %v166
      %v168 = vpop.f32.mrb[0].mxu0
      %v169 = vpop.f32.mrb[0].mxu0
      %v170 = vadd.f32 %v91, %v169
      %v171 = vpop.f32.mrb[0].mxu0
      %172 = vmatprep.mubr.bf16.mxu0 0
      %173 = vmatmul.mubr.bf16.gmra.mrb[0].mxu0 %v124
      %v174 = vpop.f32.mrb[0].mxu0
      %v175 = vadd.f32 %v91, %v174
      %v176 = vpop.f32.mrb[0].mxu0
      %v177 = vpop.f32.mrb[0].mxu0
      %v178 = vadd.f32 %v91, %v177
      %v179 = vpop.f32.mrb[0].mxu0
      %180 = vmatprep.mubr.bf16.mxu0 0
      %181 = vmatmul.mubr.bf16.gmra.mrb[0].mxu0 %v127
      %v182 = vpop.f32.mrb[0].mxu0
      %v183 = vadd.f32 %v91, %v182
      %v184 = vpop.f32.mrb[0].mxu0
      %v185 = vpop.f32.mrb[0].mxu0
      %v186 = vadd.f32 %v91, %v185
      %v187 = vpop.f32.mrb[0].mxu0
      %188 = vmatprep.mubr.bf16.mxu0 0
      %189 = vmatmul.mubr.bf16.gmra.mrb[0].mxu0 %v130
      %v190 = vpop.f32.mrb[0].mxu0
      %v191 = vadd.f32 %v91, %v190
      %v192 = vpop.f32.mrb[0].mxu0
      %v193 = vpop.f32.mrb[0].mxu0
      %v194 = vadd.f32 %v91, %v193
      %v195 = vpop.f32.mrb[0].mxu0
      %196 = vdwg.mxu0
      %197 = vst [vmem:[#allocation2] sm:$0xff] %v167
      %198 = vst [vmem:[#allocation2 + $0x8] sm:$0xff] %v170
      %199 = vst [vmem:[#allocation2 + $0x10] sm:$0xff] %v175
      %200 = vst [vmem:[#allocation2 + $0x18] sm:$0xff] %v178
      %201 = vst [vmem:[#allocation2 + $0x20] sm:$0xff] %v183
      %202 = vst [vmem:[#allocation2 + $0x28] sm:$0xff] %v186
      %203 = vst [vmem:[#allocation2 + $0x30] sm:$0xff] %v191
      %204 = vst [vmem:[#allocation2 + $0x38] sm:$0xff] %v194
      %v205 = vld [vmem:[%s2] sm:$0xff]
      %v206 = vld [vmem:[%s4] sm:$0xf]
      %v207 = vld [vmem:[%s4 + $0x4] sm:$0xf]
      %v208 = vld [vmem:[%s4 + $0x8] sm:$0xf]
      %v209 = vld [vmem:[%s4 + $0xc] sm:$0xf]
      %v210 = vld [vmem:[#allocation9] sm:$0xff]
      %v211 = vld [vmem:[#allocation11] sm:$0xff]
      %v212 = vld [vmem:[#allocation2] sm:$0x1]
      %v213 = vld [vmem:[#allocation2 + $0x8] sm:$0x1]
      %v214 = vld [vmem:[#allocation2 + $0x10] sm:$0x1]
      %v215 = vld [vmem:[#allocation2 + $0x18] sm:$0x1]
      %v216 = vld [vmem:[#allocation2 + $0x20] sm:$0x1]
      %v217 = vld [vmem:[#allocation2 + $0x28] sm:$0x1]
      %v218 = vld [vmem:[#allocation2 + $0x30] sm:$0x1]
      %v219 = vld [vmem:[#allocation2 + $0x38] sm:$0x1]
      %v220 = vpack.c.bf16 %v210, %v210
      %v225 = vunpack.c.l.b16 %v206
      %v226 = vunpack.c.l.b16 %v207
      %v227 = vunpack.c.l.b16 %v208
      %v228 = vunpack.c.l.b16 %v209
      %v229 = vpack.c.b16 %v226, %v225
      %v230 = vpack.c.b16 %v228, %v227
      %vm233 = vcmask 261120
      %v235 = vsel %vm233, %v220, 0
      %237 = vmatprep.subr.bf16.mxu0 0
      %238 = vmatpush1.bf16.msra.mxu0 %v229
      %239 = vmatprep.subr.bf16.mxu0 0
      %240 = vmatpush1.bf16.msra.mxu0 %v230
      %241 = vmatprep.subr.bf16.mxu0 0
      %242 = vmatpush1.bf16.msra.mxu0 0
      %243 = vmatprep.subr.bf16.mxu0 0
      %244 = vmatpush1.bf16.msra.mxu0 0
      %245 = vmatprep.subr.bf16.mxu0 0
      %246 = vmatpush1.bf16.msra.mxu0 0
      %247 = vmatprep.subr.bf16.mxu0 0
      %248 = vmatpush1.bf16.msra.mxu0 0
      %249 = vmatprep.subr.bf16.mxu0 0
      %250 = vmatpush1.bf16.msra.mxu0 0
      %251 = vmatprep.subr.bf16.mxu0 0
      %252 = vmatpush1.bf16.msra.mxu0 0
      %253 = vmatprep.subr.bf16.mxu0 0
      %254 = vmatpush1.bf16.msra.mxu0 0
      %255 = vmatprep.subr.bf16.mxu0 0
      %256 = vmatpush1.bf16.msra.mxu0 0
      %257 = vmatprep.subr.bf16.mxu0 0
      %258 = vmatpush1.bf16.msra.mxu0 0
      %259 = vmatprep.subr.bf16.mxu0 0
      %260 = vmatpush1.bf16.msra.mxu0 0
      %261 = vmatprep.subr.bf16.mxu0 0
      %262 = vmatpush1.bf16.msra.mxu0 0
      %263 = vmatprep.subr.bf16.mxu0 0
      %264 = vmatpush1.bf16.msra.mxu0 0
      %265 = vmatprep.subr.bf16.mxu0 0
      %266 = vmatpush1.bf16.msra.mxu0 0
      %267 = vmatprep.subr.bf16.mxu0 0
      %268 = vmatpush1.bf16.msra.mxu0 0
      %269 = vmatprep.mubr.bf16.mxu0 0
      %270 = vmatmul.mubr.bf16.gmra.mrb[0].mxu0 %v235
      %v271 = vpop.f32.mrb[0].mxu0
      %v272 = vadd.f32 0.0, %v271
      %v273 = vpop.f32.mrb[0].mxu0
      %v274 = vpop.f32.mrb[0].mxu0
      %v275 = vpop.f32.mrb[0].mxu0
      %276 = vdwg.mxu0
      %v278 = vrot.slane %v272, 1
      %v279 = vrot.slane %v272, 2
      %v280 = vrot.slane %v272, 3
      %v281 = vrot.slane %v272, 4
      %v282 = vrot.slane %v272, 5
      %v283 = vrot.slane %v272, 6
      %v284 = vrot.slane %v272, 7
      %v293 = vadd.f32 %v212, %v272
      %v294 = vadd.f32 %v213, %v278
      %v295 = vadd.f32 %v214, %v279
      %v296 = vadd.f32 %v215, %v280
      %v297 = vadd.f32 %v216, %v281
      %v298 = vadd.f32 %v217, %v282
      %v299 = vadd.f32 %v218, %v283
      %v300 = vadd.f32 %v219, %v284
      %v301 = vxor.u32 %v293, 2147483648
      %v302 = vxor.u32 %v294, 2147483648
      %v303 = vxor.u32 %v295, 2147483648
      %v304 = vxor.u32 %v296, 2147483648
      %v305 = vxor.u32 %v297, 2147483648
      %v306 = vxor.u32 %v298, 2147483648
      %v307 = vxor.u32 %v299, 2147483648
      %v308 = vxor.u32 %v300, 2147483648
      %v309 = vmul.f32 %v301, 1.442695
      %v310 = vpow.pop %v309
      %v311 = vmul.f32 %v302, 1.442695
      %v312 = vpow.pop %v311
      %v313 = vmul.f32 %v303, 1.442695
      %v314 = vpow.pop %v313
      %v315 = vmul.f32 %v304, 1.442695
      %v316 = vpow.pop %v315
      %v317 = vmul.f32 %v305, 1.442695
      %v318 = vpow.pop %v317
      %v319 = vmul.f32 %v306, 1.442695
      %v320 = vpow.pop %v319
      %v321 = vmul.f32 %v307, 1.442695
      %v322 = vpow.pop %v321
      %v323 = vmul.f32 %v308, 1.442695
      %v324 = vpow.pop %v323
      %v325 = vadd.f32 %v310, 1.0
      %v326 = vadd.f32 %v312, 1.0
      %v327 = vadd.f32 %v314, 1.0
      %v328 = vadd.f32 %v316, 1.0
      %v329 = vadd.f32 %v318, 1.0
      %v330 = vadd.f32 %v320, 1.0
      %v331 = vadd.f32 %v322, 1.0
      %v332 = vadd.f32 %v324, 1.0
      %v333 = vrcp.pop %v325
      %v334 = vmul.f32 1.0, %v333
      %v335 = vrcp.pop %v326
      %v336 = vmul.f32 1.0, %v335
      %v337 = vrcp.pop %v327
      %v338 = vmul.f32 1.0, %v337
      %v339 = vrcp.pop %v328
      %v340 = vmul.f32 1.0, %v339
      %v341 = vrcp.pop %v329
      %v342 = vmul.f32 1.0, %v341
      %v343 = vrcp.pop %v330
      %v344 = vmul.f32 1.0, %v343
      %v345 = vrcp.pop %v331
      %v346 = vmul.f32 1.0, %v345
      %v347 = vrcp.pop %v332
      %v348 = vmul.f32 1.0, %v347
      %v349 = vtanh.pop %v293
      %v350 = vtanh.pop %v294
      %v351 = vtanh.pop %v295
      %v352 = vtanh.pop %v296
      %v353 = vtanh.pop %v297
      %v354 = vtanh.pop %v298
      %v355 = vtanh.pop %v299
      %v356 = vtanh.pop %v300
      %v358 = vrot.slane %v211, 1
      %v359 = vrot.slane %v211, 2
      %v360 = vrot.slane %v211, 3
      %v361 = vrot.slane %v211, 4
      %v362 = vrot.slane %v211, 5
      %v363 = vrot.slane %v211, 6
      %v364 = vrot.slane %v211, 7
      %365 = vrot.lane.b32.xlu0 %v211, 32
      %v366 = vpop.permute.xlu0 %365
      %367 = vrot.lane.b32.xlu0 %v358, 32
      %v368 = vpop.permute.xlu0 %367
      %369 = vrot.lane.b32.xlu0 %v359, 32
      %v370 = vpop.permute.xlu0 %369
      %371 = vrot.lane.b32.xlu0 %v360, 32
      %v372 = vpop.permute.xlu0 %371
      %373 = vrot.lane.b32.xlu0 %v361, 32
      %v374 = vpop.permute.xlu0 %373
      %375 = vrot.lane.b32.xlu0 %v362, 32
      %v376 = vpop.permute.xlu0 %375
      %377 = vrot.lane.b32.xlu0 %v363, 32
      %v378 = vpop.permute.xlu0 %377
      %379 = vrot.lane.b32.xlu0 %v364, 32
      %v380 = vpop.permute.xlu0 %379
      %v389 = vmul.f32 %v334, %v366
      %v390 = vmul.f32 %v336, %v368
      %v391 = vmul.f32 %v338, %v370
      %v392 = vmul.f32 %v340, %v372
      %v393 = vmul.f32 %v342, %v374
      %v394 = vmul.f32 %v344, %v376
      %v395 = vmul.f32 %v346, %v378
      %v396 = vmul.f32 %v348, %v380
      %405 = vrot.lane.b32.xlu0 %v349, 64
      %v406 = vpop.permute.xlu0 %405
      %407 = vrot.lane.b32.xlu0 %v350, 64
      %v408 = vpop.permute.xlu0 %407
      %409 = vrot.lane.b32.xlu0 %v351, 64
      %v410 = vpop.permute.xlu0 %409
      %411 = vrot.lane.b32.xlu0 %v352, 64
      %v412 = vpop.permute.xlu0 %411
      %413 = vrot.lane.b32.xlu0 %v353, 64
      %v414 = vpop.permute.xlu0 %413
      %415 = vrot.lane.b32.xlu0 %v354, 64
      %v416 = vpop.permute.xlu0 %415
      %417 = vrot.lane.b32.xlu0 %v355, 64
      %v418 = vpop.permute.xlu0 %417
      %419 = vrot.lane.b32.xlu0 %v356, 64
      %v420 = vpop.permute.xlu0 %419
      %v429 = vmul.f32 %v334, %v406
      %v430 = vmul.f32 %v336, %v408
      %v431 = vmul.f32 %v338, %v410
      %v432 = vmul.f32 %v340, %v412
      %v433 = vmul.f32 %v342, %v414
      %v434 = vmul.f32 %v344, %v416
      %v435 = vmul.f32 %v346, %v418
      %v436 = vmul.f32 %v348, %v420
      %445 = vrot.lane.b32.xlu0 %v429, 32
      %v446 = vpop.permute.xlu0 %445
      %447 = vrot.lane.b32.xlu0 %v430, 32
      %v448 = vpop.permute.xlu0 %447
      %449 = vrot.lane.b32.xlu0 %v431, 32
      %v450 = vpop.permute.xlu0 %449
      %451 = vrot.lane.b32.xlu0 %v432, 32
      %v452 = vpop.permute.xlu0 %451
      %453 = vrot.lane.b32.xlu0 %v433, 32
      %v454 = vpop.permute.xlu0 %453
      %455 = vrot.lane.b32.xlu0 %v434, 32
      %v456 = vpop.permute.xlu0 %455
      %457 = vrot.lane.b32.xlu0 %v435, 32
      %v458 = vpop.permute.xlu0 %457
      %459 = vrot.lane.b32.xlu0 %v436, 32
      %v460 = vpop.permute.xlu0 %459
      %v469 = vadd.f32 %v389, %v446
      %v470 = vadd.f32 %v390, %v448
      %v471 = vadd.f32 %v391, %v450
      %v472 = vadd.f32 %v392, %v452
      %v473 = vadd.f32 %v393, %v454
      %v474 = vadd.f32 %v394, %v456
      %v475 = vadd.f32 %v395, %v458
      %v476 = vadd.f32 %v396, %v460
      %v477 = vtanh.pop %v469
      %v478 = vtanh.pop %v470
      %v479 = vtanh.pop %v471
      %v480 = vtanh.pop %v472
      %v481 = vtanh.pop %v473
      %v482 = vtanh.pop %v474
      %v483 = vtanh.pop %v475
      %v484 = vtanh.pop %v476
      %493 = vrot.lane.b32.xlu0 %v477, 64
      %v494 = vpop.permute.xlu0 %493
      %495 = vrot.lane.b32.xlu0 %v478, 64
      %v496 = vpop.permute.xlu0 %495
      %497 = vrot.lane.b32.xlu0 %v479, 64
      %v498 = vpop.permute.xlu0 %497
      %499 = vrot.lane.b32.xlu0 %v480, 64
      %v500 = vpop.permute.xlu0 %499
      %501 = vrot.lane.b32.xlu0 %v481, 64
      %v502 = vpop.permute.xlu0 %501
      %503 = vrot.lane.b32.xlu0 %v482, 64
      %v504 = vpop.permute.xlu0 %503
      %505 = vrot.lane.b32.xlu0 %v483, 64
      %v506 = vpop.permute.xlu0 %505
      %507 = vrot.lane.b32.xlu0 %v484, 64
      %v508 = vpop.permute.xlu0 %507
      %v517 = vmul.f32 %v334, %v494
      %v518 = vmul.f32 %v336, %v496
      %v519 = vmul.f32 %v338, %v498
      %v520 = vmul.f32 %v340, %v500
      %v521 = vmul.f32 %v342, %v502
      %v522 = vmul.f32 %v344, %v504
      %v523 = vmul.f32 %v346, %v506
      %v524 = vmul.f32 %v348, %v508
      %v525 = vstv %s42
      %vm526 = vcmp.gt.s32.totalorder %v205, %v525
      %v527 = vsel %vm526, 1, 0
      %528 = vset.pattern.permute.xlu0 0
      %529 = vperm.xlu0 %528, %v527
      %v530 = vpop.permute.xlu0 %529
      %vm531 = vcmp.eq.s32.totalorder %v530, 1
      %v540 = vrot.slane %v518, 7
      %vm541 = vcmask 1041409
      %v542 = vsel %vm541, %v540, %v517
      %v543 = vrot.slane %v519, 6
      %vm544 = vcmask 1042434
      %v545 = vsel %vm544, %v543, %v542
      %v546 = vrot.slane %v520, 5
      %vm547 = vcmask 1043459
      %v548 = vsel %vm547, %v546, %v545
      %v549 = vrot.slane %v521, 4
      %vm550 = vcmask 1044484
      %v551 = vsel %vm550, %v549, %v548
      %v552 = vrot.slane %v522, 3
      %vm553 = vcmask 1045509
      %v554 = vsel %vm553, %v552, %v551
      %v555 = vrot.slane %v523, 2
      %vm556 = vcmask 1046534
      %v557 = vsel %vm556, %v555, %v554
      %v558 = vrot.slane %v524, 1
      %vm559 = vcmask 1047559
      %v560 = vsel %vm559, %v558, %v557
      %561 = vrot.lane.b32.xlu0 %v560, 32
      %v562 = vpop.permute.xlu0 %561
      %v564 = vsel %vm531, %v562, %v210
      %v573 = vrot.slane %v470, 7
      %v574 = vsel %vm541, %v573, %v469
      %v575 = vrot.slane %v471, 6
      %v576 = vsel %vm544, %v575, %v574
      %v577 = vrot.slane %v472, 5
      %v578 = vsel %vm547, %v577, %v576
      %v579 = vrot.slane %v473, 4
      %v580 = vsel %vm550, %v579, %v578
      %v581 = vrot.slane %v474, 3
      %v582 = vsel %vm553, %v581, %v580
      %v583 = vrot.slane %v475, 2
      %v584 = vsel %vm556, %v583, %v582
      %v585 = vrot.slane %v476, 1
      %v586 = vsel %vm559, %v585, %v584
      %587 = vrot.lane.b32.xlu0 %v586, 96
      %v588 = vpop.permute.xlu0 %587
      %v590 = vsel %vm531, %v588, %v211
      %v591 = vsel %vm531, %v562, 0.0
      %v593 = vcombine.high %v591, %v591
      %v595 = vunpack.c.l.s4 1966171168
      %v596 = vunpack.c.0.s8 %v595
      %v597 = vlaneseq
      %v598 = vshrl.u32 %v597, 7
      %v599 = vsub.s32 %v596, %v598
      %v600 = vrot.slane %v591, %v599
      %v602 = vunpack.c.l.s4 1966171168
      %v603 = vunpack.c.0.s8 %v602
      %v604 = vlaneseq
      %v605 = vshrl.u32 %v604, 7
      %v606 = vsub.s32 %v603, %v605
      %v607 = vrot.slane %v593, %v606
      %v608 = vcombine.high %v600, %v600
      %v609 = vcombine.high %v607, %v607
      %v611 = vunpack.c.l.s4 1966171168
      %v612 = vunpack.c.0.s8 %v611
      %v613 = vlaneseq
      %v614 = vshrl.u32 %v613, 7
      %v615 = vsub.s32 %v612, %v614
      %v616 = vrot.slane %v600, %v615
      %v618 = vunpack.c.l.s4 1966171168
      %v619 = vunpack.c.0.s8 %v618
      %v620 = vlaneseq
      %v621 = vshrl.u32 %v620, 7
      %v622 = vsub.s32 %v619, %v621
      %v623 = vrot.slane %v607, %v622
      %v625 = vunpack.c.l.s4 1966171168
      %v626 = vunpack.c.0.s8 %v625
      %v627 = vlaneseq
      %v628 = vshrl.u32 %v627, 7
      %v629 = vsub.s32 %v626, %v628
      %v630 = vrot.slane %v608, %v629
      %v632 = vunpack.c.l.s4 1966171168
      %v633 = vunpack.c.0.s8 %v632
      %v634 = vlaneseq
      %v635 = vshrl.u32 %v634, 7
      %v636 = vsub.s32 %v633, %v635
      %v637 = vrot.slane %v609, %v636
      %v638 = vcombine.high %v616, %v616
      %v639 = vcombine.high %v623, %v623
      %v640 = vcombine.high %v630, %v630
      %v641 = vcombine.high %v637, %v637
      %vm650 = vcmask 253952
      %651 = vst.msk [vmem:[#allocation8] sm:$0x1] %vm650, %v616
      %652 = vst.msk [vmem:[#allocation8 + $0x8] sm:$0x1] %vm650, %v630
      %653 = vst.msk [vmem:[#allocation8 + $0x10] sm:$0x1] %vm650, %v638
      %654 = vst.msk [vmem:[#allocation8 + $0x18] sm:$0x1] %vm650, %v640
      %655 = vst.msk [vmem:[#allocation8 + $0x20] sm:$0x1] %vm650, %v623
      %656 = vst.msk [vmem:[#allocation8 + $0x28] sm:$0x1] %vm650, %v637
      %657 = vst.msk [vmem:[#allocation8 + $0x30] sm:$0x1] %vm650, %v639
      %658 = vst.msk [vmem:[#allocation8 + $0x38] sm:$0x1] %vm650, %v641
      %s659 = sadd.s32 %s42, 1
      %v660 = vld [vmem:[#allocation2 + $0x1] sm:$0x1]
      %v661 = vld [vmem:[#allocation2 + $0x9] sm:$0x1]
      %v662 = vld [vmem:[#allocation2 + $0x11] sm:$0x1]
      %v663 = vld [vmem:[#allocation2 + $0x19] sm:$0x1]
      %v664 = vld [vmem:[#allocation2 + $0x21] sm:$0x1]
      %v665 = vld [vmem:[#allocation2 + $0x29] sm:$0x1]
      %v666 = vld [vmem:[#allocation2 + $0x31] sm:$0x1]
      %v667 = vld [vmem:[#allocation2 + $0x39] sm:$0x1]
      %v668 = vpack.c.bf16 %v564, %v564
      %v670 = vsel %vm233, %v668, 0
      %672 = vmatprep.subr.bf16.mxu0 0
      %673 = vmatpush1.bf16.msra.mxu0 %v229
      %674 = vmatprep.subr.bf16.mxu0 0
      %675 = vmatpush1.bf16.msra.mxu0 %v230
      %676 = vmatprep.subr.bf16.mxu0 0
      %677 = vmatpush1.bf16.msra.mxu0 0
      %678 = vmatprep.subr.bf16.mxu0 0
      %679 = vmatpush1.bf16.msra.mxu0 0
      %680 = vmatprep.subr.bf16.mxu0 0
      %681 = vmatpush1.bf16.msra.mxu0 0
      %682 = vmatprep.subr.bf16.mxu0 0
      %683 = vmatpush1.bf16.msra.mxu0 0
      %684 = vmatprep.subr.bf16.mxu0 0
      %685 = vmatpush1.bf16.msra.mxu0 0
      %686 = vmatprep.subr.bf16.mxu0 0
      %687 = vmatpush1.bf16.msra.mxu0 0
      %688 = vmatprep.subr.bf16.mxu0 0
      %689 = vmatpush1.bf16.msra.mxu0 0
      %690 = vmatprep.subr.bf16.mxu0 0
      %691 = vmatpush1.bf16.msra.mxu0 0
      %692 = vmatprep.subr.bf16.mxu0 0
      %693 = vmatpush1.bf16.msra.mxu0 0
      %694 = vmatprep.subr.bf16.mxu0 0
      %695 = vmatpush1.bf16.msra.mxu0 0
      %696 = vmatprep.subr.bf16.mxu0 0
      %697 = vmatpush1.bf16.msra.mxu0 0
      %698 = vmatprep.subr.bf16.mxu0 0
      %699 = vmatpush1.bf16.msra.mxu0 0
      %700 = vmatprep.subr.bf16.mxu0 0
      %701 = vmatpush1.bf16.msra.mxu0 0
      %702 = vmatprep.subr.bf16.mxu0 0
      %703 = vmatpush1.bf16.msra.mxu0 0
      %704 = vmatprep.mubr.bf16.mxu0 0
      %705 = vmatmul.mubr.bf16.gmra.mrb[0].mxu0 %v670
      %v706 = vpop.f32.mrb[0].mxu0
      %v707 = vadd.f32 0.0, %v706
      %v708 = vpop.f32.mrb[0].mxu0
      %v709 = vpop.f32.mrb[0].mxu0
      %v710 = vpop.f32.mrb[0].mxu0
      %711 = vdwg.mxu0
      %v713 = vrot.slane %v707, 1
      %v714 = vrot.slane %v707, 2
      %v715 = vrot.slane %v707, 3
      %v716 = vrot.slane %v707, 4
      %v717 = vrot.slane %v707, 5
      %v718 = vrot.slane %v707, 6
      %v719 = vrot.slane %v707, 7
      %v728 = vadd.f32 %v660, %v707
      %v729 = vadd.f32 %v661, %v713
      %v730 = vadd.f32 %v662, %v714
      %v731 = vadd.f32 %v663, %v715
      %v732 = vadd.f32 %v664, %v716
      %v733 = vadd.f32 %v665, %v717
      %v734 = vadd.f32 %v666, %v718
      %v735 = vadd.f32 %v667, %v719
      %v736 = vxor.u32 %v728, 2147483648
      %v737 = vxor.u32 %v729, 2147483648
      %v738 = vxor.u32 %v730, 2147483648
      %v739 = vxor.u32 %v731, 2147483648
      %v740 = vxor.u32 %v732, 2147483648
      %v741 = vxor.u32 %v733, 2147483648
      %v742 = vxor.u32 %v734, 2147483648
      %v743 = vxor.u32 %v735, 2147483648
      %v744 = vmul.f32 %v736, 1.442695
      %v745 = vpow.pop %v744
      %v746 = vmul.f32 %v737, 1.442695
      %v747 = vpow.pop %v746
      %v748 = vmul.f32 %v738, 1.442695
      %v749 = vpow.pop %v748
      %v750 = vmul.f32 %v739, 1.442695
      %v751 = vpow.pop %v750
      %v752 = vmul.f32 %v740, 1.442695
      %v753 = vpow.pop %v752
      %v754 = vmul.f32 %v741, 1.442695
      %v755 = vpow.pop %v754
      %v756 = vmul.f32 %v742, 1.442695
      %v757 = vpow.pop %v756
      %v758 = vmul.f32 %v743, 1.442695
      %v759 = vpow.pop %v758
      %v760 = vadd.f32 %v745, 1.0
      %v761 = vadd.f32 %v747, 1.0
      %v762 = vadd.f32 %v749, 1.0
      %v763 = vadd.f32 %v751, 1.0
      %v764 = vadd.f32 %v753, 1.0
      %v765 = vadd.f32 %v755, 1.0
      %v766 = vadd.f32 %v757, 1.0
      %v767 = vadd.f32 %v759, 1.0
      %v768 = vrcp.pop %v760
      %v769 = vmul.f32 1.0, %v768
      %v770 = vrcp.pop %v761
      %v771 = vmul.f32 1.0, %v770
      %v772 = vrcp.pop %v762
      %v773 = vmul.f32 1.0, %v772
      %v774 = vrcp.pop %v763
      %v775 = vmul.f32 1.0, %v774
      %v776 = vrcp.pop %v764
      %v777 = vmul.f32 1.0, %v776
      %v778 = vrcp.pop %v765
      %v779 = vmul.f32 1.0, %v778
      %v780 = vrcp.pop %v766
      %v781 = vmul.f32 1.0, %v780
      %v782 = vrcp.pop %v767
      %v783 = vmul.f32 1.0, %v782
      %v784 = vtanh.pop %v728
      %v785 = vtanh.pop %v729
      %v786 = vtanh.pop %v730
      %v787 = vtanh.pop %v731
      %v788 = vtanh.pop %v732
      %v789 = vtanh.pop %v733
      %v790 = vtanh.pop %v734
      %v791 = vtanh.pop %v735
      %v793 = vrot.slane %v590, 1
      %v794 = vrot.slane %v590, 2
      %v795 = vrot.slane %v590, 3
      %v796 = vrot.slane %v590, 4
      %v797 = vrot.slane %v590, 5
      %v798 = vrot.slane %v590, 6
      %v799 = vrot.slane %v590, 7
      %800 = vrot.lane.b32.xlu0 %v590, 32
      %v801 = vpop.permute.xlu0 %800
      %802 = vrot.lane.b32.xlu0 %v793, 32
      %v803 = vpop.permute.xlu0 %802
      %804 = vrot.lane.b32.xlu0 %v794, 32
      %v805 = vpop.permute.xlu0 %804
      %806 = vrot.lane.b32.xlu0 %v795, 32
      %v807 = vpop.permute.xlu0 %806
      %808 = vrot.lane.b32.xlu0 %v796, 32
      %v809 = vpop.permute.xlu0 %808
      %810 = vrot.lane.b32.xlu0 %v797, 32
      %v811 = vpop.permute.xlu0 %810
      %812 = vrot.lane.b32.xlu0 %v798, 32
      %v813 = vpop.permute.xlu0 %812
      %814 = vrot.lane.b32.xlu0 %v799, 32
      %v815 = vpop.permute.xlu0 %814
      %v824 = vmul.f32 %v769, %v801
      %v825 = vmul.f32 %v771, %v803
      %v826 = vmul.f32 %v773, %v805
      %v827 = vmul.f32 %v775, %v807
      %v828 = vmul.f32 %v777, %v809
      %v829 = vmul.f32 %v779, %v811
      %v830 = vmul.f32 %v781, %v813
      %v831 = vmul.f32 %v783, %v815
      %840 = vrot.lane.b32.xlu0 %v784, 64
      %v841 = vpop.permute.xlu0 %840
      %842 = vrot.lane.b32.xlu0 %v785, 64
      %v843 = vpop.permute.xlu0 %842
      %844 = vrot.lane.b32.xlu0 %v786, 64
      %v845 = vpop.permute.xlu0 %844
      %846 = vrot.lane.b32.xlu0 %v787, 64
      %v847 = vpop.permute.xlu0 %846
      %848 = vrot.lane.b32.xlu0 %v788, 64
      %v849 = vpop.permute.xlu0 %848
      %850 = vrot.lane.b32.xlu0 %v789, 64
      %v851 = vpop.permute.xlu0 %850
      %852 = vrot.lane.b32.xlu0 %v790, 64
      %v853 = vpop.permute.xlu0 %852
      %854 = vrot.lane.b32.xlu0 %v791, 64
      %v855 = vpop.permute.xlu0 %854
      %v864 = vmul.f32 %v769, %v841
      %v865 = vmul.f32 %v771, %v843
      %v866 = vmul.f32 %v773, %v845
      %v867 = vmul.f32 %v775, %v847
      %v868 = vmul.f32 %v777, %v849
      %v869 = vmul.f32 %v779, %v851
      %v870 = vmul.f32 %v781, %v853
      %v871 = vmul.f32 %v783, %v855
      %880 = vrot.lane.b32.xlu0 %v864, 32
      %v881 = vpop.permute.xlu0 %880
      %882 = vrot.lane.b32.xlu0 %v865, 32
      %v883 = vpop.permute.xlu0 %882
      %884 = vrot.lane.b32.xlu0 %v866, 32
      %v885 = vpop.permute.xlu0 %884
      %886 = vrot.lane.b32.xlu0 %v867, 32
      %v887 = vpop.permute.xlu0 %886
      %888 = vrot.lane.b32.xlu0 %v868, 32
      %v889 = vpop.permute.xlu0 %888
      %890 = vrot.lane.b32.xlu0 %v869, 32
      %v891 = vpop.permute.xlu0 %890
      %892 = vrot.lane.b32.xlu0 %v870, 32
      %v893 = vpop.permute.xlu0 %892
      %894 = vrot.lane.b32.xlu0 %v871, 32
      %v895 = vpop.permute.xlu0 %894
      %v904 = vadd.f32 %v824, %v881
      %v905 = vadd.f32 %v825, %v883
      %v906 = vadd.f32 %v826, %v885
      %v907 = vadd.f32 %v827, %v887
      %v908 = vadd.f32 %v828, %v889
      %v909 = vadd.f32 %v829, %v891
      %v910 = vadd.f32 %v830, %v893
      %v911 = vadd.f32 %v831, %v895
      %v912 = vtanh.pop %v904
      %v913 = vtanh.pop %v905
      %v914 = vtanh.pop %v906
      %v915 = vtanh.pop %v907
      %v916 = vtanh.pop %v908
      %v917 = vtanh.pop %v909
      %v918 = vtanh.pop %v910
      %v919 = vtanh.pop %v911
      %928 = vrot.lane.b32.xlu0 %v912, 64
      %v929 = vpop.permute.xlu0 %928
      %930 = vrot.lane.b32.xlu0 %v913, 64
      %v931 = vpop.permute.xlu0 %930
      %932 = vrot.lane.b32.xlu0 %v914, 64
      %v933 = vpop.permute.xlu0 %932
      %934 = vrot.lane.b32.xlu0 %v915, 64
      %v935 = vpop.permute.xlu0 %934
      %936 = vrot.lane.b32.xlu0 %v916, 64
      %v937 = vpop.permute.xlu0 %936
      %938 = vrot.lane.b32.xlu0 %v917, 64
      %v939 = vpop.permute.xlu0 %938
      %940 = vrot.lane.b32.xlu0 %v918, 64
      %v941 = vpop.permute.xlu0 %940
      %942 = vrot.lane.b32.xlu0 %v919, 64
      %v943 = vpop.permute.xlu0 %942
      %v952 = vmul.f32 %v769, %v929
      %v953 = vmul.f32 %v771, %v931
      %v954 = vmul.f32 %v773, %v933
      %v955 = vmul.f32 %v775, %v935
      %v956 = vmul.f32 %v777, %v937
      %v957 = vmul.f32 %v779, %v939
      %v958 = vmul.f32 %v781, %v941
      %v959 = vmul.f32 %v783, %v943
      %v960 = vstv %s659
      %vm961 = vcmp.gt.s32.totalorder %v205, %v960
      %v962 = vsel %vm961, 1, 0
      %963 = vset.pattern.permute.xlu0 0
      %964 = vperm.xlu0 %963, %v962
      %v965 = vpop.permute.xlu0 %964
      %vm966 = vcmp.eq.s32.totalorder %v965, 1
      %v975 = vrot.slane %v953, 7
      %v976 = vsel %vm541, %v975, %v952
      %v977 = vrot.slane %v954, 6
      %v978 = vsel %vm544, %v977, %v976
      %v979 = vrot.slane %v955, 5
      %v980 = vsel %vm547, %v979, %v978
      %v981 = vrot.slane %v956, 4
      %v982 = vsel %vm550, %v981, %v980
      %v983 = vrot.slane %v957, 3
      %v984 = vsel %vm553, %v983, %v982
      %v985 = vrot.slane %v958, 2
      %v986 = vsel %vm556, %v985, %v984
      %v987 = vrot.slane %v959, 1
      %v988 = vsel %vm559, %v987, %v986
      %989 = vrot.lane.b32.xlu0 %v988, 32
      %v990 = vpop.permute.xlu0 %989
      %v992 = vsel %vm966, %v990, %v564
      %v1001 = vrot.slane %v905, 7
      %v1002 = vsel %vm541, %v1001, %v904
      %v1003 = vrot.slane %v906, 6
      %v1004 = vsel %vm544, %v1003, %v1002
      %v1005 = vrot.slane %v907, 5
      %v1006 = vsel %vm547, %v1005, %v1004
      %v1007 = vrot.slane %v908, 4
      %v1008 = vsel %vm550, %v1007, %v1006
      %v1009 = vrot.slane %v909, 3
      %v1010 = vsel %vm553, %v1009, %v1008
      %v1011 = vrot.slane %v910, 2
      %v1012 = vsel %vm556, %v1011, %v1010
      %v1013 = vrot.slane %v911, 1
      %v1014 = vsel %vm559, %v1013, %v1012
      %1015 = vrot.lane.b32.xlu0 %v1014, 96
      %v1016 = vpop.permute.xlu0 %1015
      %v1018 = vsel %vm966, %v1016, %v590
      %v1019 = vsel %vm966, %v990, 0.0
      %v1021 = vcombine.high %v1019, %v1019
      %v1023 = vunpack.c.l.s4 1966171168
      %v1024 = vunpack.c.0.s8 %v1023
      %v1025 = vlaneseq
      %v1026 = vshrl.u32 %v1025, 7
      %v1027 = vsub.s32 %v1024, %v1026
      %v1028 = vrot.slane %v1019, %v1027
      %v1030 = vunpack.c.l.s4 1966171168
      %v1031 = vunpack.c.0.s8 %v1030
      %v1032 = vlaneseq
      %v1033 = vshrl.u32 %v1032, 7
      %v1034 = vsub.s32 %v1031, %v1033
      %v1035 = vrot.slane %v1021, %v1034
      %v1036 = vcombine.high %v1028, %v1028
      %v1037 = vcombine.high %v1035, %v1035
      %v1039 = vunpack.c.l.s4 1966171168
      %v1040 = vunpack.c.0.s8 %v1039
      %v1041 = vlaneseq
      %v1042 = vshrl.u32 %v1041, 7
      %v1043 = vsub.s32 %v1040, %v1042
      %v1044 = vrot.slane %v1028, %v1043
      %v1046 = vunpack.c.l.s4 1966171168
      %v1047 = vunpack.c.0.s8 %v1046
      %v1048 = vlaneseq
      %v1049 = vshrl.u32 %v1048, 7
      %v1050 = vsub.s32 %v1047, %v1049
      %v1051 = vrot.slane %v1035, %v1050
      %v1053 = vunpack.c.l.s4 1966171168
      %v1054 = vunpack.c.0.s8 %v1053
      %v1055 = vlaneseq
      %v1056 = vshrl.u32 %v1055, 7
      %v1057 = vsub.s32 %v1054, %v1056
      %v1058 = vrot.slane %v1036, %v1057
      %v1060 = vunpack.c.l.s4 1966171168
      %v1061 = vunpack.c.0.s8 %v1060
      %v1062 = vlaneseq
      %v1063 = vshrl.u32 %v1062, 7
      %v1064 = vsub.s32 %v1061, %v1063
      %v1065 = vrot.slane %v1037, %v1064
      %v1066 = vcombine.high %v1044, %v1044
      %v1067 = vcombine.high %v1051, %v1051
      %v1068 = vcombine.high %v1058, %v1058
      %v1069 = vcombine.high %v1065, %v1065
      %1078 = vst.msk [vmem:[#allocation8 + $0x1] sm:$0x1] %vm650, %v1044
      %1079 = vst.msk [vmem:[#allocation8 + $0x9] sm:$0x1] %vm650, %v1058
      %1080 = vst.msk [vmem:[#allocation8 + $0x11] sm:$0x1] %vm650, %v1066
      %1081 = vst.msk [vmem:[#allocation8 + $0x19] sm:$0x1] %vm650, %v1068
      %1082 = vst.msk [vmem:[#allocation8 + $0x21] sm:$0x1] %vm650, %v1051
      %1083 = vst.msk [vmem:[#allocation8 + $0x29] sm:$0x1] %vm650, %v1065
      %1084 = vst.msk [vmem:[#allocation8 + $0x31] sm:$0x1] %vm650, %v1067
      %1085 = vst.msk [vmem:[#allocation8 + $0x39] sm:$0x1] %vm650, %v1069
      %s1086 = sadd.s32 %s42, 2
      %v1087 = vld [vmem:[#allocation2 + $0x2] sm:$0x1]
      %v1088 = vld [vmem:[#allocation2 + $0xa] sm:$0x1]
      %v1089 = vld [vmem:[#allocation2 + $0x12] sm:$0x1]
      %v1090 = vld [vmem:[#allocation2 + $0x1a] sm:$0x1]
      %v1091 = vld [vmem:[#allocation2 + $0x22] sm:$0x1]
      %v1092 = vld [vmem:[#allocation2 + $0x2a] sm:$0x1]
      %v1093 = vld [vmem:[#allocation2 + $0x32] sm:$0x1]
      %v1094 = vld [vmem:[#allocation2 + $0x3a] sm:$0x1]
      %v1095 = vpack.c.bf16 %v992, %v992
      %v1097 = vsel %vm233, %v1095, 0
      %1099 = vmatprep.subr.bf16.mxu0 0
      %1100 = vmatpush1.bf16.msra.mxu0 %v229
      %1101 = vmatprep.subr.bf16.mxu0 0
      %1102 = vmatpush1.bf16.msra.mxu0 %v230
      %1103 = vmatprep.subr.bf16.mxu0 0
      %1104 = vmatpush1.bf16.msra.mxu0 0
      %1105 = vmatprep.subr.bf16.mxu0 0
      %1106 = vmatpush1.bf16.msra.mxu0 0
      %1107 = vmatprep.subr.bf16.mxu0 0
      %1108 = vmatpush1.bf16.msra.mxu0 0
      %1109 = vmatprep.subr.bf16.mxu0 0
      %1110 = vmatpush1.bf16.msra.mxu0 0
      %1111 = vmatprep.subr.bf16.mxu0 0
      %1112 = vmatpush1.bf16.msra.mxu0 0
      %1113 = vmatprep.subr.bf16.mxu0 0
      %1114 = vmatpush1.bf16.msra.mxu0 0
      %1115 = vmatprep.subr.bf16.mxu0 0
      %1116 = vmatpush1.bf16.msra.mxu0 0
      %1117 = vmatprep.subr.bf16.mxu0 0
      %1118 = vmatpush1.bf16.msra.mxu0 0
      %1119 = vmatprep.subr.bf16.mxu0 0
      %1120 = vmatpush1.bf16.msra.mxu0 0
      %1121 = vmatprep.subr.bf16.mxu0 0
      %1122 = vmatpush1.bf16.msra.mxu0 0
      %1123 = vmatprep.subr.bf16.mxu0 0
      %1124 = vmatpush1.bf16.msra.mxu0 0
      %1125 = vmatprep.subr.bf16.mxu0 0
      %1126 = vmatpush1.bf16.msra.mxu0 0
      %1127 = vmatprep.subr.bf16.mxu0 0
      %1128 = vmatpush1.bf16.msra.mxu0 0
      %1129 = vmatprep.subr.bf16.mxu0 0
      %1130 = vmatpush1.bf16.msra.mxu0 0
      %1131 = vmatprep.mubr.bf16.mxu0 0
      %1132 = vmatmul.mubr.bf16.gmra.mrb[0].mxu0 %v1097
      %v1133 = vpop.f32.mrb[0].mxu0
      %v1134 = vadd.f32 0.0, %v1133
      %v1135 = vpop.f32.mrb[0].mxu0
      %v1136 = vpop.f32.mrb[0].mxu0
      %v1137 = vpop.f32.mrb[0].mxu0
      %1138 = vdwg.mxu0
      %v1140 = vrot.slane %v1134, 1
      %v1141 = vrot.slane %v1134, 2
      %v1142 = vrot.slane %v1134, 3
      %v1143 = vrot.slane %v1134, 4
      %v1144 = vrot.slane %v1134, 5
      %v1145 = vrot.slane %v1134, 6
      %v1146 = vrot.slane %v1134, 7
      %v1155 = vadd.f32 %v1087, %v1134
      %v1156 = vadd.f32 %v1088, %v1140
      %v1157 = vadd.f32 %v1089, %v1141
      %v1158 = vadd.f32 %v1090, %v1142
      %v1159 = vadd.f32 %v1091, %v1143
      %v1160 = vadd.f32 %v1092, %v1144
      %v1161 = vadd.f32 %v1093, %v1145
      %v1162 = vadd.f32 %v1094, %v1146
      %v1163 = vxor.u32 %v1155, 2147483648
      %v1164 = vxor.u32 %v1156, 2147483648
      %v1165 = vxor.u32 %v1157, 2147483648
      %v1166 = vxor.u32 %v1158, 2147483648
      %v1167 = vxor.u32 %v1159, 2147483648
      %v1168 = vxor.u32 %v1160, 2147483648
      %v1169 = vxor.u32 %v1161, 2147483648
      %v1170 = vxor.u32 %v1162, 2147483648
      %v1171 = vmul.f32 %v1163, 1.442695
      %v1172 = vpow.pop %v1171
      %v1173 = vmul.f32 %v1164, 1.442695
      %v1174 = vpow.pop %v1173
      %v1175 = vmul.f32 %v1165, 1.442695
      %v1176 = vpow.pop %v1175
      %v1177 = vmul.f32 %v1166, 1.442695
      %v1178 = vpow.pop %v1177
      %v1179 = vmul.f32 %v1167, 1.442695
      %v1180 = vpow.pop %v1179
      %v1181 = vmul.f32 %v1168, 1.442695
      %v1182 = vpow.pop %v1181
      %v1183 = vmul.f32 %v1169, 1.442695
      %v1184 = vpow.pop %v1183
      %v1185 = vmul.f32 %v1170, 1.442695
      %v1186 = vpow.pop %v1185
      %v1187 = vadd.f32 %v1172, 1.0
      %v1188 = vadd.f32 %v1174, 1.0
      %v1189 = vadd.f32 %v1176, 1.0
      %v1190 = vadd.f32 %v1178, 1.0
      %v1191 = vadd.f32 %v1180, 1.0
      %v1192 = vadd.f32 %v1182, 1.0
      %v1193 = vadd.f32 %v1184, 1.0
      %v1194 = vadd.f32 %v1186, 1.0
      %v1195 = vrcp.pop %v1187
      %v1196 = vmul.f32 1.0, %v1195
      %v1197 = vrcp.pop %v1188
      %v1198 = vmul.f32 1.0, %v1197
      %v1199 = vrcp.pop %v1189
      %v1200 = vmul.f32 1.0, %v1199
      %v1201 = vrcp.pop %v1190
      %v1202 = vmul.f32 1.0, %v1201
      %v1203 = vrcp.pop %v1191
      %v1204 = vmul.f32 1.0, %v1203
      %v1205 = vrcp.pop %v1192
      %v1206 = vmul.f32 1.0, %v1205
      %v1207 = vrcp.pop %v1193
      %v1208 = vmul.f32 1.0, %v1207
      %v1209 = vrcp.pop %v1194
      %v1210 = vmul.f32 1.0, %v1209
      %v1211 = vtanh.pop %v1155
      %v1212 = vtanh.pop %v1156
      %v1213 = vtanh.pop %v1157
      %v1214 = vtanh.pop %v1158
      %v1215 = vtanh.pop %v1159
      %v1216 = vtanh.pop %v1160
      %v1217 = vtanh.pop %v1161
      %v1218 = vtanh.pop %v1162
      %v1220 = vrot.slane %v1018, 1
      %v1221 = vrot.slane %v1018, 2
      %v1222 = vrot.slane %v1018, 3
      %v1223 = vrot.slane %v1018, 4
      %v1224 = vrot.slane %v1018, 5
      %v1225 = vrot.slane %v1018, 6
      %v1226 = vrot.slane %v1018, 7
      %1227 = vrot.lane.b32.xlu0 %v1018, 32
      %v1228 = vpop.permute.xlu0 %1227
      %1229 = vrot.lane.b32.xlu0 %v1220, 32
      %v1230 = vpop.permute.xlu0 %1229
      %1231 = vrot.lane.b32.xlu0 %v1221, 32
      %v1232 = vpop.permute.xlu0 %1231
      %1233 = vrot.lane.b32.xlu0 %v1222, 32
      %v1234 = vpop.permute.xlu0 %1233
      %1235 = vrot.lane.b32.xlu0 %v1223, 32
      %v1236 = vpop.permute.xlu0 %1235
      %1237 = vrot.lane.b32.xlu0 %v1224, 32
      %v1238 = vpop.permute.xlu0 %1237
      %1239 = vrot.lane.b32.xlu0 %v1225, 32
      %v1240 = vpop.permute.xlu0 %1239
      %1241 = vrot.lane.b32.xlu0 %v1226, 32
      %v1242 = vpop.permute.xlu0 %1241
      %v1251 = vmul.f32 %v1196, %v1228
      %v1252 = vmul.f32 %v1198, %v1230
      %v1253 = vmul.f32 %v1200, %v1232
      %v1254 = vmul.f32 %v1202, %v1234
      %v1255 = vmul.f32 %v1204, %v1236
      %v1256 = vmul.f32 %v1206, %v1238
      %v1257 = vmul.f32 %v1208, %v1240
      %v1258 = vmul.f32 %v1210, %v1242
      %1267 = vrot.lane.b32.xlu0 %v1211, 64
      %v1268 = vpop.permute.xlu0 %1267
      %1269 = vrot.lane.b32.xlu0 %v1212, 64
      %v1270 = vpop.permute.xlu0 %1269
      %1271 = vrot.lane.b32.xlu0 %v1213, 64
      %v1272 = vpop.permute.xlu0 %1271
      %1273 = vrot.lane.b32.xlu0 %v1214, 64
      %v1274 = vpop.permute.xlu0 %1273
      %1275 = vrot.lane.b32.xlu0 %v1215, 64
      %v1276 = vpop.permute.xlu0 %1275
      %1277 = vrot.lane.b32.xlu0 %v1216, 64
      %v1278 = vpop.permute.xlu0 %1277
      %1279 = vrot.lane.b32.xlu0 %v1217, 64
      %v1280 = vpop.permute.xlu0 %1279
      %1281 = vrot.lane.b32.xlu0 %v1218, 64
      %v1282 = vpop.permute.xlu0 %1281
      %v1291 = vmul.f32 %v1196, %v1268
      %v1292 = vmul.f32 %v1198, %v1270
      %v1293 = vmul.f32 %v1200, %v1272
      %v1294 = vmul.f32 %v1202, %v1274
      %v1295 = vmul.f32 %v1204, %v1276
      %v1296 = vmul.f32 %v1206, %v1278
      %v1297 = vmul.f32 %v1208, %v1280
      %v1298 = vmul.f32 %v1210, %v1282
      %1307 = vrot.lane.b32.xlu0 %v1291, 32
      %v1308 = vpop.permute.xlu0 %1307
      %1309 = vrot.lane.b32.xlu0 %v1292, 32
      %v1310 = vpop.permute.xlu0 %1309
      %1311 = vrot.lane.b32.xlu0 %v1293, 32
      %v1312 = vpop.permute.xlu0 %1311
      %1313 = vrot.lane.b32.xlu0 %v1294, 32
      %v1314 = vpop.permute.xlu0 %1313
      %1315 = vrot.lane.b32.xlu0 %v1295, 32
      %v1316 = vpop.permute.xlu0 %1315
      %1317 = vrot.lane.b32.xlu0 %v1296, 32
      %v1318 = vpop.permute.xlu0 %1317
      %1319 = vrot.lane.b32.xlu0 %v1297, 32
      %v1320 = vpop.permute.xlu0 %1319
      %1321 = vrot.lane.b32.xlu0 %v1298, 32
      %v1322 = vpop.permute.xlu0 %1321
      %v1331 = vadd.f32 %v1251, %v1308
      %v1332 = vadd.f32 %v1252, %v1310
      %v1333 = vadd.f32 %v1253, %v1312
      %v1334 = vadd.f32 %v1254, %v1314
      %v1335 = vadd.f32 %v1255, %v1316
      %v1336 = vadd.f32 %v1256, %v1318
      %v1337 = vadd.f32 %v1257, %v1320
      %v1338 = vadd.f32 %v1258, %v1322
      %v1339 = vtanh.pop %v1331
      %v1340 = vtanh.pop %v1332
      %v1341 = vtanh.pop %v1333
      %v1342 = vtanh.pop %v1334
      %v1343 = vtanh.pop %v1335
      %v1344 = vtanh.pop %v1336
      %v1345 = vtanh.pop %v1337
      %v1346 = vtanh.pop %v1338
      %1355 = vrot.lane.b32.xlu0 %v1339, 64
      %v1356 = vpop.permute.xlu0 %1355
      %1357 = vrot.lane.b32.xlu0 %v1340, 64
      %v1358 = vpop.permute.xlu0 %1357
      %1359 = vrot.lane.b32.xlu0 %v1341, 64
      %v1360 = vpop.permute.xlu0 %1359
      %1361 = vrot.lane.b32.xlu0 %v1342, 64
      %v1362 = vpop.permute.xlu0 %1361
      %1363 = vrot.lane.b32.xlu0 %v1343, 64
      %v1364 = vpop.permute.xlu0 %1363
      %1365 = vrot.lane.b32.xlu0 %v1344, 64
      %v1366 = vpop.permute.xlu0 %1365
      %1367 = vrot.lane.b32.xlu0 %v1345, 64
      %v1368 = vpop.permute.xlu0 %1367
      %1369 = vrot.lane.b32.xlu0 %v1346, 64
      %v1370 = vpop.permute.xlu0 %1369
      %v1379 = vmul.f32 %v1196, %v1356
      %v1380 = vmul.f32 %v1198, %v1358
      %v1381 = vmul.f32 %v1200, %v1360
      %v1382 = vmul.f32 %v1202, %v1362
      %v1383 = vmul.f32 %v1204, %v1364
      %v1384 = vmul.f32 %v1206, %v1366
      %v1385 = vmul.f32 %v1208, %v1368
      %v1386 = vmul.f32 %v1210, %v1370
      %v1387 = vstv %s1086
      %vm1388 = vcmp.gt.s32.totalorder %v205, %v1387
      %v1389 = vsel %vm1388, 1, 0
      %1390 = vset.pattern.permute.xlu0 0
      %1391 = vperm.xlu0 %1390, %v1389
      %v1392 = vpop.permute.xlu0 %1391
      %vm1393 = vcmp.eq.s32.totalorder %v1392, 1
      %v1402 = vrot.slane %v1380, 7
      %v1403 = vsel %vm541, %v1402, %v1379
      %v1404 = vrot.slane %v1381, 6
      %v1405 = vsel %vm544, %v1404, %v1403
      %v1406 = vrot.slane %v1382, 5
      %v1407 = vsel %vm547, %v1406, %v1405
      %v1408 = vrot.slane %v1383, 4
      %v1409 = vsel %vm550, %v1408, %v1407
      %v1410 = vrot.slane %v1384, 3
      %v1411 = vsel %vm553, %v1410, %v1409
      %v1412 = vrot.slane %v1385, 2
      %v1413 = vsel %vm556, %v1412, %v1411
      %v1414 = vrot.slane %v1386, 1
      %v1415 = vsel %vm559, %v1414, %v1413
      %1416 = vrot.lane.b32.xlu0 %v1415, 32
      %v1417 = vpop.permute.xlu0 %1416
      %v1419 = vsel %vm1393, %v1417, %v992
      %v1428 = vrot.slane %v1332, 7
      %v1429 = vsel %vm541, %v1428, %v1331
      %v1430 = vrot.slane %v1333, 6
      %v1431 = vsel %vm544, %v1430, %v1429
      %v1432 = vrot.slane %v1334, 5
      %v1433 = vsel %vm547, %v1432, %v1431
      %v1434 = vrot.slane %v1335, 4
      %v1435 = vsel %vm550, %v1434, %v1433
      %v1436 = vrot.slane %v1336, 3
      %v1437 = vsel %vm553, %v1436, %v1435
      %v1438 = vrot.slane %v1337, 2
      %v1439 = vsel %vm556, %v1438, %v1437
      %v1440 = vrot.slane %v1338, 1
      %v1441 = vsel %vm559, %v1440, %v1439
      %1442 = vrot.lane.b32.xlu0 %v1441, 96
      %v1443 = vpop.permute.xlu0 %1442
      %v1445 = vsel %vm1393, %v1443, %v1018
      %v1446 = vsel %vm1393, %v1417, 0.0
      %v1448 = vcombine.high %v1446, %v1446
      %v1450 = vunpack.c.l.s4 1966171168
      %v1451 = vunpack.c.0.s8 %v1450
      %v1452 = vlaneseq
      %v1453 = vshrl.u32 %v1452, 7
      %v1454 = vsub.s32 %v1451, %v1453
      %v1455 = vrot.slane %v1446, %v1454
      %v1457 = vunpack.c.l.s4 1966171168
      %v1458 = vunpack.c.0.s8 %v1457
      %v1459 = vlaneseq
      %v1460 = vshrl.u32 %v1459, 7
      %v1461 = vsub.s32 %v1458, %v1460
      %v1462 = vrot.slane %v1448, %v1461
      %v1463 = vcombine.high %v1455, %v1455
      %v1464 = vcombine.high %v1462, %v1462
      %v1466 = vunpack.c.l.s4 1966171168
      %v1467 = vunpack.c.0.s8 %v1466
      %v1468 = vlaneseq
      %v1469 = vshrl.u32 %v1468, 7
      %v1470 = vsub.s32 %v1467, %v1469
      %v1471 = vrot.slane %v1455, %v1470
      %v1473 = vunpack.c.l.s4 1966171168
      %v1474 = vunpack.c.0.s8 %v1473
      %v1475 = vlaneseq
      %v1476 = vshrl.u32 %v1475, 7
      %v1477 = vsub.s32 %v1474, %v1476
      %v1478 = vrot.slane %v1462, %v1477
      %v1480 = vunpack.c.l.s4 1966171168
      %v1481 = vunpack.c.0.s8 %v1480
      %v1482 = vlaneseq
      %v1483 = vshrl.u32 %v1482, 7
      %v1484 = vsub.s32 %v1481, %v1483
      %v1485 = vrot.slane %v1463, %v1484
      %v1487 = vunpack.c.l.s4 1966171168
      %v1488 = vunpack.c.0.s8 %v1487
      %v1489 = vlaneseq
      %v1490 = vshrl.u32 %v1489, 7
      %v1491 = vsub.s32 %v1488, %v1490
      %v1492 = vrot.slane %v1464, %v1491
      %v1493 = vcombine.high %v1471, %v1471
      %v1494 = vcombine.high %v1478, %v1478
      %v1495 = vcombine.high %v1485, %v1485
      %v1496 = vcombine.high %v1492, %v1492
      %1505 = vst.msk [vmem:[#allocation8 + $0x2] sm:$0x1] %vm650, %v1471
      %1506 = vst.msk [vmem:[#allocation8 + $0xa] sm:$0x1] %vm650, %v1485
      %1507 = vst.msk [vmem:[#allocation8 + $0x12] sm:$0x1] %vm650, %v1493
      %1508 = vst.msk [vmem:[#allocation8 + $0x1a] sm:$0x1] %vm650, %v1495
      %1509 = vst.msk [vmem:[#allocation8 + $0x22] sm:$0x1] %vm650, %v1478
      %1510 = vst.msk [vmem:[#allocation8 + $0x2a] sm:$0x1] %vm650, %v1492
      %1511 = vst.msk [vmem:[#allocation8 + $0x32] sm:$0x1] %vm650, %v1494
      %1512 = vst.msk [vmem:[#allocation8 + $0x3a] sm:$0x1] %vm650, %v1496
      %s1513 = sadd.s32 %s42, 3
      %v1514 = vld [vmem:[#allocation2 + $0x3] sm:$0x1]
      %v1515 = vld [vmem:[#allocation2 + $0xb] sm:$0x1]
      %v1516 = vld [vmem:[#allocation2 + $0x13] sm:$0x1]
      %v1517 = vld [vmem:[#allocation2 + $0x1b] sm:$0x1]
      %v1518 = vld [vmem:[#allocation2 + $0x23] sm:$0x1]
      %v1519 = vld [vmem:[#allocation2 + $0x2b] sm:$0x1]
      %v1520 = vld [vmem:[#allocation2 + $0x33] sm:$0x1]
      %v1521 = vld [vmem:[#allocation2 + $0x3b] sm:$0x1]
      %v1522 = vpack.c.bf16 %v1419, %v1419
      %v1524 = vsel %vm233, %v1522, 0
      %1526 = vmatprep.subr.bf16.mxu0 0
      %1527 = vmatpush1.bf16.msra.mxu0 %v229
      %1528 = vmatprep.subr.bf16.mxu0 0
      %1529 = vmatpush1.bf16.msra.mxu0 %v230
      %1530 = vmatprep.subr.bf16.mxu0 0
      %1531 = vmatpush1.bf16.msra.mxu0 0
      %1532 = vmatprep.subr.bf16.mxu0 0
      %1533 = vmatpush1.bf16.msra.mxu0 0
      %1534 = vmatprep.subr.bf16.mxu0 0
      %1535 = vmatpush1.bf16.msra.mxu0 0
      %1536 = vmatprep.subr.bf16.mxu0 0
      %1537 = vmatpush1.bf16.msra.mxu0 0
      %1538 = vmatprep.subr.bf16.mxu0 0
      %1539 = vmatpush1.bf16.msra.mxu0 0
      %1540 = vmatprep.subr.bf16.mxu0 0
      %1541 = vmatpush1.bf16.msra.mxu0 0
      %1542 = vmatprep.subr.bf16.mxu0 0
      %1543 = vmatpush1.bf16.msra.mxu0 0
      %1544 = vmatprep.subr.bf16.mxu0 0
      %1545 = vmatpush1.bf16.msra.mxu0 0
      %1546 = vmatprep.subr.bf16.mxu0 0
      %1547 = vmatpush1.bf16.msra.mxu0 0
      %1548 = vmatprep.subr.bf16.mxu0 0
      %1549 = vmatpush1.bf16.msra.mxu0 0
      %1550 = vmatprep.subr.bf16.mxu0 0
      %1551 = vmatpush1.bf16.msra.mxu0 0
      %1552 = vmatprep.subr.bf16.mxu0 0
      %1553 = vmatpush1.bf16.msra.mxu0 0
      %1554 = vmatprep.subr.bf16.mxu0 0
      %1555 = vmatpush1.bf16.msra.mxu0 0
      %1556 = vmatprep.subr.bf16.mxu0 0
      %1557 = vmatpush1.bf16.msra.mxu0 0
      %1558 = vmatprep.mubr.bf16.mxu0 0
      %1559 = vmatmul.mubr.bf16.gmra.mrb[0].mxu0 %v1524
      %v1560 = vpop.f32.mrb[0].mxu0
      %v1561 = vadd.f32 0.0, %v1560
      %v1562 = vpop.f32.mrb[0].mxu0
      %v1563 = vpop.f32.mrb[0].mxu0
      %v1564 = vpop.f32.mrb[0].mxu0
      %1565 = vdwg.mxu0
      %v1567 = vrot.slane %v1561, 1
      %v1568 = vrot.slane %v1561, 2
      %v1569 = vrot.slane %v1561, 3
      %v1570 = vrot.slane %v1561, 4
      %v1571 = vrot.slane %v1561, 5
      %v1572 = vrot.slane %v1561, 6
      %v1573 = vrot.slane %v1561, 7
      %v1582 = vadd.f32 %v1514, %v1561
      %v1583 = vadd.f32 %v1515, %v1567
      %v1584 = vadd.f32 %v1516, %v1568
      %v1585 = vadd.f32 %v1517, %v1569
      %v1586 = vadd.f32 %v1518, %v1570
      %v1587 = vadd.f32 %v1519, %v1571
      %v1588 = vadd.f32 %v1520, %v1572
      %v1589 = vadd.f32 %v1521, %v1573
      %v1590 = vxor.u32 %v1582, 2147483648
      %v1591 = vxor.u32 %v1583, 2147483648
      %v1592 = vxor.u32 %v1584, 2147483648
      %v1593 = vxor.u32 %v1585, 2147483648
      %v1594 = vxor.u32 %v1586, 2147483648
      %v1595 = vxor.u32 %v1587, 2147483648
      %v1596 = vxor.u32 %v1588, 2147483648
      %v1597 = vxor.u32 %v1589, 2147483648
      %v1598 = vmul.f32 %v1590, 1.442695
      %v1599 = vpow.pop %v1598
      %v1600 = vmul.f32 %v1591, 1.442695
      %v1601 = vpow.pop %v1600
      %v1602 = vmul.f32 %v1592, 1.442695
      %v1603 = vpow.pop %v1602
      %v1604 = vmul.f32 %v1593, 1.442695
      %v1605 = vpow.pop %v1604
      %v1606 = vmul.f32 %v1594, 1.442695
      %v1607 = vpow.pop %v1606
      %v1608 = vmul.f32 %v1595, 1.442695
      %v1609 = vpow.pop %v1608
      %v1610 = vmul.f32 %v1596, 1.442695
      %v1611 = vpow.pop %v1610
      %v1612 = vmul.f32 %v1597, 1.442695
      %v1613 = vpow.pop %v1612
      %v1614 = vadd.f32 %v1599, 1.0
      %v1615 = vadd.f32 %v1601, 1.0
      %v1616 = vadd.f32 %v1603, 1.0
      %v1617 = vadd.f32 %v1605, 1.0
      %v1618 = vadd.f32 %v1607, 1.0
      %v1619 = vadd.f32 %v1609, 1.0
      %v1620 = vadd.f32 %v1611, 1.0
      %v1621 = vadd.f32 %v1613, 1.0
      %v1622 = vrcp.pop %v1614
      %v1623 = vmul.f32 1.0, %v1622
      %v1624 = vrcp.pop %v1615
      %v1625 = vmul.f32 1.0, %v1624
      %v1626 = vrcp.pop %v1616
      %v1627 = vmul.f32 1.0, %v1626
      %v1628 = vrcp.pop %v1617
      %v1629 = vmul.f32 1.0, %v1628
      %v1630 = vrcp.pop %v1618
      %v1631 = vmul.f32 1.0, %v1630
      %v1632 = vrcp.pop %v1619
      %v1633 = vmul.f32 1.0, %v1632
      %v1634 = vrcp.pop %v1620
      %v1635 = vmul.f32 1.0, %v1634
      %v1636 = vrcp.pop %v1621
      %v1637 = vmul.f32 1.0, %v1636
      %v1638 = vtanh.pop %v1582
      %v1639 = vtanh.pop %v1583
      %v1640 = vtanh.pop %v1584
      %v1641 = vtanh.pop %v1585
      %v1642 = vtanh.pop %v1586
      %v1643 = vtanh.pop %v1587
      %v1644 = vtanh.pop %v1588
      %v1645 = vtanh.pop %v1589
      %v1647 = vrot.slane %v1445, 1
      %v1648 = vrot.slane %v1445, 2
      %v1649 = vrot.slane %v1445, 3
      %v1650 = vrot.slane %v1445, 4
      %v1651 = vrot.slane %v1445, 5
      %v1652 = vrot.slane %v1445, 6
      %v1653 = vrot.slane %v1445, 7
      %1654 = vrot.lane.b32.xlu0 %v1445, 32
      %v1655 = vpop.permute.xlu0 %1654
      %1656 = vrot.lane.b32.xlu0 %v1647, 32
      %v1657 = vpop.permute.xlu0 %1656
      %1658 = vrot.lane.b32.xlu0 %v1648, 32
      %v1659 = vpop.permute.xlu0 %1658
      %1660 = vrot.lane.b32.xlu0 %v1649, 32
      %v1661 = vpop.permute.xlu0 %1660
      %1662 = vrot.lane.b32.xlu0 %v1650, 32
      %v1663 = vpop.permute.xlu0 %1662
      %1664 = vrot.lane.b32.xlu0 %v1651, 32
      %v1665 = vpop.permute.xlu0 %1664
      %1666 = vrot.lane.b32.xlu0 %v1652, 32
      %v1667 = vpop.permute.xlu0 %1666
      %1668 = vrot.lane.b32.xlu0 %v1653, 32
      %v1669 = vpop.permute.xlu0 %1668
      %v1678 = vmul.f32 %v1623, %v1655
      %v1679 = vmul.f32 %v1625, %v1657
      %v1680 = vmul.f32 %v1627, %v1659
      %v1681 = vmul.f32 %v1629, %v1661
      %v1682 = vmul.f32 %v1631, %v1663
      %v1683 = vmul.f32 %v1633, %v1665
      %v1684 = vmul.f32 %v1635, %v1667
      %v1685 = vmul.f32 %v1637, %v1669
      %1694 = vrot.lane.b32.xlu0 %v1638, 64
      %v1695 = vpop.permute.xlu0 %1694
      %1696 = vrot.lane.b32.xlu0 %v1639, 64
      %v1697 = vpop.permute.xlu0 %1696
      %1698 = vrot.lane.b32.xlu0 %v1640, 64
      %v1699 = vpop.permute.xlu0 %1698
      %1700 = vrot.lane.b32.xlu0 %v1641, 64
      %v1701 = vpop.permute.xlu0 %1700
      %1702 = vrot.lane.b32.xlu0 %v1642, 64
      %v1703 = vpop.permute.xlu0 %1702
      %1704 = vrot.lane.b32.xlu0 %v1643, 64
      %v1705 = vpop.permute.xlu0 %1704
      %1706 = vrot.lane.b32.xlu0 %v1644, 64
      %v1707 = vpop.permute.xlu0 %1706
      %1708 = vrot.lane.b32.xlu0 %v1645, 64
      %v1709 = vpop.permute.xlu0 %1708
      %v1718 = vmul.f32 %v1623, %v1695
      %v1719 = vmul.f32 %v1625, %v1697
      %v1720 = vmul.f32 %v1627, %v1699
      %v1721 = vmul.f32 %v1629, %v1701
      %v1722 = vmul.f32 %v1631, %v1703
      %v1723 = vmul.f32 %v1633, %v1705
      %v1724 = vmul.f32 %v1635, %v1707
      %v1725 = vmul.f32 %v1637, %v1709
      %1734 = vrot.lane.b32.xlu0 %v1718, 32
      %v1735 = vpop.permute.xlu0 %1734
      %1736 = vrot.lane.b32.xlu0 %v1719, 32
      %v1737 = vpop.permute.xlu0 %1736
      %1738 = vrot.lane.b32.xlu0 %v1720, 32
      %v1739 = vpop.permute.xlu0 %1738
      %1740 = vrot.lane.b32.xlu0 %v1721, 32
      %v1741 = vpop.permute.xlu0 %1740
      %1742 = vrot.lane.b32.xlu0 %v1722, 32
      %v1743 = vpop.permute.xlu0 %1742
      %1744 = vrot.lane.b32.xlu0 %v1723, 32
      %v1745 = vpop.permute.xlu0 %1744
      %1746 = vrot.lane.b32.xlu0 %v1724, 32
      %v1747 = vpop.permute.xlu0 %1746
      %1748 = vrot.lane.b32.xlu0 %v1725, 32
      %v1749 = vpop.permute.xlu0 %1748
      %v1758 = vadd.f32 %v1678, %v1735
      %v1759 = vadd.f32 %v1679, %v1737
      %v1760 = vadd.f32 %v1680, %v1739
      %v1761 = vadd.f32 %v1681, %v1741
      %v1762 = vadd.f32 %v1682, %v1743
      %v1763 = vadd.f32 %v1683, %v1745
      %v1764 = vadd.f32 %v1684, %v1747
      %v1765 = vadd.f32 %v1685, %v1749
      %v1766 = vtanh.pop %v1758
      %v1767 = vtanh.pop %v1759
      %v1768 = vtanh.pop %v1760
      %v1769 = vtanh.pop %v1761
      %v1770 = vtanh.pop %v1762
      %v1771 = vtanh.pop %v1763
      %v1772 = vtanh.pop %v1764
      %v1773 = vtanh.pop %v1765
      %1782 = vrot.lane.b32.xlu0 %v1766, 64
      %v1783 = vpop.permute.xlu0 %1782
      %1784 = vrot.lane.b32.xlu0 %v1767, 64
      %v1785 = vpop.permute.xlu0 %1784
      %1786 = vrot.lane.b32.xlu0 %v1768, 64
      %v1787 = vpop.permute.xlu0 %1786
      %1788 = vrot.lane.b32.xlu0 %v1769, 64
      %v1789 = vpop.permute.xlu0 %1788
      %1790 = vrot.lane.b32.xlu0 %v1770, 64
      %v1791 = vpop.permute.xlu0 %1790
      %1792 = vrot.lane.b32.xlu0 %v1771, 64
      %v1793 = vpop.permute.xlu0 %1792
      %1794 = vrot.lane.b32.xlu0 %v1772, 64
      %v1795 = vpop.permute.xlu0 %1794
      %1796 = vrot.lane.b32.xlu0 %v1773, 64
      %v1797 = vpop.permute.xlu0 %1796
      %v1806 = vmul.f32 %v1623, %v1783
      %v1807 = vmul.f32 %v1625, %v1785
      %v1808 = vmul.f32 %v1627, %v1787
      %v1809 = vmul.f32 %v1629, %v1789
      %v1810 = vmul.f32 %v1631, %v1791
      %v1811 = vmul.f32 %v1633, %v1793
      %v1812 = vmul.f32 %v1635, %v1795
      %v1813 = vmul.f32 %v1637, %v1797
      %v1814 = vstv %s1513
      %vm1815 = vcmp.gt.s32.totalorder %v205, %v1814
      %v1816 = vsel %vm1815, 1, 0
      %1817 = vset.pattern.permute.xlu0 0
      %1818 = vperm.xlu0 %1817, %v1816
      %v1819 = vpop.permute.xlu0 %1818
      %vm1820 = vcmp.eq.s32.totalorder %v1819, 1
      %v1829 = vrot.slane %v1807, 7
      %v1830 = vsel %vm541, %v1829, %v1806
      %v1831 = vrot.slane %v1808, 6
      %v1832 = vsel %vm544, %v1831, %v1830
      %v1833 = vrot.slane %v1809, 5
      %v1834 = vsel %vm547, %v1833, %v1832
      %v1835 = vrot.slane %v1810, 4
      %v1836 = vsel %vm550, %v1835, %v1834
      %v1837 = vrot.slane %v1811, 3
      %v1838 = vsel %vm553, %v1837, %v1836
      %v1839 = vrot.slane %v1812, 2
      %v1840 = vsel %vm556, %v1839, %v1838
      %v1841 = vrot.slane %v1813, 1
      %v1842 = vsel %vm559, %v1841, %v1840
      %1843 = vrot.lane.b32.xlu0 %v1842, 32
      %v1844 = vpop.permute.xlu0 %1843
      %v1846 = vsel %vm1820, %v1844, %v1419
      %v1855 = vrot.slane %v1759, 7
      %v1856 = vsel %vm541, %v1855, %v1758
      %v1857 = vrot.slane %v1760, 6
      %v1858 = vsel %vm544, %v1857, %v1856
      %v1859 = vrot.slane %v1761, 5
      %v1860 = vsel %vm547, %v1859, %v1858
      %v1861 = vrot.slane %v1762, 4
      %v1862 = vsel %vm550, %v1861, %v1860
      %v1863 = vrot.slane %v1763, 3
      %v1864 = vsel %vm553, %v1863, %v1862
      %v1865 = vrot.slane %v1764, 2
      %v1866 = vsel %vm556, %v1865, %v1864
      %v1867 = vrot.slane %v1765, 1
      %v1868 = vsel %vm559, %v1867, %v1866
      %1869 = vrot.lane.b32.xlu0 %v1868, 96
      %v1870 = vpop.permute.xlu0 %1869
      %v1872 = vsel %vm1820, %v1870, %v1445
      %v1873 = vsel %vm1820, %v1844, 0.0
      %v1875 = vcombine.high %v1873, %v1873
      %v1877 = vunpack.c.l.s4 1966171168
      %v1878 = vunpack.c.0.s8 %v1877
      %v1879 = vlaneseq
      %v1880 = vshrl.u32 %v1879, 7
      %v1881 = vsub.s32 %v1878, %v1880
      %v1882 = vrot.slane %v1873, %v1881
      %v1884 = vunpack.c.l.s4 1966171168
      %v1885 = vunpack.c.0.s8 %v1884
      %v1886 = vlaneseq
      %v1887 = vshrl.u32 %v1886, 7
      %v1888 = vsub.s32 %v1885, %v1887
      %v1889 = vrot.slane %v1875, %v1888
      %v1890 = vcombine.high %v1882, %v1882
      %v1891 = vcombine.high %v1889, %v1889
      %v1893 = vunpack.c.l.s4 1966171168
      %v1894 = vunpack.c.0.s8 %v1893
      %v1895 = vlaneseq
      %v1896 = vshrl.u32 %v1895, 7
      %v1897 = vsub.s32 %v1894, %v1896
      %v1898 = vrot.slane %v1882, %v1897
      %v1900 = vunpack.c.l.s4 1966171168
      %v1901 = vunpack.c.0.s8 %v1900
      %v1902 = vlaneseq
      %v1903 = vshrl.u32 %v1902, 7
      %v1904 = vsub.s32 %v1901, %v1903
      %v1905 = vrot.slane %v1889, %v1904
      %v1907 = vunpack.c.l.s4 1966171168
      %v1908 = vunpack.c.0.s8 %v1907
      %v1909 = vlaneseq
      %v1910 = vshrl.u32 %v1909, 7
      %v1911 = vsub.s32 %v1908, %v1910
      %v1912 = vrot.slane %v1890, %v1911
      %v1914 = vunpack.c.l.s4 1966171168
      %v1915 = vunpack.c.0.s8 %v1914
      %v1916 = vlaneseq
      %v1917 = vshrl.u32 %v1916, 7
      %v1918 = vsub.s32 %v1915, %v1917
      %v1919 = vrot.slane %v1891, %v1918
      %v1920 = vcombine.high %v1898, %v1898
      %v1921 = vcombine.high %v1905, %v1905
      %v1922 = vcombine.high %v1912, %v1912
      %v1923 = vcombine.high %v1919, %v1919
      %1932 = vst.msk [vmem:[#allocation8 + $0x3] sm:$0x1] %vm650, %v1898
      %1933 = vst.msk [vmem:[#allocation8 + $0xb] sm:$0x1] %vm650, %v1912
      %1934 = vst.msk [vmem:[#allocation8 + $0x13] sm:$0x1] %vm650, %v1920
      %1935 = vst.msk [vmem:[#allocation8 + $0x1b] sm:$0x1] %vm650, %v1922
      %1936 = vst.msk [vmem:[#allocation8 + $0x23] sm:$0x1] %vm650, %v1905
      %1937 = vst.msk [vmem:[#allocation8 + $0x2b] sm:$0x1] %vm650, %v1919
      %1938 = vst.msk [vmem:[#allocation8 + $0x33] sm:$0x1] %vm650, %v1921
      %1939 = vst.msk [vmem:[#allocation8 + $0x3b] sm:$0x1] %vm650, %v1923
      %s1940 = sadd.s32 %s42, 4
      %v1941 = vld [vmem:[#allocation2 + $0x4] sm:$0x1]
      %v1942 = vld [vmem:[#allocation2 + $0xc] sm:$0x1]
      %v1943 = vld [vmem:[#allocation2 + $0x14] sm:$0x1]
      %v1944 = vld [vmem:[#allocation2 + $0x1c] sm:$0x1]
      %v1945 = vld [vmem:[#allocation2 + $0x24] sm:$0x1]
      %v1946 = vld [vmem:[#allocation2 + $0x2c] sm:$0x1]
      %v1947 = vld [vmem:[#allocation2 + $0x34] sm:$0x1]
      %v1948 = vld [vmem:[#allocation2 + $0x3c] sm:$0x1]
      %v1949 = vpack.c.bf16 %v1846, %v1846
      %v1951 = vsel %vm233, %v1949, 0
      %1953 = vmatprep.subr.bf16.mxu0 0
      %1954 = vmatpush1.bf16.msra.mxu0 %v229
      %1955 = vmatprep.subr.bf16.mxu0 0
      %1956 = vmatpush1.bf16.msra.mxu0 %v230
      %1957 = vmatprep.subr.bf16.mxu0 0
      %1958 = vmatpush1.bf16.msra.mxu0 0
      %1959 = vmatprep.subr.bf16.mxu0 0
      %1960 = vmatpush1.bf16.msra.mxu0 0
      %1961 = vmatprep.subr.bf16.mxu0 0
      %1962 = vmatpush1.bf16.msra.mxu0 0
      %1963 = vmatprep.subr.bf16.mxu0 0
      %1964 = vmatpush1.bf16.msra.mxu0 0
      %1965 = vmatprep.subr.bf16.mxu0 0
      %1966 = vmatpush1.bf16.msra.mxu0 0
      %1967 = vmatprep.subr.bf16.mxu0 0
      %1968 = vmatpush1.bf16.msra.mxu0 0
      %1969 = vmatprep.subr.bf16.mxu0 0
      %1970 = vmatpush1.bf16.msra.mxu0 0
      %1971 = vmatprep.subr.bf16.mxu0 0
      %1972 = vmatpush1.bf16.msra.mxu0 0
      %1973 = vmatprep.subr.bf16.mxu0 0
      %1974 = vmatpush1.bf16.msra.mxu0 0
      %1975 = vmatprep.subr.bf16.mxu0 0
      %1976 = vmatpush1.bf16.msra.mxu0 0
      %1977 = vmatprep.subr.bf16.mxu0 0
      %1978 = vmatpush1.bf16.msra.mxu0 0
      %1979 = vmatprep.subr.bf16.mxu0 0
      %1980 = vmatpush1.bf16.msra.mxu0 0
      %1981 = vmatprep.subr.bf16.mxu0 0
      %1982 = vmatpush1.bf16.msra.mxu0 0
      %1983 = vmatprep.subr.bf16.mxu0 0
      %1984 = vmatpush1.bf16.msra.mxu0 0
      %1985 = vmatprep.mubr.bf16.mxu0 0
      %1986 = vmatmul.mubr.bf16.gmra.mrb[0].mxu0 %v1951
      %v1987 = vpop.f32.mrb[0].mxu0
      %v1988 = vadd.f32 0.0, %v1987
      %v1989 = vpop.f32.mrb[0].mxu0
      %v1990 = vpop.f32.mrb[0].mxu0
      %v1991 = vpop.f32.mrb[0].mxu0
      %1992 = vdwg.mxu0
      %v1994 = vrot.slane %v1988, 1
      %v1995 = vrot.slane %v1988, 2
      %v1996 = vrot.slane %v1988, 3
      %v1997 = vrot.slane %v1988, 4
      %v1998 = vrot.slane %v1988, 5
      %v1999 = vrot.slane %v1988, 6
      %v2000 = vrot.slane %v1988, 7
      %v2009 = vadd.f32 %v1941, %v1988
      %v2010 = vadd.f32 %v1942, %v1994
      %v2011 = vadd.f32 %v1943, %v1995
      %v2012 = vadd.f32 %v1944, %v1996
      %v2013 = vadd.f32 %v1945, %v1997
      %v2014 = vadd.f32 %v1946, %v1998
      %v2015 = vadd.f32 %v1947, %v1999
      %v2016 = vadd.f32 %v1948, %v2000
      %v2017 = vxor.u32 %v2009, 2147483648
      %v2018 = vxor.u32 %v2010, 2147483648
      %v2019 = vxor.u32 %v2011, 2147483648
      %v2020 = vxor.u32 %v2012, 2147483648
      %v2021 = vxor.u32 %v2013, 2147483648
      %v2022 = vxor.u32 %v2014, 2147483648
      %v2023 = vxor.u32 %v2015, 2147483648
      %v2024 = vxor.u32 %v2016, 2147483648
      %v2025 = vmul.f32 %v2017, 1.442695
      %v2026 = vpow.pop %v2025
      %v2027 = vmul.f32 %v2018, 1.442695
      %v2028 = vpow.pop %v2027
      %v2029 = vmul.f32 %v2019, 1.442695
      %v2030 = vpow.pop %v2029
      %v2031 = vmul.f32 %v2020, 1.442695
      %v2032 = vpow.pop %v2031
      %v2033 = vmul.f32 %v2021, 1.442695
      %v2034 = vpow.pop %v2033
      %v2035 = vmul.f32 %v2022, 1.442695
      %v2036 = vpow.pop %v2035
      %v2037 = vmul.f32 %v2023, 1.442695
      %v2038 = vpow.pop %v2037
      %v2039 = vmul.f32 %v2024, 1.442695
      %v2040 = vpow.pop %v2039
      %v2041 = vadd.f32 %v2026, 1.0
      %v2042 = vadd.f32 %v2028, 1.0
      %v2043 = vadd.f32 %v2030, 1.0
      %v2044 = vadd.f32 %v2032, 1.0
      %v2045 = vadd.f32 %v2034, 1.0
      %v2046 = vadd.f32 %v2036, 1.0
      %v2047 = vadd.f32 %v2038, 1.0
      %v2048 = vadd.f32 %v2040, 1.0
      %v2049 = vrcp.pop %v2041
      %v2050 = vmul.f32 1.0, %v2049
      %v2051 = vrcp.pop %v2042
      %v2052 = vmul.f32 1.0, %v2051
      %v2053 = vrcp.pop %v2043
      %v2054 = vmul.f32 1.0, %v2053
      %v2055 = vrcp.pop %v2044
      %v2056 = vmul.f32 1.0, %v2055
      %v2057 = vrcp.pop %v2045
      %v2058 = vmul.f32 1.0, %v2057
      %v2059 = vrcp.pop %v2046
      %v2060 = vmul.f32 1.0, %v2059
      %v2061 = vrcp.pop %v2047
      %v2062 = vmul.f32 1.0, %v2061
      %v2063 = vrcp.pop %v2048
      %v2064 = vmul.f32 1.0, %v2063
      %v2065 = vtanh.pop %v2009
      %v2066 = vtanh.pop %v2010
      %v2067 = vtanh.pop %v2011
      %v2068 = vtanh.pop %v2012
      %v2069 = vtanh.pop %v2013
      %v2070 = vtanh.pop %v2014
      %v2071 = vtanh.pop %v2015
      %v2072 = vtanh.pop %v2016
      %v2074 = vrot.slane %v1872, 1
      %v2075 = vrot.slane %v1872, 2
      %v2076 = vrot.slane %v1872, 3
      %v2077 = vrot.slane %v1872, 4
      %v2078 = vrot.slane %v1872, 5
      %v2079 = vrot.slane %v1872, 6
      %v2080 = vrot.slane %v1872, 7
      %2081 = vrot.lane.b32.xlu0 %v1872, 32
      %v2082 = vpop.permute.xlu0 %2081
      %2083 = vrot.lane.b32.xlu0 %v2074, 32
      %v2084 = vpop.permute.xlu0 %2083
      %2085 = vrot.lane.b32.xlu0 %v2075, 32
      %v2086 = vpop.permute.xlu0 %2085
      %2087 = vrot.lane.b32.xlu0 %v2076, 32
      %v2088 = vpop.permute.xlu0 %2087
      %2089 = vrot.lane.b32.xlu0 %v2077, 32
      %v2090 = vpop.permute.xlu0 %2089
      %2091 = vrot.lane.b32.xlu0 %v2078, 32
      %v2092 = vpop.permute.xlu0 %2091
      %2093 = vrot.lane.b32.xlu0 %v2079, 32
      %v2094 = vpop.permute.xlu0 %2093
      %2095 = vrot.lane.b32.xlu0 %v2080, 32
      %v2096 = vpop.permute.xlu0 %2095
      %v2105 = vmul.f32 %v2050, %v2082
      %v2106 = vmul.f32 %v2052, %v2084
      %v2107 = vmul.f32 %v2054, %v2086
      %v2108 = vmul.f32 %v2056, %v2088
      %v2109 = vmul.f32 %v2058, %v2090
      %v2110 = vmul.f32 %v2060, %v2092
      %v2111 = vmul.f32 %v2062, %v2094
      %v2112 = vmul.f32 %v2064, %v2096
      %2121 = vrot.lane.b32.xlu0 %v2065, 64
      %v2122 = vpop.permute.xlu0 %2121
      %2123 = vrot.lane.b32.xlu0 %v2066, 64
      %v2124 = vpop.permute.xlu0 %2123
      %2125 = vrot.lane.b32.xlu0 %v2067, 64
      %v2126 = vpop.permute.xlu0 %2125
      %2127 = vrot.lane.b32.xlu0 %v2068, 64
      %v2128 = vpop.permute.xlu0 %2127
      %2129 = vrot.lane.b32.xlu0 %v2069, 64
      %v2130 = vpop.permute.xlu0 %2129
      %2131 = vrot.lane.b32.xlu0 %v2070, 64
      %v2132 = vpop.permute.xlu0 %2131
      %2133 = vrot.lane.b32.xlu0 %v2071, 64
      %v2134 = vpop.permute.xlu0 %2133
      %2135 = vrot.lane.b32.xlu0 %v2072, 64
      %v2136 = vpop.permute.xlu0 %2135
      %v2145 = vmul.f32 %v2050, %v2122
      %v2146 = vmul.f32 %v2052, %v2124
      %v2147 = vmul.f32 %v2054, %v2126
      %v2148 = vmul.f32 %v2056, %v2128
      %v2149 = vmul.f32 %v2058, %v2130
      %v2150 = vmul.f32 %v2060, %v2132
      %v2151 = vmul.f32 %v2062, %v2134
      %v2152 = vmul.f32 %v2064, %v2136
      %2161 = vrot.lane.b32.xlu0 %v2145, 32
      %v2162 = vpop.permute.xlu0 %2161
      %2163 = vrot.lane.b32.xlu0 %v2146, 32
      %v2164 = vpop.permute.xlu0 %2163
      %2165 = vrot.lane.b32.xlu0 %v2147, 32
      %v2166 = vpop.permute.xlu0 %2165
      %2167 = vrot.lane.b32.xlu0 %v2148, 32
      %v2168 = vpop.permute.xlu0 %2167
      %2169 = vrot.lane.b32.xlu0 %v2149, 32
      %v2170 = vpop.permute.xlu0 %2169
      %2171 = vrot.lane.b32.xlu0 %v2150, 32
      %v2172 = vpop.permute.xlu0 %2171
      %2173 = vrot.lane.b32.xlu0 %v2151, 32
      %v2174 = vpop.permute.xlu0 %2173
      %2175 = vrot.lane.b32.xlu0 %v2152, 32
      %v2176 = vpop.permute.xlu0 %2175
      %v2185 = vadd.f32 %v2105, %v2162
      %v2186 = vadd.f32 %v2106, %v2164
      %v2187 = vadd.f32 %v2107, %v2166
      %v2188 = vadd.f32 %v2108, %v2168
      %v2189 = vadd.f32 %v2109, %v2170
      %v2190 = vadd.f32 %v2110, %v2172
      %v2191 = vadd.f32 %v2111, %v2174
      %v2192 = vadd.f32 %v2112, %v2176
      %v2193 = vtanh.pop %v2185
      %v2194 = vtanh.pop %v2186
      %v2195 = vtanh.pop %v2187
      %v2196 = vtanh.pop %v2188
      %v2197 = vtanh.pop %v2189
      %v2198 = vtanh.pop %v2190
      %v2199 = vtanh.pop %v2191
      %v2200 = vtanh.pop %v2192
      %2209 = vrot.lane.b32.xlu0 %v2193, 64
      %v2210 = vpop.permute.xlu0 %2209
      %2211 = vrot.lane.b32.xlu0 %v2194, 64
      %v2212 = vpop.permute.xlu0 %2211
      %2213 = vrot.lane.b32.xlu0 %v2195, 64
      %v2214 = vpop.permute.xlu0 %2213
      %2215 = vrot.lane.b32.xlu0 %v2196, 64
      %v2216 = vpop.permute.xlu0 %2215
      %2217 = vrot.lane.b32.xlu0 %v2197, 64
      %v2218 = vpop.permute.xlu0 %2217
      %2219 = vrot.lane.b32.xlu0 %v2198, 64
      %v2220 = vpop.permute.xlu0 %2219
      %2221 = vrot.lane.b32.xlu0 %v2199, 64
      %v2222 = vpop.permute.xlu0 %2221
      %2223 = vrot.lane.b32.xlu0 %v2200, 64
      %v2224 = vpop.permute.xlu0 %2223
      %v2233 = vmul.f32 %v2050, %v2210
      %v2234 = vmul.f32 %v2052, %v2212
      %v2235 = vmul.f32 %v2054, %v2214
      %v2236 = vmul.f32 %v2056, %v2216
      %v2237 = vmul.f32 %v2058, %v2218
      %v2238 = vmul.f32 %v2060, %v2220
      %v2239 = vmul.f32 %v2062, %v2222
      %v2240 = vmul.f32 %v2064, %v2224
      %v2241 = vstv %s1940
      %vm2242 = vcmp.gt.s32.totalorder %v205, %v2241
      %v2243 = vsel %vm2242, 1, 0
      %2244 = vset.pattern.permute.xlu0 0
      %2245 = vperm.xlu0 %2244, %v2243
      %v2246 = vpop.permute.xlu0 %2245
      %vm2247 = vcmp.eq.s32.totalorder %v2246, 1
      %v2256 = vrot.slane %v2234, 7
      %v2257 = vsel %vm541, %v2256, %v2233
      %v2258 = vrot.slane %v2235, 6
      %v2259 = vsel %vm544, %v2258, %v2257
      %v2260 = vrot.slane %v2236, 5
      %v2261 = vsel %vm547, %v2260, %v2259
      %v2262 = vrot.slane %v2237, 4
      %v2263 = vsel %vm550, %v2262, %v2261
      %v2264 = vrot.slane %v2238, 3
      %v2265 = vsel %vm553, %v2264, %v2263
      %v2266 = vrot.slane %v2239, 2
      %v2267 = vsel %vm556, %v2266, %v2265
      %v2268 = vrot.slane %v2240, 1
      %v2269 = vsel %vm559, %v2268, %v2267
      %2270 = vrot.lane.b32.xlu0 %v2269, 32
      %v2271 = vpop.permute.xlu0 %2270
      %v2273 = vsel %vm2247, %v2271, %v1846
      %v2282 = vrot.slane %v2186, 7
      %v2283 = vsel %vm541, %v2282, %v2185
      %v2284 = vrot.slane %v2187, 6
      %v2285 = vsel %vm544, %v2284, %v2283
      %v2286 = vrot.slane %v2188, 5
      %v2287 = vsel %vm547, %v2286, %v2285
      %v2288 = vrot.slane %v2189, 4
      %v2289 = vsel %vm550, %v2288, %v2287
      %v2290 = vrot.slane %v2190, 3
      %v2291 = vsel %vm553, %v2290, %v2289
      %v2292 = vrot.slane %v2191, 2
      %v2293 = vsel %vm556, %v2292, %v2291
      %v2294 = vrot.slane %v2192, 1
      %v2295 = vsel %vm559, %v2294, %v2293
      %2296 = vrot.lane.b32.xlu0 %v2295, 96
      %v2297 = vpop.permute.xlu0 %2296
      %v2299 = vsel %vm2247, %v2297, %v1872
      %v2300 = vsel %vm2247, %v2271, 0.0
      %v2302 = vcombine.high %v2300, %v2300
      %v2304 = vunpack.c.l.s4 1966171168
      %v2305 = vunpack.c.0.s8 %v2304
      %v2306 = vlaneseq
      %v2307 = vshrl.u32 %v2306, 7
      %v2308 = vsub.s32 %v2305, %v2307
      %v2309 = vrot.slane %v2300, %v2308
      %v2311 = vunpack.c.l.s4 1966171168
      %v2312 = vunpack.c.0.s8 %v2311
      %v2313 = vlaneseq
      %v2314 = vshrl.u32 %v2313, 7
      %v2315 = vsub.s32 %v2312, %v2314
      %v2316 = vrot.slane %v2302, %v2315
      %v2317 = vcombine.high %v2309, %v2309
      %v2318 = vcombine.high %v2316, %v2316
      %v2320 = vunpack.c.l.s4 1966171168
      %v2321 = vunpack.c.0.s8 %v2320
      %v2322 = vlaneseq
      %v2323 = vshrl.u32 %v2322, 7
      %v2324 = vsub.s32 %v2321, %v2323
      %v2325 = vrot.slane %v2309, %v2324
      %v2327 = vunpack.c.l.s4 1966171168
      %v2328 = vunpack.c.0.s8 %v2327
      %v2329 = vlaneseq
      %v2330 = vshrl.u32 %v2329, 7
      %v2331 = vsub.s32 %v2328, %v2330
      %v2332 = vrot.slane %v2316, %v2331
      %v2334 = vunpack.c.l.s4 1966171168
      %v2335 = vunpack.c.0.s8 %v2334
      %v2336 = vlaneseq
      %v2337 = vshrl.u32 %v2336, 7
      %v2338 = vsub.s32 %v2335, %v2337
      %v2339 = vrot.slane %v2317, %v2338
      %v2341 = vunpack.c.l.s4 1966171168
      %v2342 = vunpack.c.0.s8 %v2341
      %v2343 = vlaneseq
      %v2344 = vshrl.u32 %v2343, 7
      %v2345 = vsub.s32 %v2342, %v2344
      %v2346 = vrot.slane %v2318, %v2345
      %v2347 = vcombine.high %v2325, %v2325
      %v2348 = vcombine.high %v2332, %v2332
      %v2349 = vcombine.high %v2339, %v2339
      %v2350 = vcombine.high %v2346, %v2346
      %2359 = vst.msk [vmem:[#allocation8 + $0x4] sm:$0x1] %vm650, %v2325
      %2360 = vst.msk [vmem:[#allocation8 + $0xc] sm:$0x1] %vm650, %v2339
      %2361 = vst.msk [vmem:[#allocation8 + $0x14] sm:$0x1] %vm650, %v2347
      %2362 = vst.msk [vmem:[#allocation8 + $0x1c] sm:$0x1] %vm650, %v2349
      %2363 = vst.msk [vmem:[#allocation8 + $0x24] sm:$0x1] %vm650, %v2332
      %2364 = vst.msk [vmem:[#allocation8 + $0x2c] sm:$0x1] %vm650, %v2346
      %2365 = vst.msk [vmem:[#allocation8 + $0x34] sm:$0x1] %vm650, %v2348
      %2366 = vst.msk [vmem:[#allocation8 + $0x3c] sm:$0x1] %vm650, %v2350
      %s2367 = sadd.s32 %s42, 5
      %v2368 = vld [vmem:[#allocation2 + $0x5] sm:$0x1]
      %v2369 = vld [vmem:[#allocation2 + $0xd] sm:$0x1]
      %v2370 = vld [vmem:[#allocation2 + $0x15] sm:$0x1]
      %v2371 = vld [vmem:[#allocation2 + $0x1d] sm:$0x1]
      %v2372 = vld [vmem:[#allocation2 + $0x25] sm:$0x1]
      %v2373 = vld [vmem:[#allocation2 + $0x2d] sm:$0x1]
      %v2374 = vld [vmem:[#allocation2 + $0x35] sm:$0x1]
      %v2375 = vld [vmem:[#allocation2 + $0x3d] sm:$0x1]
      %v2376 = vpack.c.bf16 %v2273, %v2273
      %v2378 = vsel %vm233, %v2376, 0
      %2380 = vmatprep.subr.bf16.mxu0 0
      %2381 = vmatpush1.bf16.msra.mxu0 %v229
      %2382 = vmatprep.subr.bf16.mxu0 0
      %2383 = vmatpush1.bf16.msra.mxu0 %v230
      %2384 = vmatprep.subr.bf16.mxu0 0
      %2385 = vmatpush1.bf16.msra.mxu0 0
      %2386 = vmatprep.subr.bf16.mxu0 0
      %2387 = vmatpush1.bf16.msra.mxu0 0
      %2388 = vmatprep.subr.bf16.mxu0 0
      %2389 = vmatpush1.bf16.msra.mxu0 0
      %2390 = vmatprep.subr.bf16.mxu0 0
      %2391 = vmatpush1.bf16.msra.mxu0 0
      %2392 = vmatprep.subr.bf16.mxu0 0
      %2393 = vmatpush1.bf16.msra.mxu0 0
      %2394 = vmatprep.subr.bf16.mxu0 0
      %2395 = vmatpush1.bf16.msra.mxu0 0
      %2396 = vmatprep.subr.bf16.mxu0 0
      %2397 = vmatpush1.bf16.msra.mxu0 0
      %2398 = vmatprep.subr.bf16.mxu0 0
      %2399 = vmatpush1.bf16.msra.mxu0 0
      %2400 = vmatprep.subr.bf16.mxu0 0
      %2401 = vmatpush1.bf16.msra.mxu0 0
      %2402 = vmatprep.subr.bf16.mxu0 0
      %2403 = vmatpush1.bf16.msra.mxu0 0
      %2404 = vmatprep.subr.bf16.mxu0 0
      %2405 = vmatpush1.bf16.msra.mxu0 0
      %2406 = vmatprep.subr.bf16.mxu0 0
      %2407 = vmatpush1.bf16.msra.mxu0 0
      %2408 = vmatprep.subr.bf16.mxu0 0
      %2409 = vmatpush1.bf16.msra.mxu0 0
      %2410 = vmatprep.subr.bf16.mxu0 0
      %2411 = vmatpush1.bf16.msra.mxu0 0
      %2412 = vmatprep.mubr.bf16.mxu0 0
      %2413 = vmatmul.mubr.bf16.gmra.mrb[0].mxu0 %v2378
      %v2414 = vpop.f32.mrb[0].mxu0
      %v2415 = vadd.f32 0.0, %v2414
      %v2416 = vpop.f32.mrb[0].mxu0
      %v2417 = vpop.f32.mrb[0].mxu0
      %v2418 = vpop.f32.mrb[0].mxu0
      %2419 = vdwg.mxu0
      %v2421 = vrot.slane %v2415, 1
      %v2422 = vrot.slane %v2415, 2
      %v2423 = vrot.slane %v2415, 3
      %v2424 = vrot.slane %v2415, 4
      %v2425 = vrot.slane %v2415, 5
      %v2426 = vrot.slane %v2415, 6
      %v2427 = vrot.slane %v2415, 7
      %v2436 = vadd.f32 %v2368, %v2415
      %v2437 = vadd.f32 %v2369, %v2421
      %v2438 = vadd.f32 %v2370, %v2422
      %v2439 = vadd.f32 %v2371, %v2423
      %v2440 = vadd.f32 %v2372, %v2424
      %v2441 = vadd.f32 %v2373, %v2425
      %v2442 = vadd.f32 %v2374, %v2426
      %v2443 = vadd.f32 %v2375, %v2427
      %v2444 = vxor.u32 %v2436, 2147483648
      %v2445 = vxor.u32 %v2437, 2147483648
      %v2446 = vxor.u32 %v2438, 2147483648
      %v2447 = vxor.u32 %v2439, 2147483648
      %v2448 = vxor.u32 %v2440, 2147483648
      %v2449 = vxor.u32 %v2441, 2147483648
      %v2450 = vxor.u32 %v2442, 2147483648
      %v2451 = vxor.u32 %v2443, 2147483648
      %v2452 = vmul.f32 %v2444, 1.442695
      %v2453 = vpow.pop %v2452
      %v2454 = vmul.f32 %v2445, 1.442695
      %v2455 = vpow.pop %v2454
      %v2456 = vmul.f32 %v2446, 1.442695
      %v2457 = vpow.pop %v2456
      %v2458 = vmul.f32 %v2447, 1.442695
      %v2459 = vpow.pop %v2458
      %v2460 = vmul.f32 %v2448, 1.442695
      %v2461 = vpow.pop %v2460
      %v2462 = vmul.f32 %v2449, 1.442695
      %v2463 = vpow.pop %v2462
      %v2464 = vmul.f32 %v2450, 1.442695
      %v2465 = vpow.pop %v2464
      %v2466 = vmul.f32 %v2451, 1.442695
      %v2467 = vpow.pop %v2466
      %v2468 = vadd.f32 %v2453, 1.0
      %v2469 = vadd.f32 %v2455, 1.0
      %v2470 = vadd.f32 %v2457, 1.0
      %v2471 = vadd.f32 %v2459, 1.0
      %v2472 = vadd.f32 %v2461, 1.0
      %v2473 = vadd.f32 %v2463, 1.0
      %v2474 = vadd.f32 %v2465, 1.0
      %v2475 = vadd.f32 %v2467, 1.0
      %v2476 = vrcp.pop %v2468
      %v2477 = vmul.f32 1.0, %v2476
      %v2478 = vrcp.pop %v2469
      %v2479 = vmul.f32 1.0, %v2478
      %v2480 = vrcp.pop %v2470
      %v2481 = vmul.f32 1.0, %v2480
      %v2482 = vrcp.pop %v2471
      %v2483 = vmul.f32 1.0, %v2482
      %v2484 = vrcp.pop %v2472
      %v2485 = vmul.f32 1.0, %v2484
      %v2486 = vrcp.pop %v2473
      %v2487 = vmul.f32 1.0, %v2486
      %v2488 = vrcp.pop %v2474
      %v2489 = vmul.f32 1.0, %v2488
      %v2490 = vrcp.pop %v2475
      %v2491 = vmul.f32 1.0, %v2490
      %v2492 = vtanh.pop %v2436
      %v2493 = vtanh.pop %v2437
      %v2494 = vtanh.pop %v2438
      %v2495 = vtanh.pop %v2439
      %v2496 = vtanh.pop %v2440
      %v2497 = vtanh.pop %v2441
      %v2498 = vtanh.pop %v2442
      %v2499 = vtanh.pop %v2443
      %v2501 = vrot.slane %v2299, 1
      %v2502 = vrot.slane %v2299, 2
      %v2503 = vrot.slane %v2299, 3
      %v2504 = vrot.slane %v2299, 4
      %v2505 = vrot.slane %v2299, 5
      %v2506 = vrot.slane %v2299, 6
      %v2507 = vrot.slane %v2299, 7
      %2508 = vrot.lane.b32.xlu0 %v2299, 32
      %v2509 = vpop.permute.xlu0 %2508
      %2510 = vrot.lane.b32.xlu0 %v2501, 32
      %v2511 = vpop.permute.xlu0 %2510
      %2512 = vrot.lane.b32.xlu0 %v2502, 32
      %v2513 = vpop.permute.xlu0 %2512
      %2514 = vrot.lane.b32.xlu0 %v2503, 32
      %v2515 = vpop.permute.xlu0 %2514
      %2516 = vrot.lane.b32.xlu0 %v2504, 32
      %v2517 = vpop.permute.xlu0 %2516
      %2518 = vrot.lane.b32.xlu0 %v2505, 32
      %v2519 = vpop.permute.xlu0 %2518
      %2520 = vrot.lane.b32.xlu0 %v2506, 32
      %v2521 = vpop.permute.xlu0 %2520
      %2522 = vrot.lane.b32.xlu0 %v2507, 32
      %v2523 = vpop.permute.xlu0 %2522
      %v2532 = vmul.f32 %v2477, %v2509
      %v2533 = vmul.f32 %v2479, %v2511
      %v2534 = vmul.f32 %v2481, %v2513
      %v2535 = vmul.f32 %v2483, %v2515
      %v2536 = vmul.f32 %v2485, %v2517
      %v2537 = vmul.f32 %v2487, %v2519
      %v2538 = vmul.f32 %v2489, %v2521
      %v2539 = vmul.f32 %v2491, %v2523
      %2548 = vrot.lane.b32.xlu0 %v2492, 64
      %v2549 = vpop.permute.xlu0 %2548
      %2550 = vrot.lane.b32.xlu0 %v2493, 64
      %v2551 = vpop.permute.xlu0 %2550
      %2552 = vrot.lane.b32.xlu0 %v2494, 64
      %v2553 = vpop.permute.xlu0 %2552
      %2554 = vrot.lane.b32.xlu0 %v2495, 64
      %v2555 = vpop.permute.xlu0 %2554
      %2556 = vrot.lane.b32.xlu0 %v2496, 64
      %v2557 = vpop.permute.xlu0 %2556
      %2558 = vrot.lane.b32.xlu0 %v2497, 64
      %v2559 = vpop.permute.xlu0 %2558
      %2560 = vrot.lane.b32.xlu0 %v2498, 64
      %v2561 = vpop.permute.xlu0 %2560
      %2562 = vrot.lane.b32.xlu0 %v2499, 64
      %v2563 = vpop.permute.xlu0 %2562
      %v2572 = vmul.f32 %v2477, %v2549
      %v2573 = vmul.f32 %v2479, %v2551
      %v2574 = vmul.f32 %v2481, %v2553
      %v2575 = vmul.f32 %v2483, %v2555
      %v2576 = vmul.f32 %v2485, %v2557
      %v2577 = vmul.f32 %v2487, %v2559
      %v2578 = vmul.f32 %v2489, %v2561
      %v2579 = vmul.f32 %v2491, %v2563
      %2588 = vrot.lane.b32.xlu0 %v2572, 32
      %v2589 = vpop.permute.xlu0 %2588
      %2590 = vrot.lane.b32.xlu0 %v2573, 32
      %v2591 = vpop.permute.xlu0 %2590
      %2592 = vrot.lane.b32.xlu0 %v2574, 32
      %v2593 = vpop.permute.xlu0 %2592
      %2594 = vrot.lane.b32.xlu0 %v2575, 32
      %v2595 = vpop.permute.xlu0 %2594
      %2596 = vrot.lane.b32.xlu0 %v2576, 32
      %v2597 = vpop.permute.xlu0 %2596
      %2598 = vrot.lane.b32.xlu0 %v2577, 32
      %v2599 = vpop.permute.xlu0 %2598
      %2600 = vrot.lane.b32.xlu0 %v2578, 32
      %v2601 = vpop.permute.xlu0 %2600
      %2602 = vrot.lane.b32.xlu0 %v2579, 32
      %v2603 = vpop.permute.xlu0 %2602
      %v2612 = vadd.f32 %v2532, %v2589
      %v2613 = vadd.f32 %v2533, %v2591
      %v2614 = vadd.f32 %v2534, %v2593
      %v2615 = vadd.f32 %v2535, %v2595
      %v2616 = vadd.f32 %v2536, %v2597
      %v2617 = vadd.f32 %v2537, %v2599
      %v2618 = vadd.f32 %v2538, %v2601
      %v2619 = vadd.f32 %v2539, %v2603
      %v2620 = vtanh.pop %v2612
      %v2621 = vtanh.pop %v2613
      %v2622 = vtanh.pop %v2614
      %v2623 = vtanh.pop %v2615
      %v2624 = vtanh.pop %v2616
      %v2625 = vtanh.pop %v2617
      %v2626 = vtanh.pop %v2618
      %v2627 = vtanh.pop %v2619
      %2636 = vrot.lane.b32.xlu0 %v2620, 64
      %v2637 = vpop.permute.xlu0 %2636
      %2638 = vrot.lane.b32.xlu0 %v2621, 64
      %v2639 = vpop.permute.xlu0 %2638
      %2640 = vrot.lane.b32.xlu0 %v2622, 64
      %v2641 = vpop.permute.xlu0 %2640
      %2642 = vrot.lane.b32.xlu0 %v2623, 64
      %v2643 = vpop.permute.xlu0 %2642
      %2644 = vrot.lane.b32.xlu0 %v2624, 64
      %v2645 = vpop.permute.xlu0 %2644
      %2646 = vrot.lane.b32.xlu0 %v2625, 64
      %v2647 = vpop.permute.xlu0 %2646
      %2648 = vrot.lane.b32.xlu0 %v2626, 64
      %v2649 = vpop.permute.xlu0 %2648
      %2650 = vrot.lane.b32.xlu0 %v2627, 64
      %v2651 = vpop.permute.xlu0 %2650
      %v2660 = vmul.f32 %v2477, %v2637
      %v2661 = vmul.f32 %v2479, %v2639
      %v2662 = vmul.f32 %v2481, %v2641
      %v2663 = vmul.f32 %v2483, %v2643
      %v2664 = vmul.f32 %v2485, %v2645
      %v2665 = vmul.f32 %v2487, %v2647
      %v2666 = vmul.f32 %v2489, %v2649
      %v2667 = vmul.f32 %v2491, %v2651
      %v2668 = vstv %s2367
      %vm2669 = vcmp.gt.s32.totalorder %v205, %v2668
      %v2670 = vsel %vm2669, 1, 0
      %2671 = vset.pattern.permute.xlu0 0
      %2672 = vperm.xlu0 %2671, %v2670
      %v2673 = vpop.permute.xlu0 %2672
      %vm2674 = vcmp.eq.s32.totalorder %v2673, 1
      %v2683 = vrot.slane %v2661, 7
      %v2684 = vsel %vm541, %v2683, %v2660
      %v2685 = vrot.slane %v2662, 6
      %v2686 = vsel %vm544, %v2685, %v2684
      %v2687 = vrot.slane %v2663, 5
      %v2688 = vsel %vm547, %v2687, %v2686
      %v2689 = vrot.slane %v2664, 4
      %v2690 = vsel %vm550, %v2689, %v2688
      %v2691 = vrot.slane %v2665, 3
      %v2692 = vsel %vm553, %v2691, %v2690
      %v2693 = vrot.slane %v2666, 2
      %v2694 = vsel %vm556, %v2693, %v2692
      %v2695 = vrot.slane %v2667, 1
      %v2696 = vsel %vm559, %v2695, %v2694
      %2697 = vrot.lane.b32.xlu0 %v2696, 32
      %v2698 = vpop.permute.xlu0 %2697
      %v2700 = vsel %vm2674, %v2698, %v2273
      %v2709 = vrot.slane %v2613, 7
      %v2710 = vsel %vm541, %v2709, %v2612
      %v2711 = vrot.slane %v2614, 6
      %v2712 = vsel %vm544, %v2711, %v2710
      %v2713 = vrot.slane %v2615, 5
      %v2714 = vsel %vm547, %v2713, %v2712
      %v2715 = vrot.slane %v2616, 4
      %v2716 = vsel %vm550, %v2715, %v2714
      %v2717 = vrot.slane %v2617, 3
      %v2718 = vsel %vm553, %v2717, %v2716
      %v2719 = vrot.slane %v2618, 2
      %v2720 = vsel %vm556, %v2719, %v2718
      %v2721 = vrot.slane %v2619, 1
      %v2722 = vsel %vm559, %v2721, %v2720
      %2723 = vrot.lane.b32.xlu0 %v2722, 96
      %v2724 = vpop.permute.xlu0 %2723
      %v2726 = vsel %vm2674, %v2724, %v2299
      %v2727 = vsel %vm2674, %v2698, 0.0
      %v2729 = vcombine.high %v2727, %v2727
      %v2731 = vunpack.c.l.s4 1966171168
      %v2732 = vunpack.c.0.s8 %v2731
      %v2733 = vlaneseq
      %v2734 = vshrl.u32 %v2733, 7
      %v2735 = vsub.s32 %v2732, %v2734
      %v2736 = vrot.slane %v2727, %v2735
      %v2738 = vunpack.c.l.s4 1966171168
      %v2739 = vunpack.c.0.s8 %v2738
      %v2740 = vlaneseq
      %v2741 = vshrl.u32 %v2740, 7
      %v2742 = vsub.s32 %v2739, %v2741
      %v2743 = vrot.slane %v2729, %v2742
      %v2744 = vcombine.high %v2736, %v2736
      %v2745 = vcombine.high %v2743, %v2743
      %v2747 = vunpack.c.l.s4 1966171168
      %v2748 = vunpack.c.0.s8 %v2747
      %v2749 = vlaneseq
      %v2750 = vshrl.u32 %v2749, 7
      %v2751 = vsub.s32 %v2748, %v2750
      %v2752 = vrot.slane %v2736, %v2751
      %v2754 = vunpack.c.l.s4 1966171168
      %v2755 = vunpack.c.0.s8 %v2754
      %v2756 = vlaneseq
      %v2757 = vshrl.u32 %v2756, 7
      %v2758 = vsub.s32 %v2755, %v2757
      %v2759 = vrot.slane %v2743, %v2758
      %v2761 = vunpack.c.l.s4 1966171168
      %v2762 = vunpack.c.0.s8 %v2761
      %v2763 = vlaneseq
      %v2764 = vshrl.u32 %v2763, 7
      %v2765 = vsub.s32 %v2762, %v2764
      %v2766 = vrot.slane %v2744, %v2765
      %v2768 = vunpack.c.l.s4 1966171168
      %v2769 = vunpack.c.0.s8 %v2768
      %v2770 = vlaneseq
      %v2771 = vshrl.u32 %v2770, 7
      %v2772 = vsub.s32 %v2769, %v2771
      %v2773 = vrot.slane %v2745, %v2772
      %v2774 = vcombine.high %v2752, %v2752
      %v2775 = vcombine.high %v2759, %v2759
      %v2776 = vcombine.high %v2766, %v2766
      %v2777 = vcombine.high %v2773, %v2773
      %2786 = vst.msk [vmem:[#allocation8 + $0x5] sm:$0x1] %vm650, %v2752
      %2787 = vst.msk [vmem:[#allocation8 + $0xd] sm:$0x1] %vm650, %v2766
      %2788 = vst.msk [vmem:[#allocation8 + $0x15] sm:$0x1] %vm650, %v2774
      %2789 = vst.msk [vmem:[#allocation8 + $0x1d] sm:$0x1] %vm650, %v2776
      %2790 = vst.msk [vmem:[#allocation8 + $0x25] sm:$0x1] %vm650, %v2759
      %2791 = vst.msk [vmem:[#allocation8 + $0x2d] sm:$0x1] %vm650, %v2773
      %2792 = vst.msk [vmem:[#allocation8 + $0x35] sm:$0x1] %vm650, %v2775
      %2793 = vst.msk [vmem:[#allocation8 + $0x3d] sm:$0x1] %vm650, %v2777
      %s2794 = sadd.s32 %s42, 6
      %v2795 = vld [vmem:[#allocation2 + $0x6] sm:$0x1]
      %v2796 = vld [vmem:[#allocation2 + $0xe] sm:$0x1]
      %v2797 = vld [vmem:[#allocation2 + $0x16] sm:$0x1]
      %v2798 = vld [vmem:[#allocation2 + $0x1e] sm:$0x1]
      %v2799 = vld [vmem:[#allocation2 + $0x26] sm:$0x1]
      %v2800 = vld [vmem:[#allocation2 + $0x2e] sm:$0x1]
      %v2801 = vld [vmem:[#allocation2 + $0x36] sm:$0x1]
      %v2802 = vld [vmem:[#allocation2 + $0x3e] sm:$0x1]
      %v2803 = vpack.c.bf16 %v2700, %v2700
      %v2805 = vsel %vm233, %v2803, 0
      %2807 = vmatprep.subr.bf16.mxu0 0
      %2808 = vmatpush1.bf16.msra.mxu0 %v229
      %2809 = vmatprep.subr.bf16.mxu0 0
      %2810 = vmatpush1.bf16.msra.mxu0 %v230
      %2811 = vmatprep.subr.bf16.mxu0 0
      %2812 = vmatpush1.bf16.msra.mxu0 0
      %2813 = vmatprep.subr.bf16.mxu0 0
      %2814 = vmatpush1.bf16.msra.mxu0 0
      %2815 = vmatprep.subr.bf16.mxu0 0
      %2816 = vmatpush1.bf16.msra.mxu0 0
      %2817 = vmatprep.subr.bf16.mxu0 0
      %2818 = vmatpush1.bf16.msra.mxu0 0
      %2819 = vmatprep.subr.bf16.mxu0 0
      %2820 = vmatpush1.bf16.msra.mxu0 0
      %2821 = vmatprep.subr.bf16.mxu0 0
      %2822 = vmatpush1.bf16.msra.mxu0 0
      %2823 = vmatprep.subr.bf16.mxu0 0
      %2824 = vmatpush1.bf16.msra.mxu0 0
      %2825 = vmatprep.subr.bf16.mxu0 0
      %2826 = vmatpush1.bf16.msra.mxu0 0
      %2827 = vmatprep.subr.bf16.mxu0 0
      %2828 = vmatpush1.bf16.msra.mxu0 0
      %2829 = vmatprep.subr.bf16.mxu0 0
      %2830 = vmatpush1.bf16.msra.mxu0 0
      %2831 = vmatprep.subr.bf16.mxu0 0
      %2832 = vmatpush1.bf16.msra.mxu0 0
      %2833 = vmatprep.subr.bf16.mxu0 0
      %2834 = vmatpush1.bf16.msra.mxu0 0
      %2835 = vmatprep.subr.bf16.mxu0 0
      %2836 = vmatpush1.bf16.msra.mxu0 0
      %2837 = vmatprep.subr.bf16.mxu0 0
      %2838 = vmatpush1.bf16.msra.mxu0 0
      %2839 = vmatprep.mubr.bf16.mxu0 0
      %2840 = vmatmul.mubr.bf16.gmra.mrb[0].mxu0 %v2805
      %v2841 = vpop.f32.mrb[0].mxu0
      %v2842 = vadd.f32 0.0, %v2841
      %v2843 = vpop.f32.mrb[0].mxu0
      %v2844 = vpop.f32.mrb[0].mxu0
      %v2845 = vpop.f32.mrb[0].mxu0
      %2846 = vdwg.mxu0
      %v2848 = vrot.slane %v2842, 1
      %v2849 = vrot.slane %v2842, 2
      %v2850 = vrot.slane %v2842, 3
      %v2851 = vrot.slane %v2842, 4
      %v2852 = vrot.slane %v2842, 5
      %v2853 = vrot.slane %v2842, 6
      %v2854 = vrot.slane %v2842, 7
      %v2863 = vadd.f32 %v2795, %v2842
      %v2864 = vadd.f32 %v2796, %v2848
      %v2865 = vadd.f32 %v2797, %v2849
      %v2866 = vadd.f32 %v2798, %v2850
      %v2867 = vadd.f32 %v2799, %v2851
      %v2868 = vadd.f32 %v2800, %v2852
      %v2869 = vadd.f32 %v2801, %v2853
      %v2870 = vadd.f32 %v2802, %v2854
      %v2871 = vxor.u32 %v2863, 2147483648
      %v2872 = vxor.u32 %v2864, 2147483648
      %v2873 = vxor.u32 %v2865, 2147483648
      %v2874 = vxor.u32 %v2866, 2147483648
      %v2875 = vxor.u32 %v2867, 2147483648
      %v2876 = vxor.u32 %v2868, 2147483648
      %v2877 = vxor.u32 %v2869, 2147483648
      %v2878 = vxor.u32 %v2870, 2147483648
      %v2879 = vmul.f32 %v2871, 1.442695
      %v2880 = vpow.pop %v2879
      %v2881 = vmul.f32 %v2872, 1.442695
      %v2882 = vpow.pop %v2881
      %v2883 = vmul.f32 %v2873, 1.442695
      %v2884 = vpow.pop %v2883
      %v2885 = vmul.f32 %v2874, 1.442695
      %v2886 = vpow.pop %v2885
      %v2887 = vmul.f32 %v2875, 1.442695
      %v2888 = vpow.pop %v2887
      %v2889 = vmul.f32 %v2876, 1.442695
      %v2890 = vpow.pop %v2889
      %v2891 = vmul.f32 %v2877, 1.442695
      %v2892 = vpow.pop %v2891
      %v2893 = vmul.f32 %v2878, 1.442695
      %v2894 = vpow.pop %v2893
      %v2895 = vadd.f32 %v2880, 1.0
      %v2896 = vadd.f32 %v2882, 1.0
      %v2897 = vadd.f32 %v2884, 1.0
      %v2898 = vadd.f32 %v2886, 1.0
      %v2899 = vadd.f32 %v2888, 1.0
      %v2900 = vadd.f32 %v2890, 1.0
      %v2901 = vadd.f32 %v2892, 1.0
      %v2902 = vadd.f32 %v2894, 1.0
      %v2903 = vrcp.pop %v2895
      %v2904 = vmul.f32 1.0, %v2903
      %v2905 = vrcp.pop %v2896
      %v2906 = vmul.f32 1.0, %v2905
      %v2907 = vrcp.pop %v2897
      %v2908 = vmul.f32 1.0, %v2907
      %v2909 = vrcp.pop %v2898
      %v2910 = vmul.f32 1.0, %v2909
      %v2911 = vrcp.pop %v2899
      %v2912 = vmul.f32 1.0, %v2911
      %v2913 = vrcp.pop %v2900
      %v2914 = vmul.f32 1.0, %v2913
      %v2915 = vrcp.pop %v2901
      %v2916 = vmul.f32 1.0, %v2915
      %v2917 = vrcp.pop %v2902
      %v2918 = vmul.f32 1.0, %v2917
      %v2919 = vtanh.pop %v2863
      %v2920 = vtanh.pop %v2864
      %v2921 = vtanh.pop %v2865
      %v2922 = vtanh.pop %v2866
      %v2923 = vtanh.pop %v2867
      %v2924 = vtanh.pop %v2868
      %v2925 = vtanh.pop %v2869
      %v2926 = vtanh.pop %v2870
      %v2928 = vrot.slane %v2726, 1
      %v2929 = vrot.slane %v2726, 2
      %v2930 = vrot.slane %v2726, 3
      %v2931 = vrot.slane %v2726, 4
      %v2932 = vrot.slane %v2726, 5
      %v2933 = vrot.slane %v2726, 6
      %v2934 = vrot.slane %v2726, 7
      %2935 = vrot.lane.b32.xlu0 %v2726, 32
      %v2936 = vpop.permute.xlu0 %2935
      %2937 = vrot.lane.b32.xlu0 %v2928, 32
      %v2938 = vpop.permute.xlu0 %2937
      %2939 = vrot.lane.b32.xlu0 %v2929, 32
      %v2940 = vpop.permute.xlu0 %2939
      %2941 = vrot.lane.b32.xlu0 %v2930, 32
      %v2942 = vpop.permute.xlu0 %2941
      %2943 = vrot.lane.b32.xlu0 %v2931, 32
      %v2944 = vpop.permute.xlu0 %2943
      %2945 = vrot.lane.b32.xlu0 %v2932, 32
      %v2946 = vpop.permute.xlu0 %2945
      %2947 = vrot.lane.b32.xlu0 %v2933, 32
      %v2948 = vpop.permute.xlu0 %2947
      %2949 = vrot.lane.b32.xlu0 %v2934, 32
      %v2950 = vpop.permute.xlu0 %2949
      %v2959 = vmul.f32 %v2904, %v2936
      %v2960 = vmul.f32 %v2906, %v2938
      %v2961 = vmul.f32 %v2908, %v2940
      %v2962 = vmul.f32 %v2910, %v2942
      %v2963 = vmul.f32 %v2912, %v2944
      %v2964 = vmul.f32 %v2914, %v2946
      %v2965 = vmul.f32 %v2916, %v2948
      %v2966 = vmul.f32 %v2918, %v2950
      %2975 = vrot.lane.b32.xlu0 %v2919, 64
      %v2976 = vpop.permute.xlu0 %2975
      %2977 = vrot.lane.b32.xlu0 %v2920, 64
      %v2978 = vpop.permute.xlu0 %2977
      %2979 = vrot.lane.b32.xlu0 %v2921, 64
      %v2980 = vpop.permute.xlu0 %2979
      %2981 = vrot.lane.b32.xlu0 %v2922, 64
      %v2982 = vpop.permute.xlu0 %2981
      %2983 = vrot.lane.b32.xlu0 %v2923, 64
      %v2984 = vpop.permute.xlu0 %2983
      %2985 = vrot.lane.b32.xlu0 %v2924, 64
      %v2986 = vpop.permute.xlu0 %2985
      %2987 = vrot.lane.b32.xlu0 %v2925, 64
      %v2988 = vpop.permute.xlu0 %2987
      %2989 = vrot.lane.b32.xlu0 %v2926, 64
      %v2990 = vpop.permute.xlu0 %2989
      %v2999 = vmul.f32 %v2904, %v2976
      %v3000 = vmul.f32 %v2906, %v2978
      %v3001 = vmul.f32 %v2908, %v2980
      %v3002 = vmul.f32 %v2910, %v2982
      %v3003 = vmul.f32 %v2912, %v2984
      %v3004 = vmul.f32 %v2914, %v2986
      %v3005 = vmul.f32 %v2916, %v2988
      %v3006 = vmul.f32 %v2918, %v2990
      %3015 = vrot.lane.b32.xlu0 %v2999, 32
      %v3016 = vpop.permute.xlu0 %3015
      %3017 = vrot.lane.b32.xlu0 %v3000, 32
      %v3018 = vpop.permute.xlu0 %3017
      %3019 = vrot.lane.b32.xlu0 %v3001, 32
      %v3020 = vpop.permute.xlu0 %3019
      %3021 = vrot.lane.b32.xlu0 %v3002, 32
      %v3022 = vpop.permute.xlu0 %3021
      %3023 = vrot.lane.b32.xlu0 %v3003, 32
      %v3024 = vpop.permute.xlu0 %3023
      %3025 = vrot.lane.b32.xlu0 %v3004, 32
      %v3026 = vpop.permute.xlu0 %3025
      %3027 = vrot.lane.b32.xlu0 %v3005, 32
      %v3028 = vpop.permute.xlu0 %3027
      %3029 = vrot.lane.b32.xlu0 %v3006, 32
      %v3030 = vpop.permute.xlu0 %3029
      %v3039 = vadd.f32 %v2959, %v3016
      %v3040 = vadd.f32 %v2960, %v3018
      %v3041 = vadd.f32 %v2961, %v3020
      %v3042 = vadd.f32 %v2962, %v3022
      %v3043 = vadd.f32 %v2963, %v3024
      %v3044 = vadd.f32 %v2964, %v3026
      %v3045 = vadd.f32 %v2965, %v3028
      %v3046 = vadd.f32 %v2966, %v3030
      %v3047 = vtanh.pop %v3039
      %v3048 = vtanh.pop %v3040
      %v3049 = vtanh.pop %v3041
      %v3050 = vtanh.pop %v3042
      %v3051 = vtanh.pop %v3043
      %v3052 = vtanh.pop %v3044
      %v3053 = vtanh.pop %v3045
      %v3054 = vtanh.pop %v3046
      %3063 = vrot.lane.b32.xlu0 %v3047, 64
      %v3064 = vpop.permute.xlu0 %3063
      %3065 = vrot.lane.b32.xlu0 %v3048, 64
      %v3066 = vpop.permute.xlu0 %3065
      %3067 = vrot.lane.b32.xlu0 %v3049, 64
      %v3068 = vpop.permute.xlu0 %3067
      %3069 = vrot.lane.b32.xlu0 %v3050, 64
      %v3070 = vpop.permute.xlu0 %3069
      %3071 = vrot.lane.b32.xlu0 %v3051, 64
      %v3072 = vpop.permute.xlu0 %3071
      %3073 = vrot.lane.b32.xlu0 %v3052, 64
      %v3074 = vpop.permute.xlu0 %3073
      %3075 = vrot.lane.b32.xlu0 %v3053, 64
      %v3076 = vpop.permute.xlu0 %3075
      %3077 = vrot.lane.b32.xlu0 %v3054, 64
      %v3078 = vpop.permute.xlu0 %3077
      %v3087 = vmul.f32 %v2904, %v3064
      %v3088 = vmul.f32 %v2906, %v3066
      %v3089 = vmul.f32 %v2908, %v3068
      %v3090 = vmul.f32 %v2910, %v3070
      %v3091 = vmul.f32 %v2912, %v3072
      %v3092 = vmul.f32 %v2914, %v3074
      %v3093 = vmul.f32 %v2916, %v3076
      %v3094 = vmul.f32 %v2918, %v3078
      %v3095 = vstv %s2794
      %vm3096 = vcmp.gt.s32.totalorder %v205, %v3095
      %v3097 = vsel %vm3096, 1, 0
      %3098 = vset.pattern.permute.xlu0 0
      %3099 = vperm.xlu0 %3098, %v3097
      %v3100 = vpop.permute.xlu0 %3099
      %vm3101 = vcmp.eq.s32.totalorder %v3100, 1
      %v3110 = vrot.slane %v3088, 7
      %v3111 = vsel %vm541, %v3110, %v3087
      %v3112 = vrot.slane %v3089, 6
      %v3113 = vsel %vm544, %v3112, %v3111
      %v3114 = vrot.slane %v3090, 5
      %v3115 = vsel %vm547, %v3114, %v3113
      %v3116 = vrot.slane %v3091, 4
      %v3117 = vsel %vm550, %v3116, %v3115
      %v3118 = vrot.slane %v3092, 3
      %v3119 = vsel %vm553, %v3118, %v3117
      %v3120 = vrot.slane %v3093, 2
      %v3121 = vsel %vm556, %v3120, %v3119
      %v3122 = vrot.slane %v3094, 1
      %v3123 = vsel %vm559, %v3122, %v3121
      %3124 = vrot.lane.b32.xlu0 %v3123, 32
      %v3125 = vpop.permute.xlu0 %3124
      %v3127 = vsel %vm3101, %v3125, %v2700
      %v3136 = vrot.slane %v3040, 7
      %v3137 = vsel %vm541, %v3136, %v3039
      %v3138 = vrot.slane %v3041, 6
      %v3139 = vsel %vm544, %v3138, %v3137
      %v3140 = vrot.slane %v3042, 5
      %v3141 = vsel %vm547, %v3140, %v3139
      %v3142 = vrot.slane %v3043, 4
      %v3143 = vsel %vm550, %v3142, %v3141
      %v3144 = vrot.slane %v3044, 3
      %v3145 = vsel %vm553, %v3144, %v3143
      %v3146 = vrot.slane %v3045, 2
      %v3147 = vsel %vm556, %v3146, %v3145
      %v3148 = vrot.slane %v3046, 1
      %v3149 = vsel %vm559, %v3148, %v3147
      %3150 = vrot.lane.b32.xlu0 %v3149, 96
      %v3151 = vpop.permute.xlu0 %3150
      %v3153 = vsel %vm3101, %v3151, %v2726
      %v3154 = vsel %vm3101, %v3125, 0.0
      %v3156 = vcombine.high %v3154, %v3154
      %v3158 = vunpack.c.l.s4 1966171168
      %v3159 = vunpack.c.0.s8 %v3158
      %v3160 = vlaneseq
      %v3161 = vshrl.u32 %v3160, 7
      %v3162 = vsub.s32 %v3159, %v3161
      %v3163 = vrot.slane %v3154, %v3162
      %v3165 = vunpack.c.l.s4 1966171168
      %v3166 = vunpack.c.0.s8 %v3165
      %v3167 = vlaneseq
      %v3168 = vshrl.u32 %v3167, 7
      %v3169 = vsub.s32 %v3166, %v3168
      %v3170 = vrot.slane %v3156, %v3169
      %v3171 = vcombine.high %v3163, %v3163
      %v3172 = vcombine.high %v3170, %v3170
      %v3174 = vunpack.c.l.s4 1966171168
      %v3175 = vunpack.c.0.s8 %v3174
      %v3176 = vlaneseq
      %v3177 = vshrl.u32 %v3176, 7
      %v3178 = vsub.s32 %v3175, %v3177
      %v3179 = vrot.slane %v3163, %v3178
      %v3181 = vunpack.c.l.s4 1966171168
      %v3182 = vunpack.c.0.s8 %v3181
      %v3183 = vlaneseq
      %v3184 = vshrl.u32 %v3183, 7
      %v3185 = vsub.s32 %v3182, %v3184
      %v3186 = vrot.slane %v3170, %v3185
      %v3188 = vunpack.c.l.s4 1966171168
      %v3189 = vunpack.c.0.s8 %v3188
      %v3190 = vlaneseq
      %v3191 = vshrl.u32 %v3190, 7
      %v3192 = vsub.s32 %v3189, %v3191
      %v3193 = vrot.slane %v3171, %v3192
      %v3195 = vunpack.c.l.s4 1966171168
      %v3196 = vunpack.c.0.s8 %v3195
      %v3197 = vlaneseq
      %v3198 = vshrl.u32 %v3197, 7
      %v3199 = vsub.s32 %v3196, %v3198
      %v3200 = vrot.slane %v3172, %v3199
      %v3201 = vcombine.high %v3179, %v3179
      %v3202 = vcombine.high %v3186, %v3186
      %v3203 = vcombine.high %v3193, %v3193
      %v3204 = vcombine.high %v3200, %v3200
      %3213 = vst.msk [vmem:[#allocation8 + $0x6] sm:$0x1] %vm650, %v3179
      %3214 = vst.msk [vmem:[#allocation8 + $0xe] sm:$0x1] %vm650, %v3193
      %3215 = vst.msk [vmem:[#allocation8 + $0x16] sm:$0x1] %vm650, %v3201
      %3216 = vst.msk [vmem:[#allocation8 + $0x1e] sm:$0x1] %vm650, %v3203
      %3217 = vst.msk [vmem:[#allocation8 + $0x26] sm:$0x1] %vm650, %v3186
      %3218 = vst.msk [vmem:[#allocation8 + $0x2e] sm:$0x1] %vm650, %v3200
      %3219 = vst.msk [vmem:[#allocation8 + $0x36] sm:$0x1] %vm650, %v3202
      %3220 = vst.msk [vmem:[#allocation8 + $0x3e] sm:$0x1] %vm650, %v3204
      %s3221 = sadd.s32 %s42, 7
      %v3222 = vld [vmem:[#allocation2 + $0x7] sm:$0x1]
      %v3223 = vld [vmem:[#allocation2 + $0xf] sm:$0x1]
      %v3224 = vld [vmem:[#allocation2 + $0x17] sm:$0x1]
      %v3225 = vld [vmem:[#allocation2 + $0x1f] sm:$0x1]
      %v3226 = vld [vmem:[#allocation2 + $0x27] sm:$0x1]
      %v3227 = vld [vmem:[#allocation2 + $0x2f] sm:$0x1]
      %v3228 = vld [vmem:[#allocation2 + $0x37] sm:$0x1]
      %v3229 = vld [vmem:[#allocation2 + $0x3f] sm:$0x1]
      %v3230 = vpack.c.bf16 %v3127, %v3127
      %v3232 = vsel %vm233, %v3230, 0
      %3234 = vmatprep.subr.bf16.mxu0 0
      %3235 = vmatpush1.bf16.msra.mxu0 %v229
      %3236 = vmatprep.subr.bf16.mxu0 0
      %3237 = vmatpush1.bf16.msra.mxu0 %v230
      %3238 = vmatprep.subr.bf16.mxu0 0
      %3239 = vmatpush1.bf16.msra.mxu0 0
      %3240 = vmatprep.subr.bf16.mxu0 0
      %3241 = vmatpush1.bf16.msra.mxu0 0
      %3242 = vmatprep.subr.bf16.mxu0 0
      %3243 = vmatpush1.bf16.msra.mxu0 0
      %3244 = vmatprep.subr.bf16.mxu0 0
      %3245 = vmatpush1.bf16.msra.mxu0 0
      %3246 = vmatprep.subr.bf16.mxu0 0
      %3247 = vmatpush1.bf16.msra.mxu0 0
      %3248 = vmatprep.subr.bf16.mxu0 0
      %3249 = vmatpush1.bf16.msra.mxu0 0
      %3250 = vmatprep.subr.bf16.mxu0 0
      %3251 = vmatpush1.bf16.msra.mxu0 0
      %3252 = vmatprep.subr.bf16.mxu0 0
      %3253 = vmatpush1.bf16.msra.mxu0 0
      %3254 = vmatprep.subr.bf16.mxu0 0
      %3255 = vmatpush1.bf16.msra.mxu0 0
      %3256 = vmatprep.subr.bf16.mxu0 0
      %3257 = vmatpush1.bf16.msra.mxu0 0
      %3258 = vmatprep.subr.bf16.mxu0 0
      %3259 = vmatpush1.bf16.msra.mxu0 0
      %3260 = vmatprep.subr.bf16.mxu0 0
      %3261 = vmatpush1.bf16.msra.mxu0 0
      %3262 = vmatprep.subr.bf16.mxu0 0
      %3263 = vmatpush1.bf16.msra.mxu0 0
      %3264 = vmatprep.subr.bf16.mxu0 0
      %3265 = vmatpush1.bf16.msra.mxu0 0
      %3266 = vmatprep.mubr.bf16.mxu0 0
      %3267 = vmatmul.mubr.bf16.gmra.mrb[0].mxu0 %v3232
      %v3268 = vpop.f32.mrb[0].mxu0
      %v3269 = vadd.f32 0.0, %v3268
      %v3270 = vpop.f32.mrb[0].mxu0
      %v3271 = vpop.f32.mrb[0].mxu0
      %v3272 = vpop.f32.mrb[0].mxu0
      %3273 = vdwg.mxu0
      %v3275 = vrot.slane %v3269, 1
      %v3276 = vrot.slane %v3269, 2
      %v3277 = vrot.slane %v3269, 3
      %v3278 = vrot.slane %v3269, 4
      %v3279 = vrot.slane %v3269, 5
      %v3280 = vrot.slane %v3269, 6
      %v3281 = vrot.slane %v3269, 7
      %v3290 = vadd.f32 %v3222, %v3269
      %v3291 = vadd.f32 %v3223, %v3275
      %v3292 = vadd.f32 %v3224, %v3276
      %v3293 = vadd.f32 %v3225, %v3277
      %v3294 = vadd.f32 %v3226, %v3278
      %v3295 = vadd.f32 %v3227, %v3279
      %v3296 = vadd.f32 %v3228, %v3280
      %v3297 = vadd.f32 %v3229, %v3281
      %v3298 = vxor.u32 %v3290, 2147483648
      %v3299 = vxor.u32 %v3291, 2147483648
      %v3300 = vxor.u32 %v3292, 2147483648
      %v3301 = vxor.u32 %v3293, 2147483648
      %v3302 = vxor.u32 %v3294, 2147483648
      %v3303 = vxor.u32 %v3295, 2147483648
      %v3304 = vxor.u32 %v3296, 2147483648
      %v3305 = vxor.u32 %v3297, 2147483648
      %v3306 = vmul.f32 %v3298, 1.442695
      %v3307 = vpow.pop %v3306
      %v3308 = vmul.f32 %v3299, 1.442695
      %v3309 = vpow.pop %v3308
      %v3310 = vmul.f32 %v3300, 1.442695
      %v3311 = vpow.pop %v3310
      %v3312 = vmul.f32 %v3301, 1.442695
      %v3313 = vpow.pop %v3312
      %v3314 = vmul.f32 %v3302, 1.442695
      %v3315 = vpow.pop %v3314
      %v3316 = vmul.f32 %v3303, 1.442695
      %v3317 = vpow.pop %v3316
      %v3318 = vmul.f32 %v3304, 1.442695
      %v3319 = vpow.pop %v3318
      %v3320 = vmul.f32 %v3305, 1.442695
      %v3321 = vpow.pop %v3320
      %v3322 = vadd.f32 %v3307, 1.0
      %v3323 = vadd.f32 %v3309, 1.0
      %v3324 = vadd.f32 %v3311, 1.0
      %v3325 = vadd.f32 %v3313, 1.0
      %v3326 = vadd.f32 %v3315, 1.0
      %v3327 = vadd.f32 %v3317, 1.0
      %v3328 = vadd.f32 %v3319, 1.0
      %v3329 = vadd.f32 %v3321, 1.0
      %v3330 = vrcp.pop %v3322
      %v3331 = vmul.f32 1.0, %v3330
      %v3332 = vrcp.pop %v3323
      %v3333 = vmul.f32 1.0, %v3332
      %v3334 = vrcp.pop %v3324
      %v3335 = vmul.f32 1.0, %v3334
      %v3336 = vrcp.pop %v3325
      %v3337 = vmul.f32 1.0, %v3336
      %v3338 = vrcp.pop %v3326
      %v3339 = vmul.f32 1.0, %v3338
      %v3340 = vrcp.pop %v3327
      %v3341 = vmul.f32 1.0, %v3340
      %v3342 = vrcp.pop %v3328
      %v3343 = vmul.f32 1.0, %v3342
      %v3344 = vrcp.pop %v3329
      %v3345 = vmul.f32 1.0, %v3344
      %v3346 = vtanh.pop %v3290
      %v3347 = vtanh.pop %v3291
      %v3348 = vtanh.pop %v3292
      %v3349 = vtanh.pop %v3293
      %v3350 = vtanh.pop %v3294
      %v3351 = vtanh.pop %v3295
      %v3352 = vtanh.pop %v3296
      %v3353 = vtanh.pop %v3297
      %v3355 = vrot.slane %v3153, 1
      %v3356 = vrot.slane %v3153, 2
      %v3357 = vrot.slane %v3153, 3
      %v3358 = vrot.slane %v3153, 4
      %v3359 = vrot.slane %v3153, 5
      %v3360 = vrot.slane %v3153, 6
      %v3361 = vrot.slane %v3153, 7
      %3362 = vrot.lane.b32.xlu0 %v3153, 32
      %v3363 = vpop.permute.xlu0 %3362
      %3364 = vrot.lane.b32.xlu0 %v3355, 32
      %v3365 = vpop.permute.xlu0 %3364
      %3366 = vrot.lane.b32.xlu0 %v3356, 32
      %v3367 = vpop.permute.xlu0 %3366
      %3368 = vrot.lane.b32.xlu0 %v3357, 32
      %v3369 = vpop.permute.xlu0 %3368
      %3370 = vrot.lane.b32.xlu0 %v3358, 32
      %v3371 = vpop.permute.xlu0 %3370
      %3372 = vrot.lane.b32.xlu0 %v3359, 32
      %v3373 = vpop.permute.xlu0 %3372
      %3374 = vrot.lane.b32.xlu0 %v3360, 32
      %v3375 = vpop.permute.xlu0 %3374
      %3376 = vrot.lane.b32.xlu0 %v3361, 32
      %v3377 = vpop.permute.xlu0 %3376
      %v3386 = vmul.f32 %v3331, %v3363
      %v3387 = vmul.f32 %v3333, %v3365
      %v3388 = vmul.f32 %v3335, %v3367
      %v3389 = vmul.f32 %v3337, %v3369
      %v3390 = vmul.f32 %v3339, %v3371
      %v3391 = vmul.f32 %v3341, %v3373
      %v3392 = vmul.f32 %v3343, %v3375
      %v3393 = vmul.f32 %v3345, %v3377
      %3402 = vrot.lane.b32.xlu0 %v3346, 64
      %v3403 = vpop.permute.xlu0 %3402
      %3404 = vrot.lane.b32.xlu0 %v3347, 64
      %v3405 = vpop.permute.xlu0 %3404
      %3406 = vrot.lane.b32.xlu0 %v3348, 64
      %v3407 = vpop.permute.xlu0 %3406
      %3408 = vrot.lane.b32.xlu0 %v3349, 64
      %v3409 = vpop.permute.xlu0 %3408
      %3410 = vrot.lane.b32.xlu0 %v3350, 64
      %v3411 = vpop.permute.xlu0 %3410
      %3412 = vrot.lane.b32.xlu0 %v3351, 64
      %v3413 = vpop.permute.xlu0 %3412
      %3414 = vrot.lane.b32.xlu0 %v3352, 64
      %v3415 = vpop.permute.xlu0 %3414
      %3416 = vrot.lane.b32.xlu0 %v3353, 64
      %v3417 = vpop.permute.xlu0 %3416
      %v3426 = vmul.f32 %v3331, %v3403
      %v3427 = vmul.f32 %v3333, %v3405
      %v3428 = vmul.f32 %v3335, %v3407
      %v3429 = vmul.f32 %v3337, %v3409
      %v3430 = vmul.f32 %v3339, %v3411
      %v3431 = vmul.f32 %v3341, %v3413
      %v3432 = vmul.f32 %v3343, %v3415
      %v3433 = vmul.f32 %v3345, %v3417
      %3442 = vrot.lane.b32.xlu0 %v3426, 32
      %v3443 = vpop.permute.xlu0 %3442
      %3444 = vrot.lane.b32.xlu0 %v3427, 32
      %v3445 = vpop.permute.xlu0 %3444
      %3446 = vrot.lane.b32.xlu0 %v3428, 32
      %v3447 = vpop.permute.xlu0 %3446
      %3448 = vrot.lane.b32.xlu0 %v3429, 32
      %v3449 = vpop.permute.xlu0 %3448
      %3450 = vrot.lane.b32.xlu0 %v3430, 32
      %v3451 = vpop.permute.xlu0 %3450
      %3452 = vrot.lane.b32.xlu0 %v3431, 32
      %v3453 = vpop.permute.xlu0 %3452
      %3454 = vrot.lane.b32.xlu0 %v3432, 32
      %v3455 = vpop.permute.xlu0 %3454
      %3456 = vrot.lane.b32.xlu0 %v3433, 32
      %v3457 = vpop.permute.xlu0 %3456
      %v3466 = vadd.f32 %v3386, %v3443
      %v3467 = vadd.f32 %v3387, %v3445
      %v3468 = vadd.f32 %v3388, %v3447
      %v3469 = vadd.f32 %v3389, %v3449
      %v3470 = vadd.f32 %v3390, %v3451
      %v3471 = vadd.f32 %v3391, %v3453
      %v3472 = vadd.f32 %v3392, %v3455
      %v3473 = vadd.f32 %v3393, %v3457
      %v3474 = vtanh.pop %v3466
      %v3475 = vtanh.pop %v3467
      %v3476 = vtanh.pop %v3468
      %v3477 = vtanh.pop %v3469
      %v3478 = vtanh.pop %v3470
      %v3479 = vtanh.pop %v3471
      %v3480 = vtanh.pop %v3472
      %v3481 = vtanh.pop %v3473
      %3490 = vrot.lane.b32.xlu0 %v3474, 64
      %v3491 = vpop.permute.xlu0 %3490
      %3492 = vrot.lane.b32.xlu0 %v3475, 64
      %v3493 = vpop.permute.xlu0 %3492
      %3494 = vrot.lane.b32.xlu0 %v3476, 64
      %v3495 = vpop.permute.xlu0 %3494
      %3496 = vrot.lane.b32.xlu0 %v3477, 64
      %v3497 = vpop.permute.xlu0 %3496
      %3498 = vrot.lane.b32.xlu0 %v3478, 64
      %v3499 = vpop.permute.xlu0 %3498
      %3500 = vrot.lane.b32.xlu0 %v3479, 64
      %v3501 = vpop.permute.xlu0 %3500
      %3502 = vrot.lane.b32.xlu0 %v3480, 64
      %v3503 = vpop.permute.xlu0 %3502
      %3504 = vrot.lane.b32.xlu0 %v3481, 64
      %v3505 = vpop.permute.xlu0 %3504
      %v3514 = vmul.f32 %v3331, %v3491
      %v3515 = vmul.f32 %v3333, %v3493
      %v3516 = vmul.f32 %v3335, %v3495
      %v3517 = vmul.f32 %v3337, %v3497
      %v3518 = vmul.f32 %v3339, %v3499
      %v3519 = vmul.f32 %v3341, %v3501
      %v3520 = vmul.f32 %v3343, %v3503
      %v3521 = vmul.f32 %v3345, %v3505
      %v3522 = vstv %s3221
      %vm3523 = vcmp.gt.s32.totalorder %v205, %v3522
      %v3524 = vsel %vm3523, 1, 0
      %3525 = vset.pattern.permute.xlu0 0
      %3526 = vperm.xlu0 %3525, %v3524
      %v3527 = vpop.permute.xlu0 %3526
      %vm3528 = vcmp.eq.s32.totalorder %v3527, 1
      %v3537 = vrot.slane %v3515, 7
      %v3538 = vsel %vm541, %v3537, %v3514
      %v3539 = vrot.slane %v3516, 6
      %v3540 = vsel %vm544, %v3539, %v3538
      %v3541 = vrot.slane %v3517, 5
      %v3542 = vsel %vm547, %v3541, %v3540
      %v3543 = vrot.slane %v3518, 4
      %v3544 = vsel %vm550, %v3543, %v3542
      %v3545 = vrot.slane %v3519, 3
      %v3546 = vsel %vm553, %v3545, %v3544
      %v3547 = vrot.slane %v3520, 2
      %v3548 = vsel %vm556, %v3547, %v3546
      %v3549 = vrot.slane %v3521, 1
      %v3550 = vsel %vm559, %v3549, %v3548
      %3551 = vrot.lane.b32.xlu0 %v3550, 32
      %v3552 = vpop.permute.xlu0 %3551
      %v3554 = vsel %vm3528, %v3552, %v3127
      %v3563 = vrot.slane %v3467, 7
      %v3564 = vsel %vm541, %v3563, %v3466
      %v3565 = vrot.slane %v3468, 6
      %v3566 = vsel %vm544, %v3565, %v3564
      %v3567 = vrot.slane %v3469, 5
      %v3568 = vsel %vm547, %v3567, %v3566
      %v3569 = vrot.slane %v3470, 4
      %v3570 = vsel %vm550, %v3569, %v3568
      %v3571 = vrot.slane %v3471, 3
      %v3572 = vsel %vm553, %v3571, %v3570
      %v3573 = vrot.slane %v3472, 2
      %v3574 = vsel %vm556, %v3573, %v3572
      %v3575 = vrot.slane %v3473, 1
      %v3576 = vsel %vm559, %v3575, %v3574
      %3577 = vrot.lane.b32.xlu0 %v3576, 96
      %v3578 = vpop.permute.xlu0 %3577
      %v3580 = vsel %vm3528, %v3578, %v3153
      %v3581 = vsel %vm3528, %v3552, 0.0
      %v3583 = vcombine.high %v3581, %v3581
      %v3585 = vunpack.c.l.s4 1966171168
      %v3586 = vunpack.c.0.s8 %v3585
      %v3587 = vlaneseq
      %v3588 = vshrl.u32 %v3587, 7
      %v3589 = vsub.s32 %v3586, %v3588
      %v3590 = vrot.slane %v3581, %v3589
      %v3592 = vunpack.c.l.s4 1966171168
      %v3593 = vunpack.c.0.s8 %v3592
      %v3594 = vlaneseq
      %v3595 = vshrl.u32 %v3594, 7
      %v3596 = vsub.s32 %v3593, %v3595
      %v3597 = vrot.slane %v3583, %v3596
      %v3598 = vcombine.high %v3590, %v3590
      %v3599 = vcombine.high %v3597, %v3597
      %v3601 = vunpack.c.l.s4 1966171168
      %v3602 = vunpack.c.0.s8 %v3601
      %v3603 = vlaneseq
      %v3604 = vshrl.u32 %v3603, 7
      %v3605 = vsub.s32 %v3602, %v3604
      %v3606 = vrot.slane %v3590, %v3605
      %v3608 = vunpack.c.l.s4 1966171168
      %v3609 = vunpack.c.0.s8 %v3608
      %v3610 = vlaneseq
      %v3611 = vshrl.u32 %v3610, 7
      %v3612 = vsub.s32 %v3609, %v3611
      %v3613 = vrot.slane %v3597, %v3612
      %v3615 = vunpack.c.l.s4 1966171168
      %v3616 = vunpack.c.0.s8 %v3615
      %v3617 = vlaneseq
      %v3618 = vshrl.u32 %v3617, 7
      %v3619 = vsub.s32 %v3616, %v3618
      %v3620 = vrot.slane %v3598, %v3619
      %v3622 = vunpack.c.l.s4 1966171168
      %v3623 = vunpack.c.0.s8 %v3622
      %v3624 = vlaneseq
      %v3625 = vshrl.u32 %v3624, 7
      %v3626 = vsub.s32 %v3623, %v3625
      %v3627 = vrot.slane %v3599, %v3626
      %v3628 = vcombine.high %v3606, %v3606
      %v3629 = vcombine.high %v3613, %v3613
      %v3630 = vcombine.high %v3620, %v3620
      %v3631 = vcombine.high %v3627, %v3627
      %3640 = vst.msk [vmem:[#allocation8 + $0x7] sm:$0x1] %vm650, %v3606
      %3641 = vst.msk [vmem:[#allocation8 + $0xf] sm:$0x1] %vm650, %v3620
      %3642 = vst.msk [vmem:[#allocation8 + $0x17] sm:$0x1] %vm650, %v3628
      %3643 = vst.msk [vmem:[#allocation8 + $0x1f] sm:$0x1] %vm650, %v3630
      %3644 = vst.msk [vmem:[#allocation8 + $0x27] sm:$0x1] %vm650, %v3613
      %3645 = vst.msk [vmem:[#allocation8 + $0x2f] sm:$0x1] %vm650, %v3627
      %3646 = vst.msk [vmem:[#allocation8 + $0x37] sm:$0x1] %vm650, %v3629
      %3647 = vst.msk [vmem:[#allocation8 + $0x3f] sm:$0x1] %vm650, %v3631
      %3648 = vst.msk [vmem:[#allocation9] sm:$0xff] %vm233, %v3554
      %3649 = vst.msk [vmem:[#allocation11] sm:$0xff] %vm233, %v3580
    $region37: #{tpu_custom_call.1} parent=1 // pred_fallthru
      _
    // Predicated region
    $region38: #{tpu_custom_call.1} parent=1 // pred_check
      _
    $region39: #{tpu_custom_call.1} parent=1 // pred_check_branch
      %3651 = sbr.rel (0) target = $region41
    $region40: #{tpu_custom_call.1} parent=1 // pred_region
      %s3653 = ssub.s32 1024, 1024
      %3654 = vsyncadd [#allocation7], %s3653
      %s3655 = sshll.u32 [#allocation8], 4
      %s3656 = int_to_ptr.vmem [resolvable:$true] %s3655
      %3661 = dma.vmem_to_hbm [thread:$0]  %s3656, 1024, %s6, [#allocation7], 128, 128, 8
    $region41: #{tpu_custom_call.1} parent=1 // pred_fallthru
      _
    // Predicated region
    $region42: #{tpu_custom_call.1} parent=1 // pred_check
      _
    $region43: #{tpu_custom_call.1} parent=1 // pred_check_branch
      %3663 = sbr.rel (0) target = $region45
    $region44: #{tpu_custom_call.1} parent=1 // pred_region
      %s3665 = ssub.s32 128, 128
      %3666 = vsyncadd [#allocation10], %s3665
      %s3668 = sshll.u32 [#allocation9], 4
      %s3669 = int_to_ptr.vmem [resolvable:$true] %s3668
      %3671 = dma.vmem_to_hbm [thread:$0]  %s3669, 128, %s7, [#allocation10]
    $region45: #{tpu_custom_call.1} parent=1 // pred_fallthru
      _
    // Predicated region
    $region46: #{tpu_custom_call.1} parent=1 // pred_check
      _
    $region47: #{tpu_custom_call.1} parent=1 // pred_check_branch
      %3673 = sbr.rel (0) target = $region49
    $region48: #{tpu_custom_call.1} parent=1 // pred_region
      %s3675 = ssub.s32 128, 128
      %3676 = vsyncadd [#allocation10], %s3675
      %s3678 = sshll.u32 [#allocation11], 4
      %s3679 = int_to_ptr.vmem [resolvable:$true] %s3678
      %3681 = dma.vmem_to_hbm [thread:$0]  %s3679, 128, %s8, [#allocation10]
    $region49: #{tpu_custom_call.1} parent=1 // pred_fallthru
      _
    // Predicated region
    $region50: #{tpu_custom_call.1} parent=1 // pred_check
      _
    $region51: #{tpu_custom_call.1} parent=1 // pred_check_branch
      %3683 = sbr.rel (0) target = $region53
    $region52: #{tpu_custom_call.1} parent=1 // pred_region
      %3684 = dma.done [#allocation7], 1024
    $region53: #{tpu_custom_call.1} parent=1 // pred_fallthru
      _
    // Predicated region
    $region54: #{tpu_custom_call.1} parent=1 // pred_check
      _
    $region55: #{tpu_custom_call.1} parent=1 // pred_check_branch
      %3686 = sbr.rel (0) target = $region57
    $region56: #{tpu_custom_call.1} parent=1 // pred_region
      %3687 = dma.done [#allocation10], 128
    $region57: #{tpu_custom_call.1} parent=1 // pred_fallthru
      _
    // Predicated region
    $region58: #{tpu_custom_call.1} parent=1 // pred_check
      _
    $region59: #{tpu_custom_call.1} parent=1 // pred_check_branch
      %3689 = sbr.rel (0) target = $region61
    $region60: #{tpu_custom_call.1} parent=1 // pred_region
      %3690 = dma.done [#allocation10], 128
    $region61: #{tpu_custom_call.1} parent=1 // pred_fallthru
      _
    %3691 = vsyncpa [#allocation6], 1
    %3692 = vsyncpa [#allocation7], 1
    %3693 = vsyncpa [#allocation10], 1

</llo_original>
